<compile_context>
chip_gen: v6e
topology: v6e:2x2x1
jax: 0.10.0
libtpu: 0.0.40
codegen_flags: <defaults>
</compile_context>

<pallas_src>
import jax
import jax.numpy as jnp
from jax.experimental import pallas as pl
from jax.experimental.pallas import tpu as pltpu


# ----------------------------------------------------------------------------
# small helpers (plain JAX glue)
# ----------------------------------------------------------------------------
def _round_up(x, m):
    return ((x + m - 1) // m) * m


def conv1x1(x, w, b):
    # x: (B, Cin, H, W), w: (Cout, Cin), b: (Cout,)
    return jnp.einsum("oi,bihw->bohw", w, x) + b[None, :, None, None]


def _lin_interp_axis(x, out_size, axis):
    in_size = x.shape[axis]
    coords = jnp.arange(out_size, dtype=jnp.float32) * (
        (in_size - 1) / (out_size - 1))
    lo = jnp.clip(jnp.floor(coords).astype(jnp.int32), 0, in_size - 1)
    hi = jnp.minimum(lo + 1, in_size - 1)
    frac = coords - lo.astype(jnp.float32)
    xlo = jnp.take(x, lo, axis=axis)
    xhi = jnp.take(x, hi, axis=axis)
    shape = [1] * x.ndim
    shape[axis] = out_size
    frac = frac.reshape(shape)
    return xlo * (1.0 - frac) + xhi * frac


def resize_bilinear_align_corners(x, out_h, out_w):
    # matches F.interpolate(mode='bilinear', align_corners=True)
    x = _lin_interp_axis(x, out_h, axis=2)
    x = _lin_interp_axis(x, out_w, axis=3)
    return x


def resize_nearest(x, out_h, out_w):
    B, C, H, W = x.shape
    hi = jnp.floor(jnp.arange(out_h) * (H / out_h)).astype(jnp.int32)
    wi = jnp.floor(jnp.arange(out_w) * (W / out_w)).astype(jnp.int32)
    return x[:, :, hi, :][:, :, :, wi]


def im2col_3x3(x):
    # x: (B, C, H, W) -> (B, H*W, C*9) with flat index k = c*9 + u*3 + v,
    # col[b, h*W + w, k] = x_pad[b, c, h+u, w+v]   (zero padding of 1)
    B, C, H, W = x.shape
    xp = jnp.pad(x, ((0, 0), (0, 0), (1, 1), (1, 1)))
    cols = []
    for u in range(3):
        for v in range(3):
            cols.append(xp[:, :, u:u + H, v:v + W])  # (B, C, H, W)
    col = jnp.stack(cols, axis=2)                     # (B, C, 9, H, W)
    col = col.reshape(B, C * 9, H, W)
    col = col.transpose(0, 2, 3, 1).reshape(B, H * W, C * 9)
    return col


def col2im_3x3(ycol, C, H, W):
    # ycol: (B, H*W, C*9) -> (B, C, H, W); realises conv_transpose2d
    # (stride=1, padding=1) accumulation.
    B = ycol.shape[0]
    y = ycol.reshape(B, H, W, C, 3, 3)
    out = jnp.zeros((B, C, H + 2, W + 2), ycol.dtype)
    for u in range(3):
        for v in range(3):
            contrib = y[:, :, :, :, u, v].transpose(0, 3, 1, 2)  # (B, C, H, W)
            out = out.at[:, :, u:u + H, v:v + W].add(contrib)
    return out[:, :, 1:1 + H, 1:1 + W]


# ----------------------------------------------------------------------------
# per-generation tiling / VMEM budget
# ----------------------------------------------------------------------------
def _tile_and_vmem():
    """Query-tile size & scoped VMEM limit.

    Bigger tiles on 128 MiB-VMEM chips (v5e/v6e); conservative 256-row tiles
    otherwise (v7x has 64 MiB per TensorCore).  64 MiB scoped limit is above
    the defaults but <= physical VMEM on every generation, and far above the
    ~25 MB this kernel actually needs at full module sizes.
    """
    tq = 256
    try:
        if pltpu.get_tpu_info().vmem_capacity_bytes >= 96 * 1024 * 1024:
            tq = 512
    except Exception:
        pass
    return tq, 64 * 1024 * 1024


# ----------------------------------------------------------------------------
# Pallas kernel: attention hot path, tiled over (batch, query tile)
# ----------------------------------------------------------------------------
def atn_attention_pallas(fcol, wcol, rwcol, mm, softmax_scale, tq=None):
    """fcol : (B, HW1, CK) query patches (im2col of rw(x1))
       wcol : (B, P,  CK)  key patches   (im2col of f(x2))
       rwcol: (B, P,  CK)  value patches (im2col of w(x2))
       mm   : (B, 1,  P)   binary key-patch mask
       returns (B, HW1, CK) attention-aggregated patches (already /4)."""
    B, HW1, CK = fcol.shape
    P = wcol.shape[1]

    if tq is None:
        tq, vmem_limit = _tile_and_vmem()
    else:
        vmem_limit = 64 * 1024 * 1024

    # Key-patch L2 normalisation (escape_NaN = 1e-4) with the softmax scale
    # folded in, computed ONCE here (not per query tile), and transposed to
    # contraction-major (CK, P) so the in-kernel correlation is a plain
    # (TQ, CK) @ (CK, P) MXU matmul.
    norm = jnp.sqrt(jnp.sum(wcol * wcol, axis=2, keepdims=True))       # (B,P,1)
    wn = (wcol / jnp.maximum(norm, 1e-4)) * float(softmax_scale)
    wnt = jnp.swapaxes(wn, 1, 2)                                       # (B,CK,P)

    # Lane-dense padding of CK (multiple of 128) and query-row tiling.
    CKp = _round_up(CK, 128)
    TQ = min(tq, _round_up(HW1, 8))
    HW1p = _round_up(HW1, TQ)
    n_q = HW1p // TQ

    fcol_p = jnp.pad(fcol, ((0, 0), (0, HW1p - HW1), (0, CKp - CK)))
    wnt_p = jnp.pad(wnt, ((0, 0), (0, CKp - CK), (0, 0)))
    rw_p = jnp.pad(rwcol, ((0, 0), (0, 0), (0, CKp - CK)))

    # bf16 operands, f32 accumulation (halves HBM traffic + resident VMEM).
    fcol_p = fcol_p.astype(jnp.bfloat16)
    wnt_p = wnt_p.astype(jnp.bfloat16)
    rw_p = rw_p.astype(jnp.bfloat16)
    mm_f = mm.astype(jnp.float32)

    def kernel(f_ref, wnt_ref, rw_ref, m_ref, y_ref):
        # f_ref  : (TQ, CKp) bf16   query-patch tile
        # wnt_ref: (CKp, P)  bf16   pre-normalised, scale-folded keys (resident)
        # rw_ref : (P, CKp)  bf16   value patches (resident)
        # m_ref  : (1, P)    f32    key mask
        # y_ref  : (TQ, CKp) f32    output tile
        m = m_ref[...]
        # correlation of this query tile against every key patch
        s = jnp.dot(f_ref[...], wnt_ref[...],
                    preferred_element_type=jnp.float32)          # (TQ, P)
        s = s * m                        # mask-by-zero (matches the reference)
        z = s - jnp.max(s, axis=1, keepdims=True)
        e = jnp.exp(z)
        denom = jnp.sum(e, axis=1, keepdims=True)
        a = e * pl.reciprocal(denom, approx=True)                # EUP slot
        a = jnp.maximum(a * m, 1e-8)
        # attention-weighted sum of value patches; /4.0 of the reference
        # conv_transpose2d is folded in here.
        y = jnp.dot(a.astype(jnp.bfloat16), rw_ref[...],
                    preferred_element_type=jnp.float32)          # (TQ, CKp)
        y_ref[...] = y * 0.25

    cost = pl.CostEstimate(
        flops=int(4 * B * HW1p * P * CKp),
        transcendentals=int(B * HW1p * P),
        bytes_accessed=int(2 * (fcol_p.size + wnt_p.size + rw_p.size)
                           + 4 * mm_f.size + 4 * B * HW1p * CKp),
    )

    out = pl.pallas_call(
        kernel,
        out_shape=jax.ShapeDtypeStruct((B, HW1p, CKp), jnp.float32),
        grid_spec=pltpu.PrefetchScalarGridSpec(
            num_scalar_prefetch=0,
            grid=(B, n_q),
            in_specs=[
                # query tile streams over q; keys/values/mask stay resident
                pl.BlockSpec((None, TQ, CKp), lambda b, q: (b, q, 0)),
                pl.BlockSpec((None, CKp, P), lambda b, q: (b, 0, 0)),
                pl.BlockSpec((None, P, CKp), lambda b, q: (b, 0, 0)),
                pl.BlockSpec((None, 1, P), lambda b, q: (b, 0, 0)),
            ],
            out_specs=pl.BlockSpec((None, TQ, CKp), lambda b, q: (b, q, 0)),
        ),
        compiler_params=pltpu.CompilerParams(
            dimension_semantics=("parallel", "parallel"),
            vmem_limit_bytes=vmem_limit,
        ),
        cost_estimate=cost,
    )(fcol_p, wnt_p, rw_p, mm_f)

    return out[:, :HW1, :CK]


def atn_attention_ref(fcol, wcol, rwcol, mm, softmax_scale, bf16=False):
    # pure-JAX reference of the kernel math.  bf16=True mirrors the kernel's
    # mixed precision (tight check); bf16=False is the original f32 math.
    norm = jnp.sqrt(jnp.sum(wcol * wcol, axis=2, keepdims=True))
    wn = wcol / jnp.maximum(norm, 1e-4)
    if bf16:
        f = fcol.astype(jnp.bfloat16)
        wn_s = (wn * float(softmax_scale)).astype(jnp.bfloat16)
        s = jnp.einsum("bnk,bpk->bnp", f, wn_s,
                       preferred_element_type=jnp.float32)
        s = s * mm
        a = jax.nn.softmax(s, axis=2)
        a = jnp.maximum(a * mm, 1e-8)
        y = jnp.einsum("bnp,bpk->bnk", a.astype(jnp.bfloat16),
                       rwcol.astype(jnp.bfloat16),
                       preferred_element_type=jnp.float32)
        return y * 0.25
    s = jnp.einsum("bnk,bpk->bnp", fcol, wn)
    s = s * mm
    a = jax.nn.softmax(s * softmax_scale, axis=2)
    a = jnp.maximum(a * mm, 1e-8)
    return jnp.einsum("bnp,bpk->bnk", a, rwcol) * 0.25


# ----------------------------------------------------------------------------
# Full AtnConv forward
# ----------------------------------------------------------------------------
def atn_conv_forward(params, x1, x2, mask=None, ksize=3, stride=1,
                     softmax_scale=10.0, attn_impl="pallas"):
    assert ksize == 3 and stride == 1  # matches the reference defaults
    B, _, H1, W1 = x1.shape

    # x2 upsampled to the hard-coded 32x32 of the reference module
    x2r = resize_bilinear_align_corners(x2, 32, 32)

    x1p = conv1x1(x1, params["rw_w"], params["rw_b"])    # self.rw(x1)
    w_x2 = conv1x1(x2r, params["f_w"], params["f_b"])    # self.f(x2)
    rw_x2 = conv1x1(x2r, params["w_w"], params["w_b"])   # self.w(x2)
    Cout = x1p.shape[1]
    H2, W2 = w_x2.shape[2], w_x2.shape[3]

    if mask is None:
        mask = jnp.zeros((B, 1, H2, W2), jnp.float32)
    mask32 = resize_nearest(mask, H2, W2)

    # NOTE: the 9x im2col expansion / col2im paste-back stays in plain JAX;
    # folding it into the kernel via shifted loads would cut the query/output
    # HBM streams further (not needed for correctness).
    fcol = im2col_3x3(x1p)        # (B, H1*W1, Cout*9)
    wcol = im2col_3x3(w_x2)       # (B, H2*W2, Cout*9)
    rwcol = im2col_3x3(rw_x2)     # (B, H2*W2, Cout*9)
    mcol = im2col_3x3(mask32)     # (B, H2*W2, 9)
    mm = (jnp.mean(mcol, axis=2) > 0.5).astype(jnp.float32)[:, None, :]

    if attn_impl == "pallas":
        ycol = atn_attention_pallas(fcol, wcol, rwcol, mm, softmax_scale)
    elif attn_impl == "ref_bf16":
        ycol = atn_attention_ref(fcol, wcol, rwcol, mm, softmax_scale, bf16=True)
    else:
        ycol = atn_attention_ref(fcol, wcol, rwcol, mm, softmax_scale, bf16=False)

    y = col2im_3x3(ycol, Cout, H1, W1)   # conv_transpose2d paste-back
    return y


# ----------------------------------------------------------------------------
if __name__ == "__main__":
    key = jax.random.PRNGKey(0)
    ks = jax.random.split(key, 9)

    # small synthetic configuration (module defaults are 256/128; scaled down)
    Cin, Cout = 8, 4
    B, H1, W1 = 2, 16, 16

    params = dict(
        rw_w=0.1 * jax.random.normal(ks[0], (Cout, Cin), jnp.float32),
        rw_b=0.05 * jax.random.normal(ks[1], (Cout,), jnp.float32),
        f_w=0.1 * jax.random.normal(ks[2], (Cout, Cin), jnp.float32),
        f_b=0.05 * jax.random.normal(ks[3], (Cout,), jnp.float32),
        w_w=0.1 * jax.random.normal(ks[4], (Cout, Cin), jnp.float32),
        w_b=0.05 * jax.random.normal(ks[5], (Cout,), jnp.float32),
    )

    x1 = jax.random.normal(ks[6], (B, Cin, H1, W1), jnp.float32)
    x2 = jax.random.normal(ks[7], (B, Cin, 16, 16), jnp.float32)
    mask = (jax.random.uniform(ks[8], (B, 1, 32, 32)) > 0.5).astype(jnp.float32)

    y = atn_conv_forward(params, x1, x2, mask, attn_impl="pallas")
    y = jax.block_until_ready(y)
    assert y.shape == (B, Cout, H1, W1), y.shape

    # 1) tight check: kernel vs a numerically-matched (bf16 matmul) reference
    y_bf16 = jax.block_until_ready(
        atn_conv_forward(params, x1, x2, mask, attn_impl="ref_bf16"))
    rel_tight = float(jnp.linalg.norm(y - y_bf16) /
                      (jnp.linalg.norm(y_bf16) + 1e-12))
    assert rel_tight < 1e-2, f"kernel vs matched-ref error too large: {rel_tight}"

    # 2) looser check: kernel vs the original full-f32 math (bounds bf16 drift)
    y_f32 = jax.block_until_ready(
        atn_conv_forward(params, x1, x2, mask, attn_impl="ref_f32"))
    rel = float(jnp.linalg.norm(y - y_f32) / (jnp.linalg.norm(y_f32) + 1e-12))
    assert rel < 5e-2, f"kernel vs f32-ref error too large: {rel}"

    print("KERNEL_OK")
</pallas_src>

<mosaic_0001>
module attributes {stable_mosaic.version = 11 : i64} {
  func.func @kernel(%arg0: i32, %arg1: i32, %arg2: memref<1x256x128xbf16, #tpu.memory_space<vmem>>, %arg3: memref<1x128x1024xbf16, #tpu.memory_space<vmem>>, %arg4: memref<1x1024x128xbf16, #tpu.memory_space<vmem>>, %arg5: memref<1x1x1024xf32, #tpu.memory_space<vmem>>, %arg6: memref<1x256x128xf32, #tpu.memory_space<vmem>>) attributes {dimension_semantics = [#tpu.dimension_semantics<parallel>, #tpu.dimension_semantics<parallel>], iteration_bounds = array<i64: 2, 1>, scalar_prefetch = 0 : i64, scratch_operands = 0 : i64, tpu.core_type = #tpu.core_type<tc>, window_params = [{transform_indices = @transform_0, window_bounds = array<i64: 1, 256, 128>}, {transform_indices = @transform_1, window_bounds = array<i64: 1, 128, 1024>}, {transform_indices = @transform_2, window_bounds = array<i64: 1, 1024, 128>}, {transform_indices = @transform_3, window_bounds = array<i64: 1, 1, 1024>}, {transform_indices = @transform_4, window_bounds = array<i64: 1, 256, 128>}]} {
    %c0 = arith.constant 0 : index
    %c0_0 = arith.constant 0 : index
    %c0_1 = arith.constant 0 : index
    %0 = vector.load %arg5[%c0, %c0_0, %c0_1] : memref<1x1x1024xf32, #tpu.memory_space<vmem>>, vector<1x1x1024xf32>
    %1 = vector.shape_cast %0 : vector<1x1x1024xf32> to vector<1x1024xf32>
    %c0_2 = arith.constant 0 : index
    %c0_3 = arith.constant 0 : index
    %c0_4 = arith.constant 0 : index
    %2 = vector.load %arg2[%c0_2, %c0_3, %c0_4] : memref<1x256x128xbf16, #tpu.memory_space<vmem>>, vector<1x256x128xbf16>
    %3 = vector.shape_cast %2 : vector<1x256x128xbf16> to vector<256x128xbf16>
    %c0_5 = arith.constant 0 : index
    %c0_6 = arith.constant 0 : index
    %c0_7 = arith.constant 0 : index
    %4 = vector.load %arg3[%c0_5, %c0_6, %c0_7] : memref<1x128x1024xbf16, #tpu.memory_space<vmem>>, vector<1x128x1024xbf16>
    %5 = vector.shape_cast %4 : vector<1x128x1024xbf16> to vector<128x1024xbf16>
    %cst = arith.constant dense<0.000000e+00> : vector<256x1024xf32>
    %6 = tpu.matmul %3, %5, %cst {dimension_numbers = #tpu.dot_dimension_numbers<[1], [0], [0], [1], [0, 0, 1, 1], [], []>} : vector<256x128xbf16>, vector<128x1024xbf16>, vector<256x1024xf32> -> vector<256x1024xf32>
    %7 = vector.broadcast %1 : vector<1x1024xf32> to vector<256x1024xf32>
    %8 = arith.mulf %6, %7 : vector<256x1024xf32>
    %cst_8 = arith.constant dense<0xFF800000> : vector<256xf32>
    %9 = vector.multi_reduction <maximumf>, %8, %cst_8 [1] : vector<256x1024xf32> to vector<256xf32>
    %10 = vector.shape_cast %9 : vector<256xf32> to vector<256x1xf32>
    %11 = vector.broadcast %10 : vector<256x1xf32> to vector<256x1024xf32>
    %12 = arith.subf %8, %11 : vector<256x1024xf32>
    %13 = math.exp %12 : vector<256x1024xf32>
    %cst_9 = arith.constant dense<0.000000e+00> : vector<256xf32>
    %14 = vector.multi_reduction <add>, %13, %cst_9 [1] : vector<256x1024xf32> to vector<256xf32>
    %15 = vector.shape_cast %14 : vector<256xf32> to vector<256x1xf32>
    %16 = tpu.reciprocal %15 {approx = true} : vector<256x1xf32> -> vector<256x1xf32>
    %17 = vector.broadcast %16 : vector<256x1xf32> to vector<256x1024xf32>
    %18 = arith.mulf %13, %17 : vector<256x1024xf32>
    %19 = vector.broadcast %1 : vector<1x1024xf32> to vector<256x1024xf32>
    %20 = arith.mulf %18, %19 : vector<256x1024xf32>
    %cst_10 = arith.constant 9.99999993E-9 : f32
    %21 = vector.broadcast %cst_10 : f32 to vector<256x1024xf32>
    %22 = arith.maximumf %20, %21 : vector<256x1024xf32>
    %23 = arith.truncf %22 : vector<256x1024xf32> to vector<256x1024xbf16>
    %c0_11 = arith.constant 0 : index
    %c0_12 = arith.constant 0 : index
    %c0_13 = arith.constant 0 : index
    %24 = vector.load %arg4[%c0_11, %c0_12, %c0_13] : memref<1x1024x128xbf16, #tpu.memory_space<vmem>>, vector<1x1024x128xbf16>
    %25 = vector.shape_cast %24 : vector<1x1024x128xbf16> to vector<1024x128xbf16>
    %cst_14 = arith.constant dense<0.000000e+00> : vector<256x128xf32>
    %26 = tpu.matmul %23, %25, %cst_14 {dimension_numbers = #tpu.dot_dimension_numbers<[1], [0], [0], [1], [0, 0, 1, 1], [], []>} : vector<256x1024xbf16>, vector<1024x128xbf16>, vector<256x128xf32> -> vector<256x128xf32>
    %cst_15 = arith.constant 2.500000e-01 : f32
    %27 = vector.broadcast %cst_15 : f32 to vector<256x128xf32>
    %28 = arith.mulf %26, %27 : vector<256x128xf32>
    %c0_16 = arith.constant 0 : index
    %c0_17 = arith.constant 0 : index
    %c0_18 = arith.constant 0 : index
    %29 = vector.load %arg6[%c0_16, %c0_17, %c0_18] : memref<1x256x128xf32, #tpu.memory_space<vmem>>, vector<1x256x128xf32>
    %30 = vector.shape_cast %29 : vector<1x256x128xf32> to vector<256x128xf32>
    %31 = vector.shape_cast %28 : vector<256x128xf32> to vector<1x256x128xf32>
    tpu.vector_store %arg6[%c0_16, %c0_17, %c0_18], %31 {strides = array<i32>} : memref<1x256x128xf32, #tpu.memory_space<vmem>>, vector<1x256x128xf32>,
    return
  }
  func.func @transform_0(%arg0: i32, %arg1: i32) -> (i32, i32, i32) {
    %c0_i32 = arith.constant 0 : i32
    %c0_i32_0 = arith.constant 0 : i32
    return %arg0, %arg1, %c0_i32 : i32, i32, i32
  }
  func.func @transform_1(%arg0: i32, %arg1: i32) -> (i32, i32, i32) {
    %c0_i32 = arith.constant 0 : i32
    %c0_i32_0 = arith.constant 0 : i32
    %c0_i32_1 = arith.constant 0 : i32
    return %arg0, %c0_i32, %c0_i32_0 : i32, i32, i32
  }
  func.func @transform_2(%arg0: i32, %arg1: i32) -> (i32, i32, i32) {
    %c0_i32 = arith.constant 0 : i32
    %c0_i32_0 = arith.constant 0 : i32
    %c0_i32_1 = arith.constant 0 : i32
    return %arg0, %c0_i32, %c0_i32_0 : i32, i32, i32
  }
  func.func @transform_3(%arg0: i32, %arg1: i32) -> (i32, i32, i32) {
    %c0_i32 = arith.constant 0 : i32
    %c0_i32_0 = arith.constant 0 : i32
    %c0_i32_1 = arith.constant 0 : i32
    return %arg0, %c0_i32, %c0_i32_0 : i32, i32, i32
  }
  func.func @transform_4(%arg0: i32, %arg1: i32) -> (i32, i32, i32) {
    %c0_i32 = arith.constant 0 : i32
    %c0_i32_0 = arith.constant 0 : i32
    return %arg0, %arg1, %c0_i32 : i32, i32, i32
  }
}

</mosaic_0001>

<llo_original>
// kernel: tpu_custom_call.1
$region0: #{tpu_custom_call.1}
  #allocation0 [shape = 'u32[]', space=smem, size = 0x4, offset = 0x4, fixed_abs, tag = 'smem constant byte address 0x4 - core index']
  #allocation1 [shape = 'u32[144,128]{1,0:T(1,128)}', space=vmem, size = 0x12000, scoped, tag = 'internal scratch']
  %s0 = inlined_call_operand.hbm [shape: bf16[2,256,128], index: 0, kind: input, shape index: {}]
  %s1 = inlined_call_operand.hbm [shape: bf16[2,128,1024], index: 1, kind: input, shape index: {}]
  %s2 = inlined_call_operand.hbm [shape: bf16[2,1024,128], index: 2, kind: input, shape index: {}]
  %s3 = inlined_call_operand.hbm [shape: f32[2,1,1024], index: 3, kind: input, shape index: {}]
  %s4 = inlined_call_operand.hbm [shape: f32[2,256,128], index: 4, kind: output, shape index: {}]
  %s5 = sld [smem:[#allocation0]]
  $region65: #{tpu_custom_call.1} parent=0
    _
  %s7 = ssub.s32 1, %s5
  %s8 = scalar_select 0, %s7, %s5
  $region1: #{tpu_custom_call.1} parent=0
    #allocation2 [shape = 'u8[131072]{0}', space=vmem, size = 0x20000, scoped, tag = 'input window, operand 0']
    #allocation3 [shape = 's32[2]{0}', space=sflag, size = 0x8, scoped, tag = 'scoped memory for tpu_custom_call.1']
    #allocation4 [shape = 's32[2]{0}', space=sflag, size = 0x8, scoped, tag = 'scoped memory for tpu_custom_call.1']
    #allocation5 [shape = 'u8[524288]{0}', space=vmem, size = 0x80000, scoped, tag = 'input window, operand 1']
    #allocation6 [shape = 's32[2]{0}', space=sflag, size = 0x8, scoped, tag = 'scoped memory for tpu_custom_call.1']
    #allocation7 [shape = 'u8[524288]{0}', space=vmem, size = 0x80000, scoped, tag = 'input window, operand 2']
    #allocation8 [shape = 'u8[8192]{0}', space=vmem, size = 0x2000, scoped, tag = 'input window, operand 3']
    #allocation9 [shape = 's32[2]{0}', space=sflag, size = 0x8, scoped, tag = 'scoped memory for tpu_custom_call.1']
    #allocation10 [shape = 'u8[262144]{0}', space=vmem, size = 0x40000, scoped, tag = 'output window, operand 0']
    %9 = vsyncpa [#allocation3], 0
    %s10 = scalar_lea.sflag [#allocation3], 1
    %11 = vsyncpa %s10, 0
    %12 = vsyncpa [#allocation6], 0
    %s13 = scalar_lea.sflag [#allocation6], 1
    %14 = vsyncpa %s13, 0
    %15 = vsyncpa [#allocation9], 0
    %s16 = scalar_lea.sflag [#allocation9], 1
    %17 = vsyncpa %s16, 0
    %18 = vsyncpa [#allocation4], 0
    %s19 = scalar_lea.sflag [#allocation4], 1
    %20 = vsyncpa %s19, 0
    loop: start=0, step=1, limit=4
    $region2: #{tpu_custom_call.1} parent=1 // loop_pre_header
      _
    $region3: #{tpu_custom_call.1} parent=1 // loop_header
      %s22 = sphi 0, %s26
      %p23 = scmp.ge.s32.totalorder %s22, 4
      %s29 = sphi 0, %s41
      %s30 = sphi 0, %s37
      %s31 = sphi 0, %s29
      %s32 = sphi 0, %s30
      %s33 = sphi 0, %s31
      %s34 = sphi 0, %s32
      %s46 = sphi 0, %s48
      %s49 = sphi 0, %s46
      %s50 = sphi 0, %s49
      %s66 = sphi 0, %s50
      %s72 = sphi 0, %s74
      %s75 = sphi 0, %s72
      %s76 = sphi 0, %s75
      %s92 = sphi 0, %s76
      %s98 = sphi 0, %s100
      %s101 = sphi 0, %s98
      %s102 = sphi 0, %s101
      %s118 = sphi 0, %s102
      %s124 = sphi 0, %s126
      %s127 = sphi 0, %s124
      %s128 = sphi 0, %s127
      %s144 = sphi 0, %s128
      %s152 = sphi 0, %s154
      %s155 = sphi 0, %s152
      %s156 = sphi 0, %s155
      %s172 = sphi 0, %s156
    $region4: #{tpu_custom_call.1} parent=1 // loop_header_branch
      %25 = sbr.rel (%p23) target = $region8
    $region5: #{tpu_custom_call.1} parent=1 // loop_body
      %s27 = ssub.s32 %s22, 1
      %s28 = ssub.s32 %s22, 2
      %s35 = sadd.s32 1, %s30
      %p36 = scmp.ge.s32.totalorder %s35, 1
      %s37 = scalar_select %p36, 0, %s35
      %s38 = sadd.s32 1, %s29
      %s39 = scalar_select %p36, %s38, %s29
      %p40 = scmp.ge.s32.totalorder %s39, 2
      %s41 = scalar_select %p40, 0, %s39
      %s42 = ssub.s32 %s29, %s41
      %s43 = ssub.s32 %s30, %s37
      %s44 = sor.u32 %s42, %s43
      %p45 = scmp.eq.s32.totalorder %s44, 0
      %s47 = sadd.s32 %s46, 1
      %s48 = scalar_select %p45, %s46, %s47
      %p51 = pneg %p45
      %p52 = scmp.eq.s32.totalorder %s22, 1
      %p53 = por %p51, %p52
      %p54 = scmp.ne.s32.totalorder %s46, %s49
      %p55 = scmp.eq.s32.totalorder %s22, 0
      %p56 = por %p54, %p55
      %p57 = scmp.ne.s32.totalorder %s46, %s49
      %p58 = scmp.eq.s32.totalorder %s27, 1
      %p59 = por %p57, %p58
      %p60 = scmp.ne.s32.totalorder %s49, %s50
      %p61 = scmp.eq.s32.totalorder %s27, 0
      %p62 = por %p60, %p61
      %p63 = scmp.ne.s32.totalorder %s49, %s50
      %p64 = scmp.eq.s32.totalorder %s28, 1
      %p65 = por %p63, %p64
      %p67 = scmp.ne.s32.totalorder %s50, %s66
      %p68 = scmp.eq.s32.totalorder %s28, 0
      %p69 = por %p67, %p68
      %s70 = ssub.s32 %s29, %s41
      %p71 = scmp.eq.s32.totalorder %s70, 0
      %s73 = sadd.s32 %s72, 1
      %s74 = scalar_select %p71, %s72, %s73
      %p77 = pneg %p71
      %p78 = scmp.eq.s32.totalorder %s22, 1
      %p79 = por %p77, %p78
      %p80 = scmp.ne.s32.totalorder %s72, %s75
      %p81 = scmp.eq.s32.totalorder %s22, 0
      %p82 = por %p80, %p81
      %p83 = scmp.ne.s32.totalorder %s72, %s75
      %p84 = scmp.eq.s32.totalorder %s27, 1
      %p85 = por %p83, %p84
      %p86 = scmp.ne.s32.totalorder %s75, %s76
      %p87 = scmp.eq.s32.totalorder %s27, 0
      %p88 = por %p86, %p87
      %p89 = scmp.ne.s32.totalorder %s75, %s76
      %p90 = scmp.eq.s32.totalorder %s28, 1
      %p91 = por %p89, %p90
      %p93 = scmp.ne.s32.totalorder %s76, %s92
      %p94 = scmp.eq.s32.totalorder %s28, 0
      %p95 = por %p93, %p94
      %s96 = ssub.s32 %s29, %s41
      %p97 = scmp.eq.s32.totalorder %s96, 0
      %s99 = sadd.s32 %s98, 1
      %s100 = scalar_select %p97, %s98, %s99
      %p103 = pneg %p97
      %p104 = scmp.eq.s32.totalorder %s22, 1
      %p105 = por %p103, %p104
      %p106 = scmp.ne.s32.totalorder %s98, %s101
      %p107 = scmp.eq.s32.totalorder %s22, 0
      %p108 = por %p106, %p107
      %p109 = scmp.ne.s32.totalorder %s98, %s101
      %p110 = scmp.eq.s32.totalorder %s27, 1
      %p111 = por %p109, %p110
      %p112 = scmp.ne.s32.totalorder %s101, %s102
      %p113 = scmp.eq.s32.totalorder %s27, 0
      %p114 = por %p112, %p113
      %p115 = scmp.ne.s32.totalorder %s101, %s102
      %p116 = scmp.eq.s32.totalorder %s28, 1
      %p117 = por %p115, %p116
      %p119 = scmp.ne.s32.totalorder %s102, %s118
      %p120 = scmp.eq.s32.totalorder %s28, 0
      %p121 = por %p119, %p120
      %s122 = ssub.s32 %s29, %s41
      %p123 = scmp.eq.s32.totalorder %s122, 0
      %s125 = sadd.s32 %s124, 1
      %s126 = scalar_select %p123, %s124, %s125
      %p129 = pneg %p123
      %p130 = scmp.eq.s32.totalorder %s22, 1
      %p131 = por %p129, %p130
      %p132 = scmp.ne.s32.totalorder %s124, %s127
      %p133 = scmp.eq.s32.totalorder %s22, 0
      %p134 = por %p132, %p133
      %p135 = scmp.ne.s32.totalorder %s124, %s127
      %p136 = scmp.eq.s32.totalorder %s27, 1
      %p137 = por %p135, %p136
      %p138 = scmp.ne.s32.totalorder %s127, %s128
      %p139 = scmp.eq.s32.totalorder %s27, 0
      %p140 = por %p138, %p139
      %p141 = scmp.ne.s32.totalorder %s127, %s128
      %p142 = scmp.eq.s32.totalorder %s28, 1
      %p143 = por %p141, %p142
      %p145 = scmp.ne.s32.totalorder %s128, %s144
      %p146 = scmp.eq.s32.totalorder %s28, 0
      %p147 = por %p145, %p146
      %s148 = ssub.s32 %s29, %s41
      %s149 = ssub.s32 %s30, %s37
      %s150 = sor.u32 %s148, %s149
      %p151 = scmp.eq.s32.totalorder %s150, 0
      %s153 = sadd.s32 %s152, 1
      %s154 = scalar_select %p151, %s152, %s153
      %p157 = pneg %p151
      %p158 = scmp.eq.s32.totalorder %s22, 1
      %p159 = por %p157, %p158
      %p160 = scmp.ne.s32.totalorder %s152, %s155
      %p161 = scmp.eq.s32.totalorder %s22, 0
      %p162 = por %p160, %p161
      %p163 = scmp.ne.s32.totalorder %s152, %s155
      %p164 = scmp.eq.s32.totalorder %s27, 1
      %p165 = por %p163, %p164
      %p166 = scmp.ne.s32.totalorder %s155, %s156
      %p167 = scmp.eq.s32.totalorder %s27, 0
      %p168 = por %p166, %p167
      %p169 = scmp.ne.s32.totalorder %s155, %s156
      %p170 = scmp.eq.s32.totalorder %s28, 1
      %p171 = por %p169, %p170
      %p173 = scmp.ne.s32.totalorder %s156, %s172
      %p174 = scmp.eq.s32.totalorder %s28, 0
      %p175 = por %p173, %p174
      %p176 = scmp.le.s32.totalorder 1, %s22
      %p177 = scmp.lt.s32.totalorder %s22, 3
      %p178 = pnand %p176, %p177
      %p179 = pneg %p178
      // Predicated region
      $region9: #{tpu_custom_call.1} parent=5 // pred_check
        _
      $region10: #{tpu_custom_call.1} parent=5 // pred_check_branch
        %181 = sbr.rel (%p178) target = $region12
      $region11: #{tpu_custom_call.1} parent=5 // pred_region
        %s182 = ssub.s32 %s22, 1
      $region12: #{tpu_custom_call.1} parent=5 // pred_fallthru
        _
      %p183 = scmp.lt.s32.totalorder %s22, 2
      // Predicated region
      $region13: #{tpu_custom_call.1} parent=5 // pred_check
        %p184 = pneg %p183
      $region14: #{tpu_custom_call.1} parent=5 // pred_check_branch
        %186 = sbr.rel (%p184) target = $region16
      $region15: #{tpu_custom_call.1} parent=5 // pred_region
        // Predicated region
        $region17: #{tpu_custom_call.1} parent=15 // pred_check
          %p187 = pneg %p56
        $region18: #{tpu_custom_call.1} parent=15 // pred_check_branch
          %189 = sbr.rel (%p187) target = $region20
        $region19: #{tpu_custom_call.1} parent=15 // pred_region
          %s190 = sand.u32 %s46, 1
          %s191 = scalar_lea.sflag [#allocation3], %s190
          %s192 = sand.u32 %s46, 1
          %s193 = smul.addr %s192, 128
          %s194 = scalar_lea.vmem [#allocation2], %s193
          %s195 = smul.u32 32, %s30
          %s197 = ssub.s32 2048, 2048
          %198 = vsyncadd %s191, %s197
          %s199 = smul.addr %s29, 32
          %s200 = sadd.s32 %s195, %s199
          %s201 = smul.addr %s200, 64
          %s202 = scalar_lea.hbm %s0, %s201
          %s203 = sshll.u32 %s194, 4
          %s204 = int_to_ptr.vmem [resolvable:$true] %s203
          %209 = dma.hbm_to_vmem [thread:$0]  %s202, 2048, %s204, %s191, 64, 64, 4
        $region20: #{tpu_custom_call.1} parent=15 // pred_fallthru
          _
        // Predicated region
        $region21: #{tpu_custom_call.1} parent=15 // pred_check
          %p210 = pneg %p82
        $region22: #{tpu_custom_call.1} parent=15 // pred_check_branch
          %212 = sbr.rel (%p210) target = $region24
        $region23: #{tpu_custom_call.1} parent=15 // pred_region
          %s213 = sand.u32 %s22, 1
          %s214 = scalar_lea.sflag [#allocation6], %s213
          %s215 = sand.u32 %s72, 1
          %s216 = smul.addr %s215, 512
          %s217 = scalar_lea.vmem [#allocation5], %s216
          %s219 = ssub.s32 8192, 8192
          %220 = vsyncadd %s214, %s219
          %s221 = smul.addr %s29, 128
          %s222 = smul.addr %s221, 64
          %s223 = scalar_lea.hbm %s1, %s222
          %s224 = sshll.u32 %s217, 4
          %s225 = int_to_ptr.vmem [resolvable:$true] %s224
          %230 = dma.hbm_to_vmem [thread:$0]  %s223, 8192, %s225, %s214, 512, 512, 32
        $region24: #{tpu_custom_call.1} parent=15 // pred_fallthru
          _
        // Predicated region
        $region25: #{tpu_custom_call.1} parent=15 // pred_check
          %p231 = pneg %p108
        $region26: #{tpu_custom_call.1} parent=15 // pred_check_branch
          %233 = sbr.rel (%p231) target = $region28
        $region27: #{tpu_custom_call.1} parent=15 // pred_region
          %s234 = sand.u32 %s22, 1
          %s235 = scalar_lea.sflag [#allocation6], %s234
          %s236 = sand.u32 %s98, 1
          %s237 = smul.addr %s236, 512
          %s238 = scalar_lea.vmem [#allocation7], %s237
          %s240 = ssub.s32 8192, 8192
          %241 = vsyncadd %s235, %s240
          %s242 = smul.addr %s29, 128
          %s243 = smul.addr %s242, 64
          %s244 = scalar_lea.hbm %s2, %s243
          %s245 = sshll.u32 %s238, 4
          %s246 = int_to_ptr.vmem [resolvable:$true] %s245
          %251 = dma.hbm_to_vmem [thread:$0]  %s244, 8192, %s246, %s235, 64, 64, 4
        $region28: #{tpu_custom_call.1} parent=15 // pred_fallthru
          _
        // Predicated region
        $region29: #{tpu_custom_call.1} parent=15 // pred_check
          %p252 = pneg %p134
        $region30: #{tpu_custom_call.1} parent=15 // pred_check_branch
          %254 = sbr.rel (%p252) target = $region32
        $region31: #{tpu_custom_call.1} parent=15 // pred_region
          %s255 = sand.u32 %s124, 1
          %s256 = scalar_lea.sflag [#allocation9], %s255
          %s257 = sand.u32 %s124, 1
          %s258 = smul.addr %s257, 8
          %s259 = scalar_lea.vmem [#allocation8], %s258
          %s261 = ssub.s32 128, 128
          %262 = vsyncadd %s256, %s261
          %s263 = smul.addr %s29, 8
          %s264 = smul.addr %s263, 16
          %s265 = scalar_lea.hbm %s3, %s264
          %s267 = sshll.u32 %s259, 4
          %s268 = int_to_ptr.vmem [resolvable:$true] %s267
          %270 = dma.hbm_to_vmem [thread:$0]  %s265, 128, %s268, %s256
        $region32: #{tpu_custom_call.1} parent=15 // pred_fallthru
          _
      $region16: #{tpu_custom_call.1} parent=5 // pred_fallthru
        _
      %p271 = scmp.le.s32.totalorder 1, %s22
      %p272 = scmp.lt.s32.totalorder %s22, 3
      %p273 = pnand %p271, %p272
      %p274 = pneg %p273
      // Predicated region
      $region33: #{tpu_custom_call.1} parent=5 // pred_check
        _
      $region34: #{tpu_custom_call.1} parent=5 // pred_check_branch
        %276 = sbr.rel (%p273) target = $region36
      $region35: #{tpu_custom_call.1} parent=5 // pred_region
        %s277 = ssub.s32 %s22, 1
        %s278 = sand.u32 %s49, 1
        %s279 = scalar_lea.sflag [#allocation3], %s278
        %s280 = sand.u32 %s49, 1
        %s281 = smul.addr %s280, 128
        %s282 = scalar_lea.vmem [#allocation2], %s281
        // Predicated region
        $region37: #{tpu_custom_call.1} parent=35 // pred_check
          %p283 = pneg %p62
        $region38: #{tpu_custom_call.1} parent=35 // pred_check_branch
          %285 = sbr.rel (%p283) target = $region40
        $region39: #{tpu_custom_call.1} parent=35 // pred_region
          %286 = dma.done %s279, 2048
        $region40: #{tpu_custom_call.1} parent=35 // pred_fallthru
          _
        %s287 = sand.u32 %s27, 1
        %s288 = scalar_lea.sflag [#allocation6], %s287
        %s289 = sand.u32 %s75, 1
        %s290 = smul.addr %s289, 512
        %s291 = scalar_lea.vmem [#allocation5], %s290
        // Predicated region
        $region41: #{tpu_custom_call.1} parent=35 // pred_check
          %p292 = pneg %p88
        $region42: #{tpu_custom_call.1} parent=35 // pred_check_branch
          %294 = sbr.rel (%p292) target = $region44
        $region43: #{tpu_custom_call.1} parent=35 // pred_region
          %295 = dma.done %s288, 8192
        $region44: #{tpu_custom_call.1} parent=35 // pred_fallthru
          _
        %s296 = sand.u32 %s27, 1
        %s297 = scalar_lea.sflag [#allocation6], %s296
        %s298 = sand.u32 %s101, 1
        %s299 = smul.addr %s298, 512
        %s300 = scalar_lea.vmem [#allocation7], %s299
        // Predicated region
        $region45: #{tpu_custom_call.1} parent=35 // pred_check
          %p301 = pneg %p114
        $region46: #{tpu_custom_call.1} parent=35 // pred_check_branch
          %303 = sbr.rel (%p301) target = $region48
        $region47: #{tpu_custom_call.1} parent=35 // pred_region
          %304 = dma.done %s297, 8192
        $region48: #{tpu_custom_call.1} parent=35 // pred_fallthru
          _
        %s305 = sand.u32 %s127, 1
        %s306 = scalar_lea.sflag [#allocation9], %s305
        %s307 = sand.u32 %s127, 1
        %s308 = smul.addr %s307, 8
        %s309 = scalar_lea.vmem [#allocation8], %s308
        // Predicated region
        $region49: #{tpu_custom_call.1} parent=35 // pred_check
          %p310 = pneg %p140
        $region50: #{tpu_custom_call.1} parent=35 // pred_check_branch
          %312 = sbr.rel (%p310) target = $region52
        $region51: #{tpu_custom_call.1} parent=35 // pred_region
          %313 = dma.done %s306, 128
        $region52: #{tpu_custom_call.1} parent=35 // pred_fallthru
          _
        %s314 = sand.u32 %s49, 1
        %s315 = scalar_lea.sflag [#allocation3], %s314
        %s316 = sand.u32 %s49, 1
        %s317 = smul.addr %s316, 128
        %s318 = scalar_lea.vmem [#allocation2], %s317
        %p319 = pneg %p62
        %p320 = pneg %p59
        %s321 = sand.u32 %s27, 1
        %s322 = scalar_lea.sflag [#allocation6], %s321
        %s323 = sand.u32 %s75, 1
        %s324 = smul.addr %s323, 512
        %s325 = scalar_lea.vmem [#allocation5], %s324
        %p326 = pneg %p88
        %p327 = pneg %p85
        %s328 = sand.u32 %s27, 1
        %s329 = scalar_lea.sflag [#allocation6], %s328
        %s330 = sand.u32 %s101, 1
        %s331 = smul.addr %s330, 512
        %s332 = scalar_lea.vmem [#allocation7], %s331
        %p333 = pneg %p114
        %p334 = pneg %p111
        %s335 = sand.u32 %s127, 1
        %s336 = scalar_lea.sflag [#allocation9], %s335
        %s337 = sand.u32 %s127, 1
        %s338 = smul.addr %s337, 8
        %s339 = scalar_lea.vmem [#allocation8], %s338
        %p340 = pneg %p140
        %p341 = pneg %p137
        %p342 = pneg %p168
        %p343 = pneg %p165
        %s344 = sand.u32 %s155, 1
        %s345 = scalar_lea.sflag [#allocation4], %s344
        %s346 = sand.u32 %s155, 1
        %s347 = smul.addr %s346, 256
        %s348 = scalar_lea.vmem [#allocation10], %s347
        %s349 = smul.u32 32, %s32
        %s350 = smul.u32 32, %s32
        %v352 = vld [vmem:[%s309] sm:$0xff]
        %v353 = vld [vmem:[%s282] sm:$0xf]
        %v354 = vld [vmem:[%s282 + $0x4] sm:$0xf]
        %v355 = vld [vmem:[%s282 + $0x8] sm:$0xf]
        %v356 = vld [vmem:[%s282 + $0xc] sm:$0xf]
        %v357 = vld [vmem:[%s282 + $0x10] sm:$0xf]
        %v358 = vld [vmem:[%s282 + $0x14] sm:$0xf]
        %v359 = vld [vmem:[%s282 + $0x18] sm:$0xf]
        %v360 = vld [vmem:[%s282 + $0x1c] sm:$0xf]
        %v361 = vld [vmem:[%s282 + $0x20] sm:$0xf]
        %v362 = vld [vmem:[%s282 + $0x24] sm:$0xf]
        %v363 = vld [vmem:[%s282 + $0x28] sm:$0xf]
        %v364 = vld [vmem:[%s282 + $0x2c] sm:$0xf]
        %v365 = vld [vmem:[%s282 + $0x30] sm:$0xf]
        %v366 = vld [vmem:[%s282 + $0x34] sm:$0xf]
        %v367 = vld [vmem:[%s282 + $0x38] sm:$0xf]
        %v368 = vld [vmem:[%s282 + $0x3c] sm:$0xf]
        %v369 = vld [vmem:[%s282 + $0x40] sm:$0xf]
        %v370 = vld [vmem:[%s282 + $0x44] sm:$0xf]
        %v371 = vld [vmem:[%s282 + $0x48] sm:$0xf]
        %v372 = vld [vmem:[%s282 + $0x4c] sm:$0xf]
        %v373 = vld [vmem:[%s282 + $0x50] sm:$0xf]
        %v374 = vld [vmem:[%s282 + $0x54] sm:$0xf]
        %v375 = vld [vmem:[%s282 + $0x58] sm:$0xf]
        %v376 = vld [vmem:[%s282 + $0x5c] sm:$0xf]
        %v377 = vld [vmem:[%s282 + $0x60] sm:$0xf]
        %v378 = vld [vmem:[%s282 + $0x64] sm:$0xf]
        %v379 = vld [vmem:[%s282 + $0x68] sm:$0xf]
        %v380 = vld [vmem:[%s282 + $0x6c] sm:$0xf]
        %v381 = vld [vmem:[%s282 + $0x70] sm:$0xf]
        %v382 = vld [vmem:[%s282 + $0x74] sm:$0xf]
        %v383 = vld [vmem:[%s282 + $0x78] sm:$0xf]
        %v384 = vld [vmem:[%s282 + $0x7c] sm:$0xf]
        %v385 = vld [vmem:[%s291] sm:$0xff]
        %v386 = vld [vmem:[%s291 + $0x8] sm:$0xff]
        %v387 = vld [vmem:[%s291 + $0x10] sm:$0xff]
        %v388 = vld [vmem:[%s291 + $0x18] sm:$0xff]
        %v389 = vld [vmem:[%s291 + $0x20] sm:$0xff]
        %v390 = vld [vmem:[%s291 + $0x28] sm:$0xff]
        %v391 = vld [vmem:[%s291 + $0x30] sm:$0xff]
        %v392 = vld [vmem:[%s291 + $0x38] sm:$0xff]
        %v393 = vld [vmem:[%s291 + $0x40] sm:$0xff]
        %v394 = vld [vmem:[%s291 + $0x48] sm:$0xff]
        %v395 = vld [vmem:[%s291 + $0x50] sm:$0xff]
        %v396 = vld [vmem:[%s291 + $0x58] sm:$0xff]
        %v397 = vld [vmem:[%s291 + $0x60] sm:$0xff]
        %v398 = vld [vmem:[%s291 + $0x68] sm:$0xff]
        %v399 = vld [vmem:[%s291 + $0x70] sm:$0xff]
        %v400 = vld [vmem:[%s291 + $0x78] sm:$0xff]
        %v401 = vld [vmem:[%s291 + $0x80] sm:$0xff]
        %v402 = vld [vmem:[%s291 + $0x88] sm:$0xff]
        %v403 = vld [vmem:[%s291 + $0x90] sm:$0xff]
        %v404 = vld [vmem:[%s291 + $0x98] sm:$0xff]
        %v405 = vld [vmem:[%s291 + $0xa0] sm:$0xff]
        %v406 = vld [vmem:[%s291 + $0xa8] sm:$0xff]
        %v407 = vld [vmem:[%s291 + $0xb0] sm:$0xff]
        %v408 = vld [vmem:[%s291 + $0xb8] sm:$0xff]
        %v409 = vld [vmem:[%s291 + $0xc0] sm:$0xff]
        %v410 = vld [vmem:[%s291 + $0xc8] sm:$0xff]
        %v411 = vld [vmem:[%s291 + $0xd0] sm:$0xff]
        %v412 = vld [vmem:[%s291 + $0xd8] sm:$0xff]
        %v413 = vld [vmem:[%s291 + $0xe0] sm:$0xff]
        %v414 = vld [vmem:[%s291 + $0xe8] sm:$0xff]
        %v415 = vld [vmem:[%s291 + $0xf0] sm:$0xff]
        %v416 = vld [vmem:[%s291 + $0xf8] sm:$0xff]
        %v417 = vld [vmem:[%s291 + $0x100] sm:$0xff]
        %v418 = vld [vmem:[%s291 + $0x108] sm:$0xff]
        %v419 = vld [vmem:[%s291 + $0x110] sm:$0xff]
        %v420 = vld [vmem:[%s291 + $0x118] sm:$0xff]
        %v421 = vld [vmem:[%s291 + $0x120] sm:$0xff]
        %v422 = vld [vmem:[%s291 + $0x128] sm:$0xff]
        %v423 = vld [vmem:[%s291 + $0x130] sm:$0xff]
        %v424 = vld [vmem:[%s291 + $0x138] sm:$0xff]
        %v425 = vld [vmem:[%s291 + $0x140] sm:$0xff]
        %v426 = vld [vmem:[%s291 + $0x148] sm:$0xff]
        %v427 = vld [vmem:[%s291 + $0x150] sm:$0xff]
        %v428 = vld [vmem:[%s291 + $0x158] sm:$0xff]
        %v429 = vld [vmem:[%s291 + $0x160] sm:$0xff]
        %v430 = vld [vmem:[%s291 + $0x168] sm:$0xff]
        %v431 = vld [vmem:[%s291 + $0x170] sm:$0xff]
        %v432 = vld [vmem:[%s291 + $0x178] sm:$0xff]
        %v433 = vld [vmem:[%s291 + $0x180] sm:$0xff]
        %v434 = vld [vmem:[%s291 + $0x188] sm:$0xff]
        %v435 = vld [vmem:[%s291 + $0x190] sm:$0xff]
        %v436 = vld [vmem:[%s291 + $0x198] sm:$0xff]
        %v437 = vld [vmem:[%s291 + $0x1a0] sm:$0xff]
        %v438 = vld [vmem:[%s291 + $0x1a8] sm:$0xff]
        %v439 = vld [vmem:[%s291 + $0x1b0] sm:$0xff]
        %v440 = vld [vmem:[%s291 + $0x1b8] sm:$0xff]
        %v441 = vld [vmem:[%s291 + $0x1c0] sm:$0xff]
        %v442 = vld [vmem:[%s291 + $0x1c8] sm:$0xff]
        %v443 = vld [vmem:[%s291 + $0x1d0] sm:$0xff]
        %v444 = vld [vmem:[%s291 + $0x1d8] sm:$0xff]
        %v445 = vld [vmem:[%s291 + $0x1e0] sm:$0xff]
        %v446 = vld [vmem:[%s291 + $0x1e8] sm:$0xff]
        %v447 = vld [vmem:[%s291 + $0x1f0] sm:$0xff]
        %v448 = vld [vmem:[%s291 + $0x1f8] sm:$0xff]
        %v481 = vunpack.c.l.b16 %v353
        %v482 = vunpack.c.l.b16 %v354
        %v483 = vunpack.c.l.b16 %v355
        %v484 = vunpack.c.l.b16 %v356
        %v485 = vunpack.c.l.b16 %v357
        %v486 = vunpack.c.l.b16 %v358
        %v487 = vunpack.c.l.b16 %v359
        %v488 = vunpack.c.l.b16 %v360
        %v489 = vunpack.c.l.b16 %v361
        %v490 = vunpack.c.l.b16 %v362
        %v491 = vunpack.c.l.b16 %v363
        %v492 = vunpack.c.l.b16 %v364
        %v493 = vunpack.c.l.b16 %v365
        %v494 = vunpack.c.l.b16 %v366
        %v495 = vunpack.c.l.b16 %v367
        %v496 = vunpack.c.l.b16 %v368
        %v497 = vunpack.c.l.b16 %v369
        %v498 = vunpack.c.l.b16 %v370
        %v499 = vunpack.c.l.b16 %v371
        %v500 = vunpack.c.l.b16 %v372
        %v501 = vunpack.c.l.b16 %v373
        %v502 = vunpack.c.l.b16 %v374
        %v503 = vunpack.c.l.b16 %v375
        %v504 = vunpack.c.l.b16 %v376
        %v505 = vunpack.c.l.b16 %v377
        %v506 = vunpack.c.l.b16 %v378
        %v507 = vunpack.c.l.b16 %v379
        %v508 = vunpack.c.l.b16 %v380
        %v509 = vunpack.c.l.b16 %v381
        %v510 = vunpack.c.l.b16 %v382
        %v511 = vunpack.c.l.b16 %v383
        %v512 = vunpack.c.l.b16 %v384
        %v513 = vpack.c.b16 %v482, %v481
        %v514 = vpack.c.b16 %v484, %v483
        %v515 = vpack.c.b16 %v486, %v485
        %v516 = vpack.c.b16 %v488, %v487
        %v517 = vpack.c.b16 %v490, %v489
        %v518 = vpack.c.b16 %v492, %v491
        %v519 = vpack.c.b16 %v494, %v493
        %v520 = vpack.c.b16 %v496, %v495
        %v521 = vpack.c.b16 %v498, %v497
        %v522 = vpack.c.b16 %v500, %v499
        %v523 = vpack.c.b16 %v502, %v501
        %v524 = vpack.c.b16 %v504, %v503
        %v525 = vpack.c.b16 %v506, %v505
        %v526 = vpack.c.b16 %v508, %v507
        %v527 = vpack.c.b16 %v510, %v509
        %v528 = vpack.c.b16 %v512, %v511
        %v609 = vunpack.c.l.b16 %v385
        %v610 = vunpack.c.h.b16 %v385
        %v611 = vunpack.c.l.b16 %v386
        %v612 = vunpack.c.h.b16 %v386
        %v613 = vunpack.c.l.b16 %v387
        %v614 = vunpack.c.h.b16 %v387
        %v615 = vunpack.c.l.b16 %v388
        %v616 = vunpack.c.h.b16 %v388
        %v617 = vunpack.c.l.b16 %v389
        %v618 = vunpack.c.h.b16 %v389
        %v619 = vunpack.c.l.b16 %v390
        %v620 = vunpack.c.h.b16 %v390
        %v621 = vunpack.c.l.b16 %v391
        %v622 = vunpack.c.h.b16 %v391
        %v623 = vunpack.c.l.b16 %v392
        %v624 = vunpack.c.h.b16 %v392
        %v625 = vunpack.c.l.b16 %v393
        %v626 = vunpack.c.h.b16 %v393
        %v627 = vunpack.c.l.b16 %v394
        %v628 = vunpack.c.h.b16 %v394
        %v629 = vunpack.c.l.b16 %v395
        %v630 = vunpack.c.h.b16 %v395
        %v631 = vunpack.c.l.b16 %v396
        %v632 = vunpack.c.h.b16 %v396
        %v633 = vunpack.c.l.b16 %v397
        %v634 = vunpack.c.h.b16 %v397
        %v635 = vunpack.c.l.b16 %v398
        %v636 = vunpack.c.h.b16 %v398
        %v637 = vunpack.c.l.b16 %v399
        %v638 = vunpack.c.h.b16 %v399
        %v639 = vunpack.c.l.b16 %v400
        %v640 = vunpack.c.h.b16 %v400
        %v641 = vunpack.c.l.b16 %v401
        %v642 = vunpack.c.h.b16 %v401
        %v643 = vunpack.c.l.b16 %v402
        %v644 = vunpack.c.h.b16 %v402
        %v645 = vunpack.c.l.b16 %v403
        %v646 = vunpack.c.h.b16 %v403
        %v647 = vunpack.c.l.b16 %v404
        %v648 = vunpack.c.h.b16 %v404
        %v649 = vunpack.c.l.b16 %v405
        %v650 = vunpack.c.h.b16 %v405
        %v651 = vunpack.c.l.b16 %v406
        %v652 = vunpack.c.h.b16 %v406
        %v653 = vunpack.c.l.b16 %v407
        %v654 = vunpack.c.h.b16 %v407
        %v655 = vunpack.c.l.b16 %v408
        %v656 = vunpack.c.h.b16 %v408
        %v657 = vunpack.c.l.b16 %v409
        %v658 = vunpack.c.h.b16 %v409
        %v659 = vunpack.c.l.b16 %v410
        %v660 = vunpack.c.h.b16 %v410
        %v661 = vunpack.c.l.b16 %v411
        %v662 = vunpack.c.h.b16 %v411
        %v663 = vunpack.c.l.b16 %v412
        %v664 = vunpack.c.h.b16 %v412
        %v665 = vunpack.c.l.b16 %v413
        %v666 = vunpack.c.h.b16 %v413
        %v667 = vunpack.c.l.b16 %v414
        %v668 = vunpack.c.h.b16 %v414
        %v669 = vunpack.c.l.b16 %v415
        %v670 = vunpack.c.h.b16 %v415
        %v671 = vunpack.c.l.b16 %v416
        %v672 = vunpack.c.h.b16 %v416
        %v673 = vunpack.c.l.b16 %v417
        %v674 = vunpack.c.h.b16 %v417
        %v675 = vunpack.c.l.b16 %v418
        %v676 = vunpack.c.h.b16 %v418
        %v677 = vunpack.c.l.b16 %v419
        %v678 = vunpack.c.h.b16 %v419
        %v679 = vunpack.c.l.b16 %v420
        %v680 = vunpack.c.h.b16 %v420
        %v681 = vunpack.c.l.b16 %v421
        %v682 = vunpack.c.h.b16 %v421
        %v683 = vunpack.c.l.b16 %v422
        %v684 = vunpack.c.h.b16 %v422
        %v685 = vunpack.c.l.b16 %v423
        %v686 = vunpack.c.h.b16 %v423
        %v687 = vunpack.c.l.b16 %v424
        %v688 = vunpack.c.h.b16 %v424
        %v689 = vunpack.c.l.b16 %v425
        %v690 = vunpack.c.h.b16 %v425
        %v691 = vunpack.c.l.b16 %v426
        %v692 = vunpack.c.h.b16 %v426
        %v693 = vunpack.c.l.b16 %v427
        %v694 = vunpack.c.h.b16 %v427
        %v695 = vunpack.c.l.b16 %v428
        %v696 = vunpack.c.h.b16 %v428
        %v697 = vunpack.c.l.b16 %v429
        %v698 = vunpack.c.h.b16 %v429
        %v699 = vunpack.c.l.b16 %v430
        %v700 = vunpack.c.h.b16 %v430
        %v701 = vunpack.c.l.b16 %v431
        %v702 = vunpack.c.h.b16 %v431
        %v703 = vunpack.c.l.b16 %v432
        %v704 = vunpack.c.h.b16 %v432
        %v705 = vunpack.c.l.b16 %v433
        %v706 = vunpack.c.h.b16 %v433
        %v707 = vunpack.c.l.b16 %v434
        %v708 = vunpack.c.h.b16 %v434
        %v709 = vunpack.c.l.b16 %v435
        %v710 = vunpack.c.h.b16 %v435
        %v711 = vunpack.c.l.b16 %v436
        %v712 = vunpack.c.h.b16 %v436
        %v713 = vunpack.c.l.b16 %v437
        %v714 = vunpack.c.h.b16 %v437
        %v715 = vunpack.c.l.b16 %v438
        %v716 = vunpack.c.h.b16 %v438
        %v717 = vunpack.c.l.b16 %v439
        %v718 = vunpack.c.h.b16 %v439
        %v719 = vunpack.c.l.b16 %v440
        %v720 = vunpack.c.h.b16 %v440
        %v721 = vunpack.c.l.b16 %v441
        %v722 = vunpack.c.h.b16 %v441
        %v723 = vunpack.c.l.b16 %v442
        %v724 = vunpack.c.h.b16 %v442
        %v725 = vunpack.c.l.b16 %v443
        %v726 = vunpack.c.h.b16 %v443
        %v727 = vunpack.c.l.b16 %v444
        %v728 = vunpack.c.h.b16 %v444
        %v729 = vunpack.c.l.b16 %v445
        %v730 = vunpack.c.h.b16 %v445
        %v731 = vunpack.c.l.b16 %v446
        %v732 = vunpack.c.h.b16 %v446
        %v733 = vunpack.c.l.b16 %v447
        %v734 = vunpack.c.h.b16 %v447
        %v735 = vunpack.c.l.b16 %v448
        %v736 = vunpack.c.h.b16 %v448
        %v737 = vpack.c.b16 %v617, %v609
        %v738 = vpack.c.b16 %v618, %v610
        %v739 = vpack.c.b16 %v619, %v611
        %v740 = vpack.c.b16 %v620, %v612
        %v741 = vpack.c.b16 %v621, %v613
        %v742 = vpack.c.b16 %v622, %v614
        %v743 = vpack.c.b16 %v623, %v615
        %v744 = vpack.c.b16 %v624, %v616
        %v745 = vpack.c.b16 %v633, %v625
        %v746 = vpack.c.b16 %v634, %v626
        %v747 = vpack.c.b16 %v635, %v627
        %v748 = vpack.c.b16 %v636, %v628
        %v749 = vpack.c.b16 %v637, %v629
        %v750 = vpack.c.b16 %v638, %v630
        %v751 = vpack.c.b16 %v639, %v631
        %v752 = vpack.c.b16 %v640, %v632
        %v753 = vpack.c.b16 %v649, %v641
        %v754 = vpack.c.b16 %v650, %v642
        %v755 = vpack.c.b16 %v651, %v643
        %v756 = vpack.c.b16 %v652, %v644
        %v757 = vpack.c.b16 %v653, %v645
        %v758 = vpack.c.b16 %v654, %v646
        %v759 = vpack.c.b16 %v655, %v647
        %v760 = vpack.c.b16 %v656, %v648
        %v761 = vpack.c.b16 %v665, %v657
        %v762 = vpack.c.b16 %v666, %v658
        %v763 = vpack.c.b16 %v667, %v659
        %v764 = vpack.c.b16 %v668, %v660
        %v765 = vpack.c.b16 %v669, %v661
        %v766 = vpack.c.b16 %v670, %v662
        %v767 = vpack.c.b16 %v671, %v663
        %v768 = vpack.c.b16 %v672, %v664
        %v769 = vpack.c.b16 %v681, %v673
        %v770 = vpack.c.b16 %v682, %v674
        %v771 = vpack.c.b16 %v683, %v675
        %v772 = vpack.c.b16 %v684, %v676
        %v773 = vpack.c.b16 %v685, %v677
        %v774 = vpack.c.b16 %v686, %v678
        %v775 = vpack.c.b16 %v687, %v679
        %v776 = vpack.c.b16 %v688, %v680
        %v777 = vpack.c.b16 %v697, %v689
        %v778 = vpack.c.b16 %v698, %v690
        %v779 = vpack.c.b16 %v699, %v691
        %v780 = vpack.c.b16 %v700, %v692
        %v781 = vpack.c.b16 %v701, %v693
        %v782 = vpack.c.b16 %v702, %v694
        %v783 = vpack.c.b16 %v703, %v695
        %v784 = vpack.c.b16 %v704, %v696
        %v785 = vpack.c.b16 %v713, %v705
        %v786 = vpack.c.b16 %v714, %v706
        %v787 = vpack.c.b16 %v715, %v707
        %v788 = vpack.c.b16 %v716, %v708
        %v789 = vpack.c.b16 %v717, %v709
        %v790 = vpack.c.b16 %v718, %v710
        %v791 = vpack.c.b16 %v719, %v711
        %v792 = vpack.c.b16 %v720, %v712
        %v793 = vpack.c.b16 %v729, %v721
        %v794 = vpack.c.b16 %v730, %v722
        %v795 = vpack.c.b16 %v731, %v723
        %v796 = vpack.c.b16 %v732, %v724
        %v797 = vpack.c.b16 %v733, %v725
        %v798 = vpack.c.b16 %v734, %v726
        %v799 = vpack.c.b16 %v735, %v727
        %v800 = vpack.c.b16 %v736, %v728
        %865 = vmatprep.subr.bf16.mxu0 %v794
        %866 = vmatpush1.bf16.msra.mxu0 %v793
        %867 = vmatprep.subr.bf16.mxu0 %v786
        %868 = vmatpush1.bf16.msra.mxu0 %v785
        %869 = vmatprep.subr.bf16.mxu0 %v778
        %870 = vmatpush1.bf16.msra.mxu0 %v777
        %871 = vmatprep.subr.bf16.mxu0 %v770
        %872 = vmatpush1.bf16.msra.mxu0 %v769
        %873 = vmatprep.subr.bf16.mxu0 %v762
        %874 = vmatpush1.bf16.msra.mxu0 %v761
        %875 = vmatprep.subr.bf16.mxu0 %v754
        %876 = vmatpush1.bf16.msra.mxu0 %v753
        %877 = vmatprep.subr.bf16.mxu0 %v746
        %878 = vmatpush1.bf16.msra.mxu0 %v745
        %879 = vmatprep.subr.bf16.mxu0 %v738
        %880 = vmatpush1.bf16.msra.mxu0 %v737
        %881 = vmatprep.subr.bf16.mxu0 0
        %882 = vmatpush2.bf16.msra.mxu0 0
        %883 = vmatprep.subr.bf16.mxu0 0
        %884 = vmatpush2.bf16.msra.mxu0 0
        %885 = vmatprep.subr.bf16.mxu0 0
        %886 = vmatpush2.bf16.msra.mxu0 0
        %887 = vmatprep.subr.bf16.mxu0 0
        %888 = vmatpush2.bf16.msra.mxu0 0
        %889 = vmatprep.subr.bf16.mxu0 0
        %890 = vmatpush2.bf16.msra.mxu0 0
        %891 = vmatprep.subr.bf16.mxu0 0
        %892 = vmatpush2.bf16.msra.mxu0 0
        %893 = vmatprep.subr.bf16.mxu0 0
        %894 = vmatpush2.bf16.msra.mxu0 0
        %895 = vmatprep.subr.bf16.mxu0 0
        %896 = vmatpush2.bf16.msra.mxu0 0
        %897 = vmatprep.mubr.bf16.mxu0 0
        %898 = vmatmul.mubr.bf16.gmra.mxu0 %v513
        %v899 = vpop.f32.mrf.mxu0
        %v900 = vadd.f32 0.0, %v899
        %v901 = vpop.f32.mrf.mxu0
        %v902 = vadd.f32 0.0, %v901
        %v903 = vpop.f32.mrf.mxu0
        %v904 = vadd.f32 0.0, %v903
        %v905 = vpop.f32.mrf.mxu0
        %v906 = vadd.f32 0.0, %v905
        %907 = vmatprep.mubr.bf16.mxu0 0
        %908 = vmatmul.mubr.bf16.gmra.mxu0 %v514
        %v909 = vpop.f32.mrf.mxu0
        %v910 = vadd.f32 0.0, %v909
        %v911 = vpop.f32.mrf.mxu0
        %v912 = vadd.f32 0.0, %v911
        %v913 = vpop.f32.mrf.mxu0
        %v914 = vadd.f32 0.0, %v913
        %v915 = vpop.f32.mrf.mxu0
        %v916 = vadd.f32 0.0, %v915
        %917 = vmatprep.mubr.bf16.mxu0 0
        %918 = vmatmul.mubr.bf16.gmra.mxu0 %v515
        %v919 = vpop.f32.mrf.mxu0
        %v920 = vadd.f32 0.0, %v919
        %v921 = vpop.f32.mrf.mxu0
        %v922 = vadd.f32 0.0, %v921
        %v923 = vpop.f32.mrf.mxu0
        %v924 = vadd.f32 0.0, %v923
        %v925 = vpop.f32.mrf.mxu0
        %v926 = vadd.f32 0.0, %v925
        %927 = vmatprep.mubr.bf16.mxu0 0
        %928 = vmatmul.mubr.bf16.gmra.mxu0 %v516
        %v929 = vpop.f32.mrf.mxu0
        %v930 = vadd.f32 0.0, %v929
        %v931 = vpop.f32.mrf.mxu0
        %v932 = vadd.f32 0.0, %v931
        %v933 = vpop.f32.mrf.mxu0
        %v934 = vadd.f32 0.0, %v933
        %v935 = vpop.f32.mrf.mxu0
        %v936 = vadd.f32 0.0, %v935
        %937 = vmatprep.mubr.bf16.mxu0 0
        %938 = vmatmul.mubr.bf16.gmra.mxu0 %v517
        %v939 = vpop.f32.mrf.mxu0
        %v940 = vadd.f32 0.0, %v939
        %v941 = vpop.f32.mrf.mxu0
        %v942 = vadd.f32 0.0, %v941
        %v943 = vpop.f32.mrf.mxu0
        %v944 = vadd.f32 0.0, %v943
        %v945 = vpop.f32.mrf.mxu0
        %v946 = vadd.f32 0.0, %v945
        %947 = vmatprep.mubr.bf16.mxu0 0
        %948 = vmatmul.mubr.bf16.gmra.mxu0 %v518
        %v949 = vpop.f32.mrf.mxu0
        %v950 = vadd.f32 0.0, %v949
        %v951 = vpop.f32.mrf.mxu0
        %v952 = vadd.f32 0.0, %v951
        %v953 = vpop.f32.mrf.mxu0
        %v954 = vadd.f32 0.0, %v953
        %v955 = vpop.f32.mrf.mxu0
        %v956 = vadd.f32 0.0, %v955
        %957 = vmatprep.mubr.bf16.mxu0 0
        %958 = vmatmul.mubr.bf16.gmra.mxu0 %v519
        %v959 = vpop.f32.mrf.mxu0
        %v960 = vadd.f32 0.0, %v959
        %v961 = vpop.f32.mrf.mxu0
        %v962 = vadd.f32 0.0, %v961
        %v963 = vpop.f32.mrf.mxu0
        %v964 = vadd.f32 0.0, %v963
        %v965 = vpop.f32.mrf.mxu0
        %v966 = vadd.f32 0.0, %v965
        %967 = vmatprep.mubr.bf16.mxu0 0
        %968 = vmatmul.mubr.bf16.gmra.mxu0 %v520
        %v969 = vpop.f32.mrf.mxu0
        %v970 = vadd.f32 0.0, %v969
        %v971 = vpop.f32.mrf.mxu0
        %v972 = vadd.f32 0.0, %v971
        %v973 = vpop.f32.mrf.mxu0
        %v974 = vadd.f32 0.0, %v973
        %v975 = vpop.f32.mrf.mxu0
        %v976 = vadd.f32 0.0, %v975
        %977 = vmatprep.mubr.bf16.mxu0 0
        %978 = vmatmul.mubr.bf16.gmra.mxu0 %v521
        %v979 = vpop.f32.mrf.mxu0
        %v980 = vadd.f32 0.0, %v979
        %v981 = vpop.f32.mrf.mxu0
        %v982 = vadd.f32 0.0, %v981
        %v983 = vpop.f32.mrf.mxu0
        %v984 = vadd.f32 0.0, %v983
        %v985 = vpop.f32.mrf.mxu0
        %v986 = vadd.f32 0.0, %v985
        %987 = vmatprep.mubr.bf16.mxu0 0
        %988 = vmatmul.mubr.bf16.gmra.mxu0 %v522
        %v989 = vpop.f32.mrf.mxu0
        %v990 = vadd.f32 0.0, %v989
        %v991 = vpop.f32.mrf.mxu0
        %v992 = vadd.f32 0.0, %v991
        %v993 = vpop.f32.mrf.mxu0
        %v994 = vadd.f32 0.0, %v993
        %v995 = vpop.f32.mrf.mxu0
        %v996 = vadd.f32 0.0, %v995
        %997 = vmatprep.mubr.bf16.mxu0 0
        %998 = vmatmul.mubr.bf16.gmra.mxu0 %v523
        %v999 = vpop.f32.mrf.mxu0
        %v1000 = vadd.f32 0.0, %v999
        %v1001 = vpop.f32.mrf.mxu0
        %v1002 = vadd.f32 0.0, %v1001
        %v1003 = vpop.f32.mrf.mxu0
        %v1004 = vadd.f32 0.0, %v1003
        %v1005 = vpop.f32.mrf.mxu0
        %v1006 = vadd.f32 0.0, %v1005
        %1007 = vmatprep.mubr.bf16.mxu0 0
        %1008 = vmatmul.mubr.bf16.gmra.mxu0 %v524
        %v1009 = vpop.f32.mrf.mxu0
        %v1010 = vadd.f32 0.0, %v1009
        %v1011 = vpop.f32.mrf.mxu0
        %v1012 = vadd.f32 0.0, %v1011
        %v1013 = vpop.f32.mrf.mxu0
        %v1014 = vadd.f32 0.0, %v1013
        %v1015 = vpop.f32.mrf.mxu0
        %v1016 = vadd.f32 0.0, %v1015
        %1017 = vmatprep.mubr.bf16.mxu0 0
        %1018 = vmatmul.mubr.bf16.gmra.mxu0 %v525
        %v1019 = vpop.f32.mrf.mxu0
        %v1020 = vadd.f32 0.0, %v1019
        %v1021 = vpop.f32.mrf.mxu0
        %v1022 = vadd.f32 0.0, %v1021
        %v1023 = vpop.f32.mrf.mxu0
        %v1024 = vadd.f32 0.0, %v1023
        %v1025 = vpop.f32.mrf.mxu0
        %v1026 = vadd.f32 0.0, %v1025
        %1027 = vmatprep.mubr.bf16.mxu0 0
        %1028 = vmatmul.mubr.bf16.gmra.mxu0 %v526
        %v1029 = vpop.f32.mrf.mxu0
        %v1030 = vadd.f32 0.0, %v1029
        %v1031 = vpop.f32.mrf.mxu0
        %v1032 = vadd.f32 0.0, %v1031
        %v1033 = vpop.f32.mrf.mxu0
        %v1034 = vadd.f32 0.0, %v1033
        %v1035 = vpop.f32.mrf.mxu0
        %v1036 = vadd.f32 0.0, %v1035
        %1037 = vmatprep.mubr.bf16.mxu0 0
        %1038 = vmatmul.mubr.bf16.gmra.mxu0 %v527
        %v1039 = vpop.f32.mrf.mxu0
        %v1040 = vadd.f32 0.0, %v1039
        %v1041 = vpop.f32.mrf.mxu0
        %v1042 = vadd.f32 0.0, %v1041
        %v1043 = vpop.f32.mrf.mxu0
        %v1044 = vadd.f32 0.0, %v1043
        %v1045 = vpop.f32.mrf.mxu0
        %v1046 = vadd.f32 0.0, %v1045
        %1047 = vmatprep.mubr.bf16.mxu0 0
        %1048 = vmatmul.mubr.bf16.gmra.mxu0 %v528
        %v1049 = vpop.f32.mrf.mxu0
        %v1050 = vadd.f32 0.0, %v1049
        %v1051 = vpop.f32.mrf.mxu0
        %v1052 = vadd.f32 0.0, %v1051
        %v1053 = vpop.f32.mrf.mxu0
        %v1054 = vadd.f32 0.0, %v1053
        %v1055 = vpop.f32.mrf.mxu0
        %v1056 = vadd.f32 0.0, %v1055
        %1057 = vdwg.mxu0
        %1058 = vmatprep.subr.bf16.mxu0 %v796
        %1059 = vmatpush1.bf16.msra.mxu0 %v795
        %1060 = vmatprep.subr.bf16.mxu0 %v788
        %1061 = vmatpush1.bf16.msra.mxu0 %v787
        %1062 = vmatprep.subr.bf16.mxu0 %v780
        %1063 = vmatpush1.bf16.msra.mxu0 %v779
        %1064 = vmatprep.subr.bf16.mxu0 %v772
        %1065 = vmatpush1.bf16.msra.mxu0 %v771
        %1066 = vmatprep.subr.bf16.mxu0 %v764
        %1067 = vmatpush1.bf16.msra.mxu0 %v763
        %1068 = vmatprep.subr.bf16.mxu0 %v756
        %1069 = vmatpush1.bf16.msra.mxu0 %v755
        %1070 = vmatprep.subr.bf16.mxu0 %v748
        %1071 = vmatpush1.bf16.msra.mxu0 %v747
        %1072 = vmatprep.subr.bf16.mxu0 %v740
        %1073 = vmatpush1.bf16.msra.mxu0 %v739
        %1074 = vmatprep.subr.bf16.mxu0 0
        %1075 = vmatpush2.bf16.msra.mxu0 0
        %1076 = vmatprep.subr.bf16.mxu0 0
        %1077 = vmatpush2.bf16.msra.mxu0 0
        %1078 = vmatprep.subr.bf16.mxu0 0
        %1079 = vmatpush2.bf16.msra.mxu0 0
        %1080 = vmatprep.subr.bf16.mxu0 0
        %1081 = vmatpush2.bf16.msra.mxu0 0
        %1082 = vmatprep.subr.bf16.mxu0 0
        %1083 = vmatpush2.bf16.msra.mxu0 0
        %1084 = vmatprep.subr.bf16.mxu0 0
        %1085 = vmatpush2.bf16.msra.mxu0 0
        %1086 = vmatprep.subr.bf16.mxu0 0
        %1087 = vmatpush2.bf16.msra.mxu0 0
        %1088 = vmatprep.subr.bf16.mxu0 0
        %1089 = vmatpush2.bf16.msra.mxu0 0
        %1090 = vmatprep.mubr.bf16.mxu0 0
        %1091 = vmatmul.mubr.bf16.gmra.mxu0 %v513
        %v1092 = vpop.f32.mrf.mxu0
        %v1093 = vadd.f32 0.0, %v1092
        %v1094 = vpop.f32.mrf.mxu0
        %v1095 = vadd.f32 0.0, %v1094
        %v1096 = vpop.f32.mrf.mxu0
        %v1097 = vadd.f32 0.0, %v1096
        %v1098 = vpop.f32.mrf.mxu0
        %v1099 = vadd.f32 0.0, %v1098
        %1100 = vmatprep.mubr.bf16.mxu0 0
        %1101 = vmatmul.mubr.bf16.gmra.mxu0 %v514
        %v1102 = vpop.f32.mrf.mxu0
        %v1103 = vadd.f32 0.0, %v1102
        %v1104 = vpop.f32.mrf.mxu0
        %v1105 = vadd.f32 0.0, %v1104
        %v1106 = vpop.f32.mrf.mxu0
        %v1107 = vadd.f32 0.0, %v1106
        %v1108 = vpop.f32.mrf.mxu0
        %v1109 = vadd.f32 0.0, %v1108
        %1110 = vmatprep.mubr.bf16.mxu0 0
        %1111 = vmatmul.mubr.bf16.gmra.mxu0 %v515
        %v1112 = vpop.f32.mrf.mxu0
        %v1113 = vadd.f32 0.0, %v1112
        %v1114 = vpop.f32.mrf.mxu0
        %v1115 = vadd.f32 0.0, %v1114
        %v1116 = vpop.f32.mrf.mxu0
        %v1117 = vadd.f32 0.0, %v1116
        %v1118 = vpop.f32.mrf.mxu0
        %v1119 = vadd.f32 0.0, %v1118
        %1120 = vmatprep.mubr.bf16.mxu0 0
        %1121 = vmatmul.mubr.bf16.gmra.mxu0 %v516
        %v1122 = vpop.f32.mrf.mxu0
        %v1123 = vadd.f32 0.0, %v1122
        %v1124 = vpop.f32.mrf.mxu0
        %v1125 = vadd.f32 0.0, %v1124
        %v1126 = vpop.f32.mrf.mxu0
        %v1127 = vadd.f32 0.0, %v1126
        %v1128 = vpop.f32.mrf.mxu0
        %v1129 = vadd.f32 0.0, %v1128
        %1130 = vmatprep.mubr.bf16.mxu0 0
        %1131 = vmatmul.mubr.bf16.gmra.mxu0 %v517
        %v1132 = vpop.f32.mrf.mxu0
        %v1133 = vadd.f32 0.0, %v1132
        %v1134 = vpop.f32.mrf.mxu0
        %v1135 = vadd.f32 0.0, %v1134
        %v1136 = vpop.f32.mrf.mxu0
        %v1137 = vadd.f32 0.0, %v1136
        %v1138 = vpop.f32.mrf.mxu0
        %v1139 = vadd.f32 0.0, %v1138
        %1140 = vmatprep.mubr.bf16.mxu0 0
        %1141 = vmatmul.mubr.bf16.gmra.mxu0 %v518
        %v1142 = vpop.f32.mrf.mxu0
        %v1143 = vadd.f32 0.0, %v1142
        %v1144 = vpop.f32.mrf.mxu0
        %v1145 = vadd.f32 0.0, %v1144
        %v1146 = vpop.f32.mrf.mxu0
        %v1147 = vadd.f32 0.0, %v1146
        %v1148 = vpop.f32.mrf.mxu0
        %v1149 = vadd.f32 0.0, %v1148
        %1150 = vmatprep.mubr.bf16.mxu0 0
        %1151 = vmatmul.mubr.bf16.gmra.mxu0 %v519
        %v1152 = vpop.f32.mrf.mxu0
        %v1153 = vadd.f32 0.0, %v1152
        %v1154 = vpop.f32.mrf.mxu0
        %v1155 = vadd.f32 0.0, %v1154
        %v1156 = vpop.f32.mrf.mxu0
        %v1157 = vadd.f32 0.0, %v1156
        %v1158 = vpop.f32.mrf.mxu0
        %v1159 = vadd.f32 0.0, %v1158
        %1160 = vmatprep.mubr.bf16.mxu0 0
        %1161 = vmatmul.mubr.bf16.gmra.mxu0 %v520
        %v1162 = vpop.f32.mrf.mxu0
        %v1163 = vadd.f32 0.0, %v1162
        %v1164 = vpop.f32.mrf.mxu0
        %v1165 = vadd.f32 0.0, %v1164
        %v1166 = vpop.f32.mrf.mxu0
        %v1167 = vadd.f32 0.0, %v1166
        %v1168 = vpop.f32.mrf.mxu0
        %v1169 = vadd.f32 0.0, %v1168
        %1170 = vmatprep.mubr.bf16.mxu0 0
        %1171 = vmatmul.mubr.bf16.gmra.mxu0 %v521
        %v1172 = vpop.f32.mrf.mxu0
        %v1173 = vadd.f32 0.0, %v1172
        %v1174 = vpop.f32.mrf.mxu0
        %v1175 = vadd.f32 0.0, %v1174
        %v1176 = vpop.f32.mrf.mxu0
        %v1177 = vadd.f32 0.0, %v1176
        %v1178 = vpop.f32.mrf.mxu0
        %v1179 = vadd.f32 0.0, %v1178
        %1180 = vmatprep.mubr.bf16.mxu0 0
        %1181 = vmatmul.mubr.bf16.gmra.mxu0 %v522
        %v1182 = vpop.f32.mrf.mxu0
        %v1183 = vadd.f32 0.0, %v1182
        %v1184 = vpop.f32.mrf.mxu0
        %v1185 = vadd.f32 0.0, %v1184
        %v1186 = vpop.f32.mrf.mxu0
        %v1187 = vadd.f32 0.0, %v1186
        %v1188 = vpop.f32.mrf.mxu0
        %v1189 = vadd.f32 0.0, %v1188
        %1190 = vmatprep.mubr.bf16.mxu0 0
        %1191 = vmatmul.mubr.bf16.gmra.mxu0 %v523
        %v1192 = vpop.f32.mrf.mxu0
        %v1193 = vadd.f32 0.0, %v1192
        %v1194 = vpop.f32.mrf.mxu0
        %v1195 = vadd.f32 0.0, %v1194
        %v1196 = vpop.f32.mrf.mxu0
        %v1197 = vadd.f32 0.0, %v1196
        %v1198 = vpop.f32.mrf.mxu0
        %v1199 = vadd.f32 0.0, %v1198
        %1200 = vmatprep.mubr.bf16.mxu0 0
        %1201 = vmatmul.mubr.bf16.gmra.mxu0 %v524
        %v1202 = vpop.f32.mrf.mxu0
        %v1203 = vadd.f32 0.0, %v1202
        %v1204 = vpop.f32.mrf.mxu0
        %v1205 = vadd.f32 0.0, %v1204
        %v1206 = vpop.f32.mrf.mxu0
        %v1207 = vadd.f32 0.0, %v1206
        %v1208 = vpop.f32.mrf.mxu0
        %v1209 = vadd.f32 0.0, %v1208
        %1210 = vmatprep.mubr.bf16.mxu0 0
        %1211 = vmatmul.mubr.bf16.gmra.mxu0 %v525
        %v1212 = vpop.f32.mrf.mxu0
        %v1213 = vadd.f32 0.0, %v1212
        %v1214 = vpop.f32.mrf.mxu0
        %v1215 = vadd.f32 0.0, %v1214
        %v1216 = vpop.f32.mrf.mxu0
        %v1217 = vadd.f32 0.0, %v1216
        %v1218 = vpop.f32.mrf.mxu0
        %v1219 = vadd.f32 0.0, %v1218
        %1220 = vmatprep.mubr.bf16.mxu0 0
        %1221 = vmatmul.mubr.bf16.gmra.mxu0 %v526
        %v1222 = vpop.f32.mrf.mxu0
        %v1223 = vadd.f32 0.0, %v1222
        %v1224 = vpop.f32.mrf.mxu0
        %v1225 = vadd.f32 0.0, %v1224
        %v1226 = vpop.f32.mrf.mxu0
        %v1227 = vadd.f32 0.0, %v1226
        %v1228 = vpop.f32.mrf.mxu0
        %v1229 = vadd.f32 0.0, %v1228
        %1230 = vmatprep.mubr.bf16.mxu0 0
        %1231 = vmatmul.mubr.bf16.gmra.mxu0 %v527
        %v1232 = vpop.f32.mrf.mxu0
        %v1233 = vadd.f32 0.0, %v1232
        %v1234 = vpop.f32.mrf.mxu0
        %v1235 = vadd.f32 0.0, %v1234
        %v1236 = vpop.f32.mrf.mxu0
        %v1237 = vadd.f32 0.0, %v1236
        %v1238 = vpop.f32.mrf.mxu0
        %v1239 = vadd.f32 0.0, %v1238
        %1240 = vmatprep.mubr.bf16.mxu0 0
        %1241 = vmatmul.mubr.bf16.gmra.mxu0 %v528
        %v1242 = vpop.f32.mrf.mxu0
        %v1243 = vadd.f32 0.0, %v1242
        %v1244 = vpop.f32.mrf.mxu0
        %v1245 = vadd.f32 0.0, %v1244
        %v1246 = vpop.f32.mrf.mxu0
        %v1247 = vadd.f32 0.0, %v1246
        %v1248 = vpop.f32.mrf.mxu0
        %v1249 = vadd.f32 0.0, %v1248
        %1250 = vdwg.mxu0
        %1251 = vmatprep.subr.bf16.mxu0 %v798
        %1252 = vmatpush1.bf16.msra.mxu0 %v797
        %1253 = vmatprep.subr.bf16.mxu0 %v790
        %1254 = vmatpush1.bf16.msra.mxu0 %v789
        %1255 = vmatprep.subr.bf16.mxu0 %v782
        %1256 = vmatpush1.bf16.msra.mxu0 %v781
        %1257 = vmatprep.subr.bf16.mxu0 %v774
        %1258 = vmatpush1.bf16.msra.mxu0 %v773
        %1259 = vmatprep.subr.bf16.mxu0 %v766
        %1260 = vmatpush1.bf16.msra.mxu0 %v765
        %1261 = vmatprep.subr.bf16.mxu0 %v758
        %1262 = vmatpush1.bf16.msra.mxu0 %v757
        %1263 = vmatprep.subr.bf16.mxu0 %v750
        %1264 = vmatpush1.bf16.msra.mxu0 %v749
        %1265 = vmatprep.subr.bf16.mxu0 %v742
        %1266 = vmatpush1.bf16.msra.mxu0 %v741
        %1267 = vmatprep.subr.bf16.mxu0 0
        %1268 = vmatpush2.bf16.msra.mxu0 0
        %1269 = vmatprep.subr.bf16.mxu0 0
        %1270 = vmatpush2.bf16.msra.mxu0 0
        %1271 = vmatprep.subr.bf16.mxu0 0
        %1272 = vmatpush2.bf16.msra.mxu0 0
        %1273 = vmatprep.subr.bf16.mxu0 0
        %1274 = vmatpush2.bf16.msra.mxu0 0
        %1275 = vmatprep.subr.bf16.mxu0 0
        %1276 = vmatpush2.bf16.msra.mxu0 0
        %1277 = vmatprep.subr.bf16.mxu0 0
        %1278 = vmatpush2.bf16.msra.mxu0 0
        %1279 = vmatprep.subr.bf16.mxu0 0
        %1280 = vmatpush2.bf16.msra.mxu0 0
        %1281 = vmatprep.subr.bf16.mxu0 0
        %1282 = vmatpush2.bf16.msra.mxu0 0
        %1283 = vmatprep.mubr.bf16.mxu0 0
        %1284 = vmatmul.mubr.bf16.gmra.mxu0 %v513
        %v1285 = vpop.f32.mrf.mxu0
        %v1286 = vadd.f32 0.0, %v1285
        %v1287 = vpop.f32.mrf.mxu0
        %v1288 = vadd.f32 0.0, %v1287
        %v1289 = vpop.f32.mrf.mxu0
        %v1290 = vadd.f32 0.0, %v1289
        %v1291 = vpop.f32.mrf.mxu0
        %v1292 = vadd.f32 0.0, %v1291
        %1293 = vmatprep.mubr.bf16.mxu0 0
        %1294 = vmatmul.mubr.bf16.gmra.mxu0 %v514
        %v1295 = vpop.f32.mrf.mxu0
        %v1296 = vadd.f32 0.0, %v1295
        %v1297 = vpop.f32.mrf.mxu0
        %v1298 = vadd.f32 0.0, %v1297
        %v1299 = vpop.f32.mrf.mxu0
        %v1300 = vadd.f32 0.0, %v1299
        %v1301 = vpop.f32.mrf.mxu0
        %v1302 = vadd.f32 0.0, %v1301
        %1303 = vmatprep.mubr.bf16.mxu0 0
        %1304 = vmatmul.mubr.bf16.gmra.mxu0 %v515
        %v1305 = vpop.f32.mrf.mxu0
        %v1306 = vadd.f32 0.0, %v1305
        %v1307 = vpop.f32.mrf.mxu0
        %v1308 = vadd.f32 0.0, %v1307
        %v1309 = vpop.f32.mrf.mxu0
        %v1310 = vadd.f32 0.0, %v1309
        %v1311 = vpop.f32.mrf.mxu0
        %v1312 = vadd.f32 0.0, %v1311
        %1313 = vmatprep.mubr.bf16.mxu0 0
        %1314 = vmatmul.mubr.bf16.gmra.mxu0 %v516
        %v1315 = vpop.f32.mrf.mxu0
        %v1316 = vadd.f32 0.0, %v1315
        %v1317 = vpop.f32.mrf.mxu0
        %v1318 = vadd.f32 0.0, %v1317
        %v1319 = vpop.f32.mrf.mxu0
        %v1320 = vadd.f32 0.0, %v1319
        %v1321 = vpop.f32.mrf.mxu0
        %v1322 = vadd.f32 0.0, %v1321
        %1323 = vmatprep.mubr.bf16.mxu0 0
        %1324 = vmatmul.mubr.bf16.gmra.mxu0 %v517
        %v1325 = vpop.f32.mrf.mxu0
        %v1326 = vadd.f32 0.0, %v1325
        %v1327 = vpop.f32.mrf.mxu0
        %v1328 = vadd.f32 0.0, %v1327
        %v1329 = vpop.f32.mrf.mxu0
        %v1330 = vadd.f32 0.0, %v1329
        %v1331 = vpop.f32.mrf.mxu0
        %v1332 = vadd.f32 0.0, %v1331
        %1333 = vmatprep.mubr.bf16.mxu0 0
        %1334 = vmatmul.mubr.bf16.gmra.mxu0 %v518
        %v1335 = vpop.f32.mrf.mxu0
        %v1336 = vadd.f32 0.0, %v1335
        %v1337 = vpop.f32.mrf.mxu0
        %v1338 = vadd.f32 0.0, %v1337
        %v1339 = vpop.f32.mrf.mxu0
        %v1340 = vadd.f32 0.0, %v1339
        %v1341 = vpop.f32.mrf.mxu0
        %v1342 = vadd.f32 0.0, %v1341
        %1343 = vmatprep.mubr.bf16.mxu0 0
        %1344 = vmatmul.mubr.bf16.gmra.mxu0 %v519
        %v1345 = vpop.f32.mrf.mxu0
        %v1346 = vadd.f32 0.0, %v1345
        %v1347 = vpop.f32.mrf.mxu0
        %v1348 = vadd.f32 0.0, %v1347
        %v1349 = vpop.f32.mrf.mxu0
        %v1350 = vadd.f32 0.0, %v1349
        %v1351 = vpop.f32.mrf.mxu0
        %v1352 = vadd.f32 0.0, %v1351
        %1353 = vmatprep.mubr.bf16.mxu0 0
        %1354 = vmatmul.mubr.bf16.gmra.mxu0 %v520
        %v1355 = vpop.f32.mrf.mxu0
        %v1356 = vadd.f32 0.0, %v1355
        %v1357 = vpop.f32.mrf.mxu0
        %v1358 = vadd.f32 0.0, %v1357
        %v1359 = vpop.f32.mrf.mxu0
        %v1360 = vadd.f32 0.0, %v1359
        %v1361 = vpop.f32.mrf.mxu0
        %v1362 = vadd.f32 0.0, %v1361
        %1363 = vmatprep.mubr.bf16.mxu0 0
        %1364 = vmatmul.mubr.bf16.gmra.mxu0 %v521
        %v1365 = vpop.f32.mrf.mxu0
        %v1366 = vadd.f32 0.0, %v1365
        %v1367 = vpop.f32.mrf.mxu0
        %v1368 = vadd.f32 0.0, %v1367
        %v1369 = vpop.f32.mrf.mxu0
        %v1370 = vadd.f32 0.0, %v1369
        %v1371 = vpop.f32.mrf.mxu0
        %v1372 = vadd.f32 0.0, %v1371
        %1373 = vmatprep.mubr.bf16.mxu0 0
        %1374 = vmatmul.mubr.bf16.gmra.mxu0 %v522
        %v1375 = vpop.f32.mrf.mxu0
        %v1376 = vadd.f32 0.0, %v1375
        %v1377 = vpop.f32.mrf.mxu0
        %v1378 = vadd.f32 0.0, %v1377
        %v1379 = vpop.f32.mrf.mxu0
        %v1380 = vadd.f32 0.0, %v1379
        %v1381 = vpop.f32.mrf.mxu0
        %v1382 = vadd.f32 0.0, %v1381
        %1383 = vmatprep.mubr.bf16.mxu0 0
        %1384 = vmatmul.mubr.bf16.gmra.mxu0 %v523
        %v1385 = vpop.f32.mrf.mxu0
        %v1386 = vadd.f32 0.0, %v1385
        %v1387 = vpop.f32.mrf.mxu0
        %v1388 = vadd.f32 0.0, %v1387
        %v1389 = vpop.f32.mrf.mxu0
        %v1390 = vadd.f32 0.0, %v1389
        %v1391 = vpop.f32.mrf.mxu0
        %v1392 = vadd.f32 0.0, %v1391
        %1393 = vmatprep.mubr.bf16.mxu0 0
        %1394 = vmatmul.mubr.bf16.gmra.mxu0 %v524
        %v1395 = vpop.f32.mrf.mxu0
        %v1396 = vadd.f32 0.0, %v1395
        %v1397 = vpop.f32.mrf.mxu0
        %v1398 = vadd.f32 0.0, %v1397
        %v1399 = vpop.f32.mrf.mxu0
        %v1400 = vadd.f32 0.0, %v1399
        %v1401 = vpop.f32.mrf.mxu0
        %v1402 = vadd.f32 0.0, %v1401
        %1403 = vmatprep.mubr.bf16.mxu0 0
        %1404 = vmatmul.mubr.bf16.gmra.mxu0 %v525
        %v1405 = vpop.f32.mrf.mxu0
        %v1406 = vadd.f32 0.0, %v1405
        %v1407 = vpop.f32.mrf.mxu0
        %v1408 = vadd.f32 0.0, %v1407
        %v1409 = vpop.f32.mrf.mxu0
        %v1410 = vadd.f32 0.0, %v1409
        %v1411 = vpop.f32.mrf.mxu0
        %v1412 = vadd.f32 0.0, %v1411
        %1413 = vmatprep.mubr.bf16.mxu0 0
        %1414 = vmatmul.mubr.bf16.gmra.mxu0 %v526
        %v1415 = vpop.f32.mrf.mxu0
        %v1416 = vadd.f32 0.0, %v1415
        %v1417 = vpop.f32.mrf.mxu0
        %v1418 = vadd.f32 0.0, %v1417
        %v1419 = vpop.f32.mrf.mxu0
        %v1420 = vadd.f32 0.0, %v1419
        %v1421 = vpop.f32.mrf.mxu0
        %v1422 = vadd.f32 0.0, %v1421
        %1423 = vmatprep.mubr.bf16.mxu0 0
        %1424 = vmatmul.mubr.bf16.gmra.mxu0 %v527
        %v1425 = vpop.f32.mrf.mxu0
        %v1426 = vadd.f32 0.0, %v1425
        %v1427 = vpop.f32.mrf.mxu0
        %v1428 = vadd.f32 0.0, %v1427
        %v1429 = vpop.f32.mrf.mxu0
        %v1430 = vadd.f32 0.0, %v1429
        %v1431 = vpop.f32.mrf.mxu0
        %v1432 = vadd.f32 0.0, %v1431
        %1433 = vmatprep.mubr.bf16.mxu0 0
        %1434 = vmatmul.mubr.bf16.gmra.mxu0 %v528
        %v1435 = vpop.f32.mrf.mxu0
        %v1436 = vadd.f32 0.0, %v1435
        %v1437 = vpop.f32.mrf.mxu0
        %v1438 = vadd.f32 0.0, %v1437
        %v1439 = vpop.f32.mrf.mxu0
        %v1440 = vadd.f32 0.0, %v1439
        %v1441 = vpop.f32.mrf.mxu0
        %v1442 = vadd.f32 0.0, %v1441
        %1443 = vdwg.mxu0
        %1444 = vmatprep.subr.bf16.mxu0 %v800
        %1445 = vmatpush1.bf16.msra.mxu0 %v799
        %1446 = vmatprep.subr.bf16.mxu0 %v792
        %1447 = vmatpush1.bf16.msra.mxu0 %v791
        %1448 = vmatprep.subr.bf16.mxu0 %v784
        %1449 = vmatpush1.bf16.msra.mxu0 %v783
        %1450 = vmatprep.subr.bf16.mxu0 %v776
        %1451 = vmatpush1.bf16.msra.mxu0 %v775
        %1452 = vmatprep.subr.bf16.mxu0 %v768
        %1453 = vmatpush1.bf16.msra.mxu0 %v767
        %1454 = vmatprep.subr.bf16.mxu0 %v760
        %1455 = vmatpush1.bf16.msra.mxu0 %v759
        %1456 = vmatprep.subr.bf16.mxu0 %v752
        %1457 = vmatpush1.bf16.msra.mxu0 %v751
        %1458 = vmatprep.subr.bf16.mxu0 %v744
        %1459 = vmatpush1.bf16.msra.mxu0 %v743
        %1460 = vmatprep.subr.bf16.mxu0 0
        %1461 = vmatpush2.bf16.msra.mxu0 0
        %1462 = vmatprep.subr.bf16.mxu0 0
        %1463 = vmatpush2.bf16.msra.mxu0 0
        %1464 = vmatprep.subr.bf16.mxu0 0
        %1465 = vmatpush2.bf16.msra.mxu0 0
        %1466 = vmatprep.subr.bf16.mxu0 0
        %1467 = vmatpush2.bf16.msra.mxu0 0
        %1468 = vmatprep.subr.bf16.mxu0 0
        %1469 = vmatpush2.bf16.msra.mxu0 0
        %1470 = vmatprep.subr.bf16.mxu0 0
        %1471 = vmatpush2.bf16.msra.mxu0 0
        %1472 = vmatprep.subr.bf16.mxu0 0
        %1473 = vmatpush2.bf16.msra.mxu0 0
        %1474 = vmatprep.subr.bf16.mxu0 0
        %1475 = vmatpush2.bf16.msra.mxu0 0
        %1476 = vmatprep.mubr.bf16.mxu0 0
        %1477 = vmatmul.mubr.bf16.gmra.mxu0 %v513
        %v1478 = vpop.f32.mrf.mxu0
        %v1479 = vadd.f32 0.0, %v1478
        %v1480 = vpop.f32.mrf.mxu0
        %v1481 = vadd.f32 0.0, %v1480
        %v1482 = vpop.f32.mrf.mxu0
        %v1483 = vadd.f32 0.0, %v1482
        %v1484 = vpop.f32.mrf.mxu0
        %v1485 = vadd.f32 0.0, %v1484
        %1486 = vmatprep.mubr.bf16.mxu0 0
        %1487 = vmatmul.mubr.bf16.gmra.mxu0 %v514
        %v1488 = vpop.f32.mrf.mxu0
        %v1489 = vadd.f32 0.0, %v1488
        %v1490 = vpop.f32.mrf.mxu0
        %v1491 = vadd.f32 0.0, %v1490
        %v1492 = vpop.f32.mrf.mxu0
        %v1493 = vadd.f32 0.0, %v1492
        %v1494 = vpop.f32.mrf.mxu0
        %v1495 = vadd.f32 0.0, %v1494
        %1496 = vmatprep.mubr.bf16.mxu0 0
        %1497 = vmatmul.mubr.bf16.gmra.mxu0 %v515
        %v1498 = vpop.f32.mrf.mxu0
        %v1499 = vadd.f32 0.0, %v1498
        %v1500 = vpop.f32.mrf.mxu0
        %v1501 = vadd.f32 0.0, %v1500
        %v1502 = vpop.f32.mrf.mxu0
        %v1503 = vadd.f32 0.0, %v1502
        %v1504 = vpop.f32.mrf.mxu0
        %v1505 = vadd.f32 0.0, %v1504
        %1506 = vmatprep.mubr.bf16.mxu0 0
        %1507 = vmatmul.mubr.bf16.gmra.mxu0 %v516
        %v1508 = vpop.f32.mrf.mxu0
        %v1509 = vadd.f32 0.0, %v1508
        %v1510 = vpop.f32.mrf.mxu0
        %v1511 = vadd.f32 0.0, %v1510
        %v1512 = vpop.f32.mrf.mxu0
        %v1513 = vadd.f32 0.0, %v1512
        %v1514 = vpop.f32.mrf.mxu0
        %v1515 = vadd.f32 0.0, %v1514
        %1516 = vmatprep.mubr.bf16.mxu0 0
        %1517 = vmatmul.mubr.bf16.gmra.mxu0 %v517
        %v1518 = vpop.f32.mrf.mxu0
        %v1519 = vadd.f32 0.0, %v1518
        %v1520 = vpop.f32.mrf.mxu0
        %v1521 = vadd.f32 0.0, %v1520
        %v1522 = vpop.f32.mrf.mxu0
        %v1523 = vadd.f32 0.0, %v1522
        %v1524 = vpop.f32.mrf.mxu0
        %v1525 = vadd.f32 0.0, %v1524
        %1526 = vmatprep.mubr.bf16.mxu0 0
        %1527 = vmatmul.mubr.bf16.gmra.mxu0 %v518
        %v1528 = vpop.f32.mrf.mxu0
        %v1529 = vadd.f32 0.0, %v1528
        %v1530 = vpop.f32.mrf.mxu0
        %v1531 = vadd.f32 0.0, %v1530
        %v1532 = vpop.f32.mrf.mxu0
        %v1533 = vadd.f32 0.0, %v1532
        %v1534 = vpop.f32.mrf.mxu0
        %v1535 = vadd.f32 0.0, %v1534
        %1536 = vmatprep.mubr.bf16.mxu0 0
        %1537 = vmatmul.mubr.bf16.gmra.mxu0 %v519
        %v1538 = vpop.f32.mrf.mxu0
        %v1539 = vadd.f32 0.0, %v1538
        %v1540 = vpop.f32.mrf.mxu0
        %v1541 = vadd.f32 0.0, %v1540
        %v1542 = vpop.f32.mrf.mxu0
        %v1543 = vadd.f32 0.0, %v1542
        %v1544 = vpop.f32.mrf.mxu0
        %v1545 = vadd.f32 0.0, %v1544
        %1546 = vmatprep.mubr.bf16.mxu0 0
        %1547 = vmatmul.mubr.bf16.gmra.mxu0 %v520
        %v1548 = vpop.f32.mrf.mxu0
        %v1549 = vadd.f32 0.0, %v1548
        %v1550 = vpop.f32.mrf.mxu0
        %v1551 = vadd.f32 0.0, %v1550
        %v1552 = vpop.f32.mrf.mxu0
        %v1553 = vadd.f32 0.0, %v1552
        %v1554 = vpop.f32.mrf.mxu0
        %v1555 = vadd.f32 0.0, %v1554
        %1556 = vmatprep.mubr.bf16.mxu0 0
        %1557 = vmatmul.mubr.bf16.gmra.mxu0 %v521
        %v1558 = vpop.f32.mrf.mxu0
        %v1559 = vadd.f32 0.0, %v1558
        %v1560 = vpop.f32.mrf.mxu0
        %v1561 = vadd.f32 0.0, %v1560
        %v1562 = vpop.f32.mrf.mxu0
        %v1563 = vadd.f32 0.0, %v1562
        %v1564 = vpop.f32.mrf.mxu0
        %v1565 = vadd.f32 0.0, %v1564
        %1566 = vmatprep.mubr.bf16.mxu0 0
        %1567 = vmatmul.mubr.bf16.gmra.mxu0 %v522
        %v1568 = vpop.f32.mrf.mxu0
        %v1569 = vadd.f32 0.0, %v1568
        %v1570 = vpop.f32.mrf.mxu0
        %v1571 = vadd.f32 0.0, %v1570
        %v1572 = vpop.f32.mrf.mxu0
        %v1573 = vadd.f32 0.0, %v1572
        %v1574 = vpop.f32.mrf.mxu0
        %v1575 = vadd.f32 0.0, %v1574
        %1576 = vmatprep.mubr.bf16.mxu0 0
        %1577 = vmatmul.mubr.bf16.gmra.mxu0 %v523
        %v1578 = vpop.f32.mrf.mxu0
        %v1579 = vadd.f32 0.0, %v1578
        %v1580 = vpop.f32.mrf.mxu0
        %v1581 = vadd.f32 0.0, %v1580
        %v1582 = vpop.f32.mrf.mxu0
        %v1583 = vadd.f32 0.0, %v1582
        %v1584 = vpop.f32.mrf.mxu0
        %v1585 = vadd.f32 0.0, %v1584
        %1586 = vmatprep.mubr.bf16.mxu0 0
        %1587 = vmatmul.mubr.bf16.gmra.mxu0 %v524
        %v1588 = vpop.f32.mrf.mxu0
        %v1589 = vadd.f32 0.0, %v1588
        %v1590 = vpop.f32.mrf.mxu0
        %v1591 = vadd.f32 0.0, %v1590
        %v1592 = vpop.f32.mrf.mxu0
        %v1593 = vadd.f32 0.0, %v1592
        %v1594 = vpop.f32.mrf.mxu0
        %v1595 = vadd.f32 0.0, %v1594
        %1596 = vmatprep.mubr.bf16.mxu0 0
        %1597 = vmatmul.mubr.bf16.gmra.mxu0 %v525
        %v1598 = vpop.f32.mrf.mxu0
        %v1599 = vadd.f32 0.0, %v1598
        %v1600 = vpop.f32.mrf.mxu0
        %v1601 = vadd.f32 0.0, %v1600
        %v1602 = vpop.f32.mrf.mxu0
        %v1603 = vadd.f32 0.0, %v1602
        %v1604 = vpop.f32.mrf.mxu0
        %v1605 = vadd.f32 0.0, %v1604
        %1606 = vmatprep.mubr.bf16.mxu0 0
        %1607 = vmatmul.mubr.bf16.gmra.mxu0 %v526
        %v1608 = vpop.f32.mrf.mxu0
        %v1609 = vadd.f32 0.0, %v1608
        %v1610 = vpop.f32.mrf.mxu0
        %v1611 = vadd.f32 0.0, %v1610
        %v1612 = vpop.f32.mrf.mxu0
        %v1613 = vadd.f32 0.0, %v1612
        %v1614 = vpop.f32.mrf.mxu0
        %v1615 = vadd.f32 0.0, %v1614
        %1616 = vmatprep.mubr.bf16.mxu0 0
        %1617 = vmatmul.mubr.bf16.gmra.mxu0 %v527
        %v1618 = vpop.f32.mrf.mxu0
        %v1619 = vadd.f32 0.0, %v1618
        %v1620 = vpop.f32.mrf.mxu0
        %v1621 = vadd.f32 0.0, %v1620
        %v1622 = vpop.f32.mrf.mxu0
        %v1623 = vadd.f32 0.0, %v1622
        %v1624 = vpop.f32.mrf.mxu0
        %v1625 = vadd.f32 0.0, %v1624
        %1626 = vmatprep.mubr.bf16.mxu0 0
        %1627 = vmatmul.mubr.bf16.gmra.mxu0 %v528
        %v1628 = vpop.f32.mrf.mxu0
        %v1629 = vadd.f32 0.0, %v1628
        %v1630 = vpop.f32.mrf.mxu0
        %v1631 = vadd.f32 0.0, %v1630
        %v1632 = vpop.f32.mrf.mxu0
        %v1633 = vadd.f32 0.0, %v1632
        %v1634 = vpop.f32.mrf.mxu0
        %v1635 = vadd.f32 0.0, %v1634
        %1636 = vdwg.mxu0
        %v1638 = vlaneseq
        %v1639 = vshrl.u32 %v1638, 7
        %v1640 = vsub.s32 0, %v1639
        %v1641 = vrot.slane %v352, %v1640
        %v1642 = vlaneseq
        %v1643 = vshrl.u32 %v1642, 7
        %v1644 = vsub.s32 1, %v1643
        %v1645 = vrot.slane %v352, %v1644
        %v1646 = vlaneseq
        %v1647 = vshrl.u32 %v1646, 7
        %v1648 = vsub.s32 2, %v1647
        %v1649 = vrot.slane %v352, %v1648
        %v1650 = vlaneseq
        %v1651 = vshrl.u32 %v1650, 7
        %v1652 = vsub.s32 3, %v1651
        %v1653 = vrot.slane %v352, %v1652
        %v1654 = vlaneseq
        %v1655 = vshrl.u32 %v1654, 7
        %v1656 = vsub.s32 4, %v1655
        %v1657 = vrot.slane %v352, %v1656
        %v1658 = vlaneseq
        %v1659 = vshrl.u32 %v1658, 7
        %v1660 = vsub.s32 5, %v1659
        %v1661 = vrot.slane %v352, %v1660
        %v1662 = vlaneseq
        %v1663 = vshrl.u32 %v1662, 7
        %v1664 = vsub.s32 6, %v1663
        %v1665 = vrot.slane %v352, %v1664
        %v1666 = vlaneseq
        %v1667 = vshrl.u32 %v1666, 7
        %v1668 = vsub.s32 7, %v1667
        %v1669 = vrot.slane %v352, %v1668
        %v1678 = vmul.f32 %v900, %v1641
        %v1679 = vmul.f32 %v902, %v1645
        %v1680 = vmul.f32 %v1093, %v1649
        %v1681 = vmul.f32 %v1095, %v1653
        %v1682 = vmul.f32 %v1286, %v1657
        %v1683 = vmul.f32 %v1288, %v1661
        %v1684 = vmul.f32 %v1479, %v1665
        %v1685 = vmul.f32 %v1481, %v1669
        %v1686 = vmul.f32 %v904, %v1641
        %v1687 = vmul.f32 %v906, %v1645
        %v1688 = vmul.f32 %v1097, %v1649
        %v1689 = vmul.f32 %v1099, %v1653
        %v1690 = vmul.f32 %v1290, %v1657
        %v1691 = vmul.f32 %v1292, %v1661
        %v1692 = vmul.f32 %v1483, %v1665
        %v1693 = vmul.f32 %v1485, %v1669
        %v1694 = vmul.f32 %v910, %v1641
        %v1695 = vmul.f32 %v912, %v1645
        %v1696 = vmul.f32 %v1103, %v1649
        %v1697 = vmul.f32 %v1105, %v1653
        %v1698 = vmul.f32 %v1296, %v1657
        %v1699 = vmul.f32 %v1298, %v1661
        %v1700 = vmul.f32 %v1489, %v1665
        %v1701 = vmul.f32 %v1491, %v1669
        %v1702 = vmul.f32 %v914, %v1641
        %v1703 = vmul.f32 %v916, %v1645
        %v1704 = vmul.f32 %v1107, %v1649
        %v1705 = vmul.f32 %v1109, %v1653
        %v1706 = vmul.f32 %v1300, %v1657
        %v1707 = vmul.f32 %v1302, %v1661
        %v1708 = vmul.f32 %v1493, %v1665
        %v1709 = vmul.f32 %v1495, %v1669
        %v1710 = vmul.f32 %v920, %v1641
        %v1711 = vmul.f32 %v922, %v1645
        %v1712 = vmul.f32 %v1113, %v1649
        %v1713 = vmul.f32 %v1115, %v1653
        %v1714 = vmul.f32 %v1306, %v1657
        %v1715 = vmul.f32 %v1308, %v1661
        %v1716 = vmul.f32 %v1499, %v1665
        %v1717 = vmul.f32 %v1501, %v1669
        %v1718 = vmul.f32 %v924, %v1641
        %v1719 = vmul.f32 %v926, %v1645
        %v1720 = vmul.f32 %v1117, %v1649
        %v1721 = vmul.f32 %v1119, %v1653
        %v1722 = vmul.f32 %v1310, %v1657
        %v1723 = vmul.f32 %v1312, %v1661
        %v1724 = vmul.f32 %v1503, %v1665
        %v1725 = vmul.f32 %v1505, %v1669
        %v1726 = vmul.f32 %v930, %v1641
        %v1727 = vmul.f32 %v932, %v1645
        %v1728 = vmul.f32 %v1123, %v1649
        %v1729 = vmul.f32 %v1125, %v1653
        %v1730 = vmul.f32 %v1316, %v1657
        %v1731 = vmul.f32 %v1318, %v1661
        %v1732 = vmul.f32 %v1509, %v1665
        %v1733 = vmul.f32 %v1511, %v1669
        %v1734 = vmul.f32 %v934, %v1641
        %v1735 = vmul.f32 %v936, %v1645
        %v1736 = vmul.f32 %v1127, %v1649
        %v1737 = vmul.f32 %v1129, %v1653
        %v1738 = vmul.f32 %v1320, %v1657
        %v1739 = vmul.f32 %v1322, %v1661
        %v1740 = vmul.f32 %v1513, %v1665
        %v1741 = vmul.f32 %v1515, %v1669
        %v1742 = vmul.f32 %v940, %v1641
        %v1743 = vmul.f32 %v942, %v1645
        %v1744 = vmul.f32 %v1133, %v1649
        %v1745 = vmul.f32 %v1135, %v1653
        %v1746 = vmul.f32 %v1326, %v1657
        %v1747 = vmul.f32 %v1328, %v1661
        %v1748 = vmul.f32 %v1519, %v1665
        %v1749 = vmul.f32 %v1521, %v1669
        %v1750 = vmul.f32 %v944, %v1641
        %v1751 = vmul.f32 %v946, %v1645
        %v1752 = vmul.f32 %v1137, %v1649
        %v1753 = vmul.f32 %v1139, %v1653
        %v1754 = vmul.f32 %v1330, %v1657
        %v1755 = vmul.f32 %v1332, %v1661
        %v1756 = vmul.f32 %v1523, %v1665
        %v1757 = vmul.f32 %v1525, %v1669
        %v1758 = vmul.f32 %v950, %v1641
        %v1759 = vmul.f32 %v952, %v1645
        %v1760 = vmul.f32 %v1143, %v1649
        %v1761 = vmul.f32 %v1145, %v1653
        %v1762 = vmul.f32 %v1336, %v1657
        %v1763 = vmul.f32 %v1338, %v1661
        %v1764 = vmul.f32 %v1529, %v1665
        %v1765 = vmul.f32 %v1531, %v1669
        %v1766 = vmul.f32 %v954, %v1641
        %v1767 = vmul.f32 %v956, %v1645
        %v1768 = vmul.f32 %v1147, %v1649
        %v1769 = vmul.f32 %v1149, %v1653
        %v1770 = vmul.f32 %v1340, %v1657
        %v1771 = vmul.f32 %v1342, %v1661
        %v1772 = vmul.f32 %v1533, %v1665
        %v1773 = vmul.f32 %v1535, %v1669
        %v1774 = vmul.f32 %v960, %v1641
        %v1775 = vmul.f32 %v962, %v1645
        %v1776 = vmul.f32 %v1153, %v1649
        %v1777 = vmul.f32 %v1155, %v1653
        %v1778 = vmul.f32 %v1346, %v1657
        %v1779 = vmul.f32 %v1348, %v1661
        %v1780 = vmul.f32 %v1539, %v1665
        %v1781 = vmul.f32 %v1541, %v1669
        %v1782 = vmul.f32 %v964, %v1641
        %v1783 = vmul.f32 %v966, %v1645
        %v1784 = vmul.f32 %v1157, %v1649
        %v1785 = vmul.f32 %v1159, %v1653
        %v1786 = vmul.f32 %v1350, %v1657
        %v1787 = vmul.f32 %v1352, %v1661
        %v1788 = vmul.f32 %v1543, %v1665
        %v1789 = vmul.f32 %v1545, %v1669
        %v1790 = vmul.f32 %v970, %v1641
        %v1791 = vmul.f32 %v972, %v1645
        %v1792 = vmul.f32 %v1163, %v1649
        %v1793 = vmul.f32 %v1165, %v1653
        %v1794 = vmul.f32 %v1356, %v1657
        %v1795 = vmul.f32 %v1358, %v1661
        %v1796 = vmul.f32 %v1549, %v1665
        %v1797 = vmul.f32 %v1551, %v1669
        %v1798 = vmul.f32 %v974, %v1641
        %v1799 = vmul.f32 %v976, %v1645
        %v1800 = vmul.f32 %v1167, %v1649
        %v1801 = vmul.f32 %v1169, %v1653
        %v1802 = vmul.f32 %v1360, %v1657
        %v1803 = vmul.f32 %v1362, %v1661
        %v1804 = vmul.f32 %v1553, %v1665
        %v1805 = vmul.f32 %v1555, %v1669
        %v1806 = vmul.f32 %v980, %v1641
        %v1807 = vmul.f32 %v982, %v1645
        %v1808 = vmul.f32 %v1173, %v1649
        %v1809 = vmul.f32 %v1175, %v1653
        %v1810 = vmul.f32 %v1366, %v1657
        %v1811 = vmul.f32 %v1368, %v1661
        %v1812 = vmul.f32 %v1559, %v1665
        %v1813 = vmul.f32 %v1561, %v1669
        %v1814 = vmul.f32 %v984, %v1641
        %v1815 = vmul.f32 %v986, %v1645
        %v1816 = vmul.f32 %v1177, %v1649
        %v1817 = vmul.f32 %v1179, %v1653
        %v1818 = vmul.f32 %v1370, %v1657
        %v1819 = vmul.f32 %v1372, %v1661
        %v1820 = vmul.f32 %v1563, %v1665
        %v1821 = vmul.f32 %v1565, %v1669
        %v1822 = vmul.f32 %v990, %v1641
        %v1823 = vmul.f32 %v992, %v1645
        %v1824 = vmul.f32 %v1183, %v1649
        %v1825 = vmul.f32 %v1185, %v1653
        %v1826 = vmul.f32 %v1376, %v1657
        %v1827 = vmul.f32 %v1378, %v1661
        %v1828 = vmul.f32 %v1569, %v1665
        %v1829 = vmul.f32 %v1571, %v1669
        %v1830 = vmul.f32 %v994, %v1641
        %v1831 = vmul.f32 %v996, %v1645
        %v1832 = vmul.f32 %v1187, %v1649
        %v1833 = vmul.f32 %v1189, %v1653
        %v1834 = vmul.f32 %v1380, %v1657
        %v1835 = vmul.f32 %v1382, %v1661
        %v1836 = vmul.f32 %v1573, %v1665
        %v1837 = vmul.f32 %v1575, %v1669
        %v1838 = vmul.f32 %v1000, %v1641
        %v1839 = vmul.f32 %v1002, %v1645
        %v1840 = vmul.f32 %v1193, %v1649
        %v1841 = vmul.f32 %v1195, %v1653
        %v1842 = vmul.f32 %v1386, %v1657
        %v1843 = vmul.f32 %v1388, %v1661
        %v1844 = vmul.f32 %v1579, %v1665
        %v1845 = vmul.f32 %v1581, %v1669
        %v1846 = vmul.f32 %v1004, %v1641
        %v1847 = vmul.f32 %v1006, %v1645
        %v1848 = vmul.f32 %v1197, %v1649
        %v1849 = vmul.f32 %v1199, %v1653
        %v1850 = vmul.f32 %v1390, %v1657
        %v1851 = vmul.f32 %v1392, %v1661
        %v1852 = vmul.f32 %v1583, %v1665
        %v1853 = vmul.f32 %v1585, %v1669
        %v1854 = vmul.f32 %v1010, %v1641
        %v1855 = vmul.f32 %v1012, %v1645
        %v1856 = vmul.f32 %v1203, %v1649
        %v1857 = vmul.f32 %v1205, %v1653
        %v1858 = vmul.f32 %v1396, %v1657
        %v1859 = vmul.f32 %v1398, %v1661
        %v1860 = vmul.f32 %v1589, %v1665
        %v1861 = vmul.f32 %v1591, %v1669
        %v1862 = vmul.f32 %v1014, %v1641
        %v1863 = vmul.f32 %v1016, %v1645
        %v1864 = vmul.f32 %v1207, %v1649
        %v1865 = vmul.f32 %v1209, %v1653
        %v1866 = vmul.f32 %v1400, %v1657
        %v1867 = vmul.f32 %v1402, %v1661
        %v1868 = vmul.f32 %v1593, %v1665
        %v1869 = vmul.f32 %v1595, %v1669
        %v1870 = vmul.f32 %v1020, %v1641
        %v1871 = vmul.f32 %v1022, %v1645
        %v1872 = vmul.f32 %v1213, %v1649
        %v1873 = vmul.f32 %v1215, %v1653
        %v1874 = vmul.f32 %v1406, %v1657
        %v1875 = vmul.f32 %v1408, %v1661
        %v1876 = vmul.f32 %v1599, %v1665
        %v1877 = vmul.f32 %v1601, %v1669
        %v1878 = vmul.f32 %v1024, %v1641
        %v1879 = vmul.f32 %v1026, %v1645
        %v1880 = vmul.f32 %v1217, %v1649
        %v1881 = vmul.f32 %v1219, %v1653
        %v1882 = vmul.f32 %v1410, %v1657
        %v1883 = vmul.f32 %v1412, %v1661
        %v1884 = vmul.f32 %v1603, %v1665
        %v1885 = vmul.f32 %v1605, %v1669
        %v1886 = vmul.f32 %v1030, %v1641
        %v1887 = vmul.f32 %v1032, %v1645
        %v1888 = vmul.f32 %v1223, %v1649
        %v1889 = vmul.f32 %v1225, %v1653
        %v1890 = vmul.f32 %v1416, %v1657
        %v1891 = vmul.f32 %v1418, %v1661
        %v1892 = vmul.f32 %v1609, %v1665
        %v1893 = vmul.f32 %v1611, %v1669
        %v1894 = vmul.f32 %v1034, %v1641
        %v1895 = vmul.f32 %v1036, %v1645
        %v1896 = vmul.f32 %v1227, %v1649
        %v1897 = vmul.f32 %v1229, %v1653
        %v1898 = vmul.f32 %v1420, %v1657
        %v1899 = vmul.f32 %v1422, %v1661
        %v1900 = vmul.f32 %v1613, %v1665
        %v1901 = vmul.f32 %v1615, %v1669
        %v1902 = vmul.f32 %v1040, %v1641
        %v1903 = vmul.f32 %v1042, %v1645
        %v1904 = vmul.f32 %v1233, %v1649
        %v1905 = vmul.f32 %v1235, %v1653
        %v1906 = vmul.f32 %v1426, %v1657
        %v1907 = vmul.f32 %v1428, %v1661
        %v1908 = vmul.f32 %v1619, %v1665
        %v1909 = vmul.f32 %v1621, %v1669
        %v1910 = vmul.f32 %v1044, %v1641
        %v1911 = vmul.f32 %v1046, %v1645
        %v1912 = vmul.f32 %v1237, %v1649
        %v1913 = vmul.f32 %v1239, %v1653
        %v1914 = vmul.f32 %v1430, %v1657
        %v1915 = vmul.f32 %v1432, %v1661
        %v1916 = vmul.f32 %v1623, %v1665
        %v1917 = vmul.f32 %v1625, %v1669
        %v1918 = vmul.f32 %v1050, %v1641
        %v1919 = vmul.f32 %v1052, %v1645
        %v1920 = vmul.f32 %v1243, %v1649
        %v1921 = vmul.f32 %v1245, %v1653
        %v1922 = vmul.f32 %v1436, %v1657
        %v1923 = vmul.f32 %v1438, %v1661
        %v1924 = vmul.f32 %v1629, %v1665
        %v1925 = vmul.f32 %v1631, %v1669
        %v1926 = vmul.f32 %v1054, %v1641
        %v1927 = vmul.f32 %v1056, %v1645
        %v1928 = vmul.f32 %v1247, %v1649
        %v1929 = vmul.f32 %v1249, %v1653
        %v1930 = vmul.f32 %v1440, %v1657
        %v1931 = vmul.f32 %v1442, %v1661
        %v1932 = vmul.f32 %v1633, %v1665
        %v1933 = vmul.f32 %v1635, %v1669
        %v1934 = vmax.f32 %v1678, %v1679
        %v1935 = vmax.f32 %v1934, %v1680
        %v1936 = vmax.f32 %v1935, %v1681
        %v1937 = vmax.f32 %v1936, %v1682
        %v1938 = vmax.f32 %v1937, %v1683
        %v1939 = vmax.f32 %v1938, %v1684
        %v1940 = vmax.f32 %v1939, %v1685
        %1941 = vmax.xlane.f32.xlu0 %v1940
        %v1942 = vpop.xlane.xlu0 %1941
        %v1943 = vmax.f32 %v1686, %v1687
        %v1944 = vmax.f32 %v1943, %v1688
        %v1945 = vmax.f32 %v1944, %v1689
        %v1946 = vmax.f32 %v1945, %v1690
        %v1947 = vmax.f32 %v1946, %v1691
        %v1948 = vmax.f32 %v1947, %v1692
        %v1949 = vmax.f32 %v1948, %v1693
        %1950 = vmax.xlane.f32.xlu0 %v1949
        %v1951 = vpop.xlane.xlu0 %1950
        %v1952 = vmax.f32 %v1694, %v1695
        %v1953 = vmax.f32 %v1952, %v1696
        %v1954 = vmax.f32 %v1953, %v1697
        %v1955 = vmax.f32 %v1954, %v1698
        %v1956 = vmax.f32 %v1955, %v1699
        %v1957 = vmax.f32 %v1956, %v1700
        %v1958 = vmax.f32 %v1957, %v1701
        %1959 = vmax.xlane.f32.xlu0 %v1958
        %v1960 = vpop.xlane.xlu0 %1959
        %v1961 = vmax.f32 %v1702, %v1703
        %v1962 = vmax.f32 %v1961, %v1704
        %v1963 = vmax.f32 %v1962, %v1705
        %v1964 = vmax.f32 %v1963, %v1706
        %v1965 = vmax.f32 %v1964, %v1707
        %v1966 = vmax.f32 %v1965, %v1708
        %v1967 = vmax.f32 %v1966, %v1709
        %1968 = vmax.xlane.f32.xlu0 %v1967
        %v1969 = vpop.xlane.xlu0 %1968
        %v1970 = vmax.f32 %v1710, %v1711
        %v1971 = vmax.f32 %v1970, %v1712
        %v1972 = vmax.f32 %v1971, %v1713
        %v1973 = vmax.f32 %v1972, %v1714
        %v1974 = vmax.f32 %v1973, %v1715
        %v1975 = vmax.f32 %v1974, %v1716
        %v1976 = vmax.f32 %v1975, %v1717
        %1977 = vmax.xlane.f32.xlu0 %v1976
        %v1978 = vpop.xlane.xlu0 %1977
        %v1979 = vmax.f32 %v1718, %v1719
        %v1980 = vmax.f32 %v1979, %v1720
        %v1981 = vmax.f32 %v1980, %v1721
        %v1982 = vmax.f32 %v1981, %v1722
        %v1983 = vmax.f32 %v1982, %v1723
        %v1984 = vmax.f32 %v1983, %v1724
        %v1985 = vmax.f32 %v1984, %v1725
        %1986 = vmax.xlane.f32.xlu0 %v1985
        %v1987 = vpop.xlane.xlu0 %1986
        %v1988 = vmax.f32 %v1726, %v1727
        %v1989 = vmax.f32 %v1988, %v1728
        %v1990 = vmax.f32 %v1989, %v1729
        %v1991 = vmax.f32 %v1990, %v1730
        %v1992 = vmax.f32 %v1991, %v1731
        %v1993 = vmax.f32 %v1992, %v1732
        %v1994 = vmax.f32 %v1993, %v1733
        %1995 = vmax.xlane.f32.xlu0 %v1994
        %v1996 = vpop.xlane.xlu0 %1995
        %v1997 = vmax.f32 %v1734, %v1735
        %v1998 = vmax.f32 %v1997, %v1736
        %v1999 = vmax.f32 %v1998, %v1737
        %v2000 = vmax.f32 %v1999, %v1738
        %v2001 = vmax.f32 %v2000, %v1739
        %v2002 = vmax.f32 %v2001, %v1740
        %v2003 = vmax.f32 %v2002, %v1741
        %2004 = vmax.xlane.f32.xlu0 %v2003
        %v2005 = vpop.xlane.xlu0 %2004
        %v2006 = vmax.f32 %v1742, %v1743
        %v2007 = vmax.f32 %v2006, %v1744
        %v2008 = vmax.f32 %v2007, %v1745
        %v2009 = vmax.f32 %v2008, %v1746
        %v2010 = vmax.f32 %v2009, %v1747
        %v2011 = vmax.f32 %v2010, %v1748
        %v2012 = vmax.f32 %v2011, %v1749
        %2013 = vmax.xlane.f32.xlu0 %v2012
        %v2014 = vpop.xlane.xlu0 %2013
        %v2015 = vmax.f32 %v1750, %v1751
        %v2016 = vmax.f32 %v2015, %v1752
        %v2017 = vmax.f32 %v2016, %v1753
        %v2018 = vmax.f32 %v2017, %v1754
        %v2019 = vmax.f32 %v2018, %v1755
        %v2020 = vmax.f32 %v2019, %v1756
        %v2021 = vmax.f32 %v2020, %v1757
        %2022 = vmax.xlane.f32.xlu0 %v2021
        %v2023 = vpop.xlane.xlu0 %2022
        %v2024 = vmax.f32 %v1758, %v1759
        %v2025 = vmax.f32 %v2024, %v1760
        %v2026 = vmax.f32 %v2025, %v1761
        %v2027 = vmax.f32 %v2026, %v1762
        %v2028 = vmax.f32 %v2027, %v1763
        %v2029 = vmax.f32 %v2028, %v1764
        %v2030 = vmax.f32 %v2029, %v1765
        %2031 = vmax.xlane.f32.xlu0 %v2030
        %v2032 = vpop.xlane.xlu0 %2031
        %v2033 = vmax.f32 %v1766, %v1767
        %v2034 = vmax.f32 %v2033, %v1768
        %v2035 = vmax.f32 %v2034, %v1769
        %v2036 = vmax.f32 %v2035, %v1770
        %v2037 = vmax.f32 %v2036, %v1771
        %v2038 = vmax.f32 %v2037, %v1772
        %v2039 = vmax.f32 %v2038, %v1773
        %2040 = vmax.xlane.f32.xlu0 %v2039
        %v2041 = vpop.xlane.xlu0 %2040
        %v2042 = vmax.f32 %v1774, %v1775
        %v2043 = vmax.f32 %v2042, %v1776
        %v2044 = vmax.f32 %v2043, %v1777
        %v2045 = vmax.f32 %v2044, %v1778
        %v2046 = vmax.f32 %v2045, %v1779
        %v2047 = vmax.f32 %v2046, %v1780
        %v2048 = vmax.f32 %v2047, %v1781
        %2049 = vmax.xlane.f32.xlu0 %v2048
        %v2050 = vpop.xlane.xlu0 %2049
        %v2051 = vmax.f32 %v1782, %v1783
        %v2052 = vmax.f32 %v2051, %v1784
        %v2053 = vmax.f32 %v2052, %v1785
        %v2054 = vmax.f32 %v2053, %v1786
        %v2055 = vmax.f32 %v2054, %v1787
        %v2056 = vmax.f32 %v2055, %v1788
        %v2057 = vmax.f32 %v2056, %v1789
        %2058 = vmax.xlane.f32.xlu0 %v2057
        %v2059 = vpop.xlane.xlu0 %2058
        %v2060 = vmax.f32 %v1790, %v1791
        %v2061 = vmax.f32 %v2060, %v1792
        %v2062 = vmax.f32 %v2061, %v1793
        %v2063 = vmax.f32 %v2062, %v1794
        %v2064 = vmax.f32 %v2063, %v1795
        %v2065 = vmax.f32 %v2064, %v1796
        %v2066 = vmax.f32 %v2065, %v1797
        %2067 = vmax.xlane.f32.xlu0 %v2066
        %v2068 = vpop.xlane.xlu0 %2067
        %v2069 = vmax.f32 %v1798, %v1799
        %v2070 = vmax.f32 %v2069, %v1800
        %v2071 = vmax.f32 %v2070, %v1801
        %v2072 = vmax.f32 %v2071, %v1802
        %v2073 = vmax.f32 %v2072, %v1803
        %v2074 = vmax.f32 %v2073, %v1804
        %v2075 = vmax.f32 %v2074, %v1805
        %2076 = vmax.xlane.f32.xlu0 %v2075
        %v2077 = vpop.xlane.xlu0 %2076
        %v2078 = vmax.f32 %v1806, %v1807
        %v2079 = vmax.f32 %v2078, %v1808
        %v2080 = vmax.f32 %v2079, %v1809
        %v2081 = vmax.f32 %v2080, %v1810
        %v2082 = vmax.f32 %v2081, %v1811
        %v2083 = vmax.f32 %v2082, %v1812
        %v2084 = vmax.f32 %v2083, %v1813
        %2085 = vmax.xlane.f32.xlu0 %v2084
        %v2086 = vpop.xlane.xlu0 %2085
        %v2087 = vmax.f32 %v1814, %v1815
        %v2088 = vmax.f32 %v2087, %v1816
        %v2089 = vmax.f32 %v2088, %v1817
        %v2090 = vmax.f32 %v2089, %v1818
        %v2091 = vmax.f32 %v2090, %v1819
        %v2092 = vmax.f32 %v2091, %v1820
        %v2093 = vmax.f32 %v2092, %v1821
        %2094 = vmax.xlane.f32.xlu0 %v2093
        %v2095 = vpop.xlane.xlu0 %2094
        %v2096 = vmax.f32 %v1822, %v1823
        %v2097 = vmax.f32 %v2096, %v1824
        %v2098 = vmax.f32 %v2097, %v1825
        %v2099 = vmax.f32 %v2098, %v1826
        %v2100 = vmax.f32 %v2099, %v1827
        %v2101 = vmax.f32 %v2100, %v1828
        %v2102 = vmax.f32 %v2101, %v1829
        %2103 = vmax.xlane.f32.xlu0 %v2102
        %v2104 = vpop.xlane.xlu0 %2103
        %v2105 = vmax.f32 %v1830, %v1831
        %v2106 = vmax.f32 %v2105, %v1832
        %v2107 = vmax.f32 %v2106, %v1833
        %v2108 = vmax.f32 %v2107, %v1834
        %v2109 = vmax.f32 %v2108, %v1835
        %v2110 = vmax.f32 %v2109, %v1836
        %v2111 = vmax.f32 %v2110, %v1837
        %2112 = vmax.xlane.f32.xlu0 %v2111
        %v2113 = vpop.xlane.xlu0 %2112
        %v2114 = vmax.f32 %v1838, %v1839
        %v2115 = vmax.f32 %v2114, %v1840
        %v2116 = vmax.f32 %v2115, %v1841
        %v2117 = vmax.f32 %v2116, %v1842
        %v2118 = vmax.f32 %v2117, %v1843
        %v2119 = vmax.f32 %v2118, %v1844
        %v2120 = vmax.f32 %v2119, %v1845
        %2121 = vmax.xlane.f32.xlu0 %v2120
        %v2122 = vpop.xlane.xlu0 %2121
        %v2123 = vmax.f32 %v1846, %v1847
        %v2124 = vmax.f32 %v2123, %v1848
        %v2125 = vmax.f32 %v2124, %v1849
        %v2126 = vmax.f32 %v2125, %v1850
        %v2127 = vmax.f32 %v2126, %v1851
        %v2128 = vmax.f32 %v2127, %v1852
        %v2129 = vmax.f32 %v2128, %v1853
        %2130 = vmax.xlane.f32.xlu0 %v2129
        %v2131 = vpop.xlane.xlu0 %2130
        %v2132 = vmax.f32 %v1854, %v1855
        %v2133 = vmax.f32 %v2132, %v1856
        %v2134 = vmax.f32 %v2133, %v1857
        %v2135 = vmax.f32 %v2134, %v1858
        %v2136 = vmax.f32 %v2135, %v1859
        %v2137 = vmax.f32 %v2136, %v1860
        %v2138 = vmax.f32 %v2137, %v1861
        %2139 = vmax.xlane.f32.xlu0 %v2138
        %v2140 = vpop.xlane.xlu0 %2139
        %v2141 = vmax.f32 %v1862, %v1863
        %v2142 = vmax.f32 %v2141, %v1864
        %v2143 = vmax.f32 %v2142, %v1865
        %v2144 = vmax.f32 %v2143, %v1866
        %v2145 = vmax.f32 %v2144, %v1867
        %v2146 = vmax.f32 %v2145, %v1868
        %v2147 = vmax.f32 %v2146, %v1869
        %2148 = vmax.xlane.f32.xlu0 %v2147
        %v2149 = vpop.xlane.xlu0 %2148
        %v2150 = vmax.f32 %v1870, %v1871
        %v2151 = vmax.f32 %v2150, %v1872
        %v2152 = vmax.f32 %v2151, %v1873
        %v2153 = vmax.f32 %v2152, %v1874
        %v2154 = vmax.f32 %v2153, %v1875
        %v2155 = vmax.f32 %v2154, %v1876
        %v2156 = vmax.f32 %v2155, %v1877
        %2157 = vmax.xlane.f32.xlu0 %v2156
        %v2158 = vpop.xlane.xlu0 %2157
        %v2159 = vmax.f32 %v1878, %v1879
        %v2160 = vmax.f32 %v2159, %v1880
        %v2161 = vmax.f32 %v2160, %v1881
        %v2162 = vmax.f32 %v2161, %v1882
        %v2163 = vmax.f32 %v2162, %v1883
        %v2164 = vmax.f32 %v2163, %v1884
        %v2165 = vmax.f32 %v2164, %v1885
        %2166 = vmax.xlane.f32.xlu0 %v2165
        %v2167 = vpop.xlane.xlu0 %2166
        %v2168 = vmax.f32 %v1886, %v1887
        %v2169 = vmax.f32 %v2168, %v1888
        %v2170 = vmax.f32 %v2169, %v1889
        %v2171 = vmax.f32 %v2170, %v1890
        %v2172 = vmax.f32 %v2171, %v1891
        %v2173 = vmax.f32 %v2172, %v1892
        %v2174 = vmax.f32 %v2173, %v1893
        %2175 = vmax.xlane.f32.xlu0 %v2174
        %v2176 = vpop.xlane.xlu0 %2175
        %v2177 = vmax.f32 %v1894, %v1895
        %v2178 = vmax.f32 %v2177, %v1896
        %v2179 = vmax.f32 %v2178, %v1897
        %v2180 = vmax.f32 %v2179, %v1898
        %v2181 = vmax.f32 %v2180, %v1899
        %v2182 = vmax.f32 %v2181, %v1900
        %v2183 = vmax.f32 %v2182, %v1901
        %2184 = vmax.xlane.f32.xlu0 %v2183
        %v2185 = vpop.xlane.xlu0 %2184
        %v2186 = vmax.f32 %v1902, %v1903
        %v2187 = vmax.f32 %v2186, %v1904
        %v2188 = vmax.f32 %v2187, %v1905
        %v2189 = vmax.f32 %v2188, %v1906
        %v2190 = vmax.f32 %v2189, %v1907
        %v2191 = vmax.f32 %v2190, %v1908
        %v2192 = vmax.f32 %v2191, %v1909
        %2193 = vmax.xlane.f32.xlu0 %v2192
        %v2194 = vpop.xlane.xlu0 %2193
        %v2195 = vmax.f32 %v1910, %v1911
        %v2196 = vmax.f32 %v2195, %v1912
        %v2197 = vmax.f32 %v2196, %v1913
        %v2198 = vmax.f32 %v2197, %v1914
        %v2199 = vmax.f32 %v2198, %v1915
        %v2200 = vmax.f32 %v2199, %v1916
        %v2201 = vmax.f32 %v2200, %v1917
        %2202 = vmax.xlane.f32.xlu0 %v2201
        %v2203 = vpop.xlane.xlu0 %2202
        %v2204 = vmax.f32 %v1918, %v1919
        %v2205 = vmax.f32 %v2204, %v1920
        %v2206 = vmax.f32 %v2205, %v1921
        %v2207 = vmax.f32 %v2206, %v1922
        %v2208 = vmax.f32 %v2207, %v1923
        %v2209 = vmax.f32 %v2208, %v1924
        %v2210 = vmax.f32 %v2209, %v1925
        %2211 = vmax.xlane.f32.xlu0 %v2210
        %v2212 = vpop.xlane.xlu0 %2211
        %v2213 = vmax.f32 %v1926, %v1927
        %v2214 = vmax.f32 %v2213, %v1928
        %v2215 = vmax.f32 %v2214, %v1929
        %v2216 = vmax.f32 %v2215, %v1930
        %v2217 = vmax.f32 %v2216, %v1931
        %v2218 = vmax.f32 %v2217, %v1932
        %v2219 = vmax.f32 %v2218, %v1933
        %2220 = vmax.xlane.f32.xlu0 %v2219
        %v2221 = vpop.xlane.xlu0 %2220
        %v2222 = vsub.f32 %v1678, %v1942
        %v2223 = vsub.f32 %v1679, %v1942
        %v2224 = vsub.f32 %v1680, %v1942
        %v2225 = vsub.f32 %v1681, %v1942
        %v2226 = vsub.f32 %v1682, %v1942
        %v2227 = vsub.f32 %v1683, %v1942
        %v2228 = vsub.f32 %v1684, %v1942
        %v2229 = vsub.f32 %v1685, %v1942
        %v2230 = vsub.f32 %v1686, %v1951
        %v2231 = vsub.f32 %v1687, %v1951
        %v2232 = vsub.f32 %v1688, %v1951
        %v2233 = vsub.f32 %v1689, %v1951
        %v2234 = vsub.f32 %v1690, %v1951
        %v2235 = vsub.f32 %v1691, %v1951
        %v2236 = vsub.f32 %v1692, %v1951
        %v2237 = vsub.f32 %v1693, %v1951
        %v2238 = vsub.f32 %v1694, %v1960
        %v2239 = vsub.f32 %v1695, %v1960
        %v2240 = vsub.f32 %v1696, %v1960
        %v2241 = vsub.f32 %v1697, %v1960
        %v2242 = vsub.f32 %v1698, %v1960
        %v2243 = vsub.f32 %v1699, %v1960
        %v2244 = vsub.f32 %v1700, %v1960
        %v2245 = vsub.f32 %v1701, %v1960
        %v2246 = vsub.f32 %v1702, %v1969
        %v2247 = vsub.f32 %v1703, %v1969
        %v2248 = vsub.f32 %v1704, %v1969
        %v2249 = vsub.f32 %v1705, %v1969
        %v2250 = vsub.f32 %v1706, %v1969
        %v2251 = vsub.f32 %v1707, %v1969
        %v2252 = vsub.f32 %v1708, %v1969
        %v2253 = vsub.f32 %v1709, %v1969
        %v2254 = vsub.f32 %v1710, %v1978
        %v2255 = vsub.f32 %v1711, %v1978
        %v2256 = vsub.f32 %v1712, %v1978
        %v2257 = vsub.f32 %v1713, %v1978
        %v2258 = vsub.f32 %v1714, %v1978
        %v2259 = vsub.f32 %v1715, %v1978
        %v2260 = vsub.f32 %v1716, %v1978
        %v2261 = vsub.f32 %v1717, %v1978
        %v2262 = vsub.f32 %v1718, %v1987
        %v2263 = vsub.f32 %v1719, %v1987
        %v2264 = vsub.f32 %v1720, %v1987
        %v2265 = vsub.f32 %v1721, %v1987
        %v2266 = vsub.f32 %v1722, %v1987
        %v2267 = vsub.f32 %v1723, %v1987
        %v2268 = vsub.f32 %v1724, %v1987
        %v2269 = vsub.f32 %v1725, %v1987
        %v2270 = vsub.f32 %v1726, %v1996
        %v2271 = vsub.f32 %v1727, %v1996
        %v2272 = vsub.f32 %v1728, %v1996
        %v2273 = vsub.f32 %v1729, %v1996
        %v2274 = vsub.f32 %v1730, %v1996
        %v2275 = vsub.f32 %v1731, %v1996
        %v2276 = vsub.f32 %v1732, %v1996
        %v2277 = vsub.f32 %v1733, %v1996
        %v2278 = vsub.f32 %v1734, %v2005
        %v2279 = vsub.f32 %v1735, %v2005
        %v2280 = vsub.f32 %v1736, %v2005
        %v2281 = vsub.f32 %v1737, %v2005
        %v2282 = vsub.f32 %v1738, %v2005
        %v2283 = vsub.f32 %v1739, %v2005
        %v2284 = vsub.f32 %v1740, %v2005
        %v2285 = vsub.f32 %v1741, %v2005
        %v2286 = vsub.f32 %v1742, %v2014
        %v2287 = vsub.f32 %v1743, %v2014
        %v2288 = vsub.f32 %v1744, %v2014
        %v2289 = vsub.f32 %v1745, %v2014
        %v2290 = vsub.f32 %v1746, %v2014
        %v2291 = vsub.f32 %v1747, %v2014
        %v2292 = vsub.f32 %v1748, %v2014
        %v2293 = vsub.f32 %v1749, %v2014
        %v2294 = vsub.f32 %v1750, %v2023
        %v2295 = vsub.f32 %v1751, %v2023
        %v2296 = vsub.f32 %v1752, %v2023
        %v2297 = vsub.f32 %v1753, %v2023
        %v2298 = vsub.f32 %v1754, %v2023
        %v2299 = vsub.f32 %v1755, %v2023
        %v2300 = vsub.f32 %v1756, %v2023
        %v2301 = vsub.f32 %v1757, %v2023
        %v2302 = vsub.f32 %v1758, %v2032
        %v2303 = vsub.f32 %v1759, %v2032
        %v2304 = vsub.f32 %v1760, %v2032
        %v2305 = vsub.f32 %v1761, %v2032
        %v2306 = vsub.f32 %v1762, %v2032
        %v2307 = vsub.f32 %v1763, %v2032
        %v2308 = vsub.f32 %v1764, %v2032
        %v2309 = vsub.f32 %v1765, %v2032
        %v2310 = vsub.f32 %v1766, %v2041
        %v2311 = vsub.f32 %v1767, %v2041
        %v2312 = vsub.f32 %v1768, %v2041
        %v2313 = vsub.f32 %v1769, %v2041
        %v2314 = vsub.f32 %v1770, %v2041
        %v2315 = vsub.f32 %v1771, %v2041
        %v2316 = vsub.f32 %v1772, %v2041
        %v2317 = vsub.f32 %v1773, %v2041
        %v2318 = vsub.f32 %v1774, %v2050
        %v2319 = vsub.f32 %v1775, %v2050
        %v2320 = vsub.f32 %v1776, %v2050
        %v2321 = vsub.f32 %v1777, %v2050
        %v2322 = vsub.f32 %v1778, %v2050
        %v2323 = vsub.f32 %v1779, %v2050
        %v2324 = vsub.f32 %v1780, %v2050
        %v2325 = vsub.f32 %v1781, %v2050
        %v2326 = vsub.f32 %v1782, %v2059
        %v2327 = vsub.f32 %v1783, %v2059
        %v2328 = vsub.f32 %v1784, %v2059
        %v2329 = vsub.f32 %v1785, %v2059
        %v2330 = vsub.f32 %v1786, %v2059
        %v2331 = vsub.f32 %v1787, %v2059
        %v2332 = vsub.f32 %v1788, %v2059
        %v2333 = vsub.f32 %v1789, %v2059
        %v2334 = vsub.f32 %v1790, %v2068
        %v2335 = vsub.f32 %v1791, %v2068
        %v2336 = vsub.f32 %v1792, %v2068
        %v2337 = vsub.f32 %v1793, %v2068
        %v2338 = vsub.f32 %v1794, %v2068
        %v2339 = vsub.f32 %v1795, %v2068
        %v2340 = vsub.f32 %v1796, %v2068
        %v2341 = vsub.f32 %v1797, %v2068
        %v2342 = vsub.f32 %v1798, %v2077
        %v2343 = vsub.f32 %v1799, %v2077
        %v2344 = vsub.f32 %v1800, %v2077
        %v2345 = vsub.f32 %v1801, %v2077
        %v2346 = vsub.f32 %v1802, %v2077
        %v2347 = vsub.f32 %v1803, %v2077
        %v2348 = vsub.f32 %v1804, %v2077
        %v2349 = vsub.f32 %v1805, %v2077
        %v2350 = vsub.f32 %v1806, %v2086
        %v2351 = vsub.f32 %v1807, %v2086
        %v2352 = vsub.f32 %v1808, %v2086
        %v2353 = vsub.f32 %v1809, %v2086
        %v2354 = vsub.f32 %v1810, %v2086
        %v2355 = vsub.f32 %v1811, %v2086
        %v2356 = vsub.f32 %v1812, %v2086
        %v2357 = vsub.f32 %v1813, %v2086
        %v2358 = vsub.f32 %v1814, %v2095
        %v2359 = vsub.f32 %v1815, %v2095
        %v2360 = vsub.f32 %v1816, %v2095
        %v2361 = vsub.f32 %v1817, %v2095
        %v2362 = vsub.f32 %v1818, %v2095
        %v2363 = vsub.f32 %v1819, %v2095
        %v2364 = vsub.f32 %v1820, %v2095
        %v2365 = vsub.f32 %v1821, %v2095
        %v2366 = vsub.f32 %v1822, %v2104
        %v2367 = vsub.f32 %v1823, %v2104
        %v2368 = vsub.f32 %v1824, %v2104
        %v2369 = vsub.f32 %v1825, %v2104
        %v2370 = vsub.f32 %v1826, %v2104
        %v2371 = vsub.f32 %v1827, %v2104
        %v2372 = vsub.f32 %v1828, %v2104
        %v2373 = vsub.f32 %v1829, %v2104
        %v2374 = vsub.f32 %v1830, %v2113
        %v2375 = vsub.f32 %v1831, %v2113
        %v2376 = vsub.f32 %v1832, %v2113
        %v2377 = vsub.f32 %v1833, %v2113
        %v2378 = vsub.f32 %v1834, %v2113
        %v2379 = vsub.f32 %v1835, %v2113
        %v2380 = vsub.f32 %v1836, %v2113
        %v2381 = vsub.f32 %v1837, %v2113
        %v2382 = vsub.f32 %v1838, %v2122
        %v2383 = vsub.f32 %v1839, %v2122
        %v2384 = vsub.f32 %v1840, %v2122
        %v2385 = vsub.f32 %v1841, %v2122
        %v2386 = vsub.f32 %v1842, %v2122
        %v2387 = vsub.f32 %v1843, %v2122
        %v2388 = vsub.f32 %v1844, %v2122
        %v2389 = vsub.f32 %v1845, %v2122
        %v2390 = vsub.f32 %v1846, %v2131
        %v2391 = vsub.f32 %v1847, %v2131
        %v2392 = vsub.f32 %v1848, %v2131
        %v2393 = vsub.f32 %v1849, %v2131
        %v2394 = vsub.f32 %v1850, %v2131
        %v2395 = vsub.f32 %v1851, %v2131
        %v2396 = vsub.f32 %v1852, %v2131
        %v2397 = vsub.f32 %v1853, %v2131
        %v2398 = vsub.f32 %v1854, %v2140
        %v2399 = vsub.f32 %v1855, %v2140
        %v2400 = vsub.f32 %v1856, %v2140
        %v2401 = vsub.f32 %v1857, %v2140
        %v2402 = vsub.f32 %v1858, %v2140
        %v2403 = vsub.f32 %v1859, %v2140
        %v2404 = vsub.f32 %v1860, %v2140
        %v2405 = vsub.f32 %v1861, %v2140
        %v2406 = vsub.f32 %v1862, %v2149
        %v2407 = vsub.f32 %v1863, %v2149
        %v2408 = vsub.f32 %v1864, %v2149
        %v2409 = vsub.f32 %v1865, %v2149
        %v2410 = vsub.f32 %v1866, %v2149
        %v2411 = vsub.f32 %v1867, %v2149
        %v2412 = vsub.f32 %v1868, %v2149
        %v2413 = vsub.f32 %v1869, %v2149
        %v2414 = vsub.f32 %v1870, %v2158
        %v2415 = vsub.f32 %v1871, %v2158
        %v2416 = vsub.f32 %v1872, %v2158
        %v2417 = vsub.f32 %v1873, %v2158
        %v2418 = vsub.f32 %v1874, %v2158
        %v2419 = vsub.f32 %v1875, %v2158
        %v2420 = vsub.f32 %v1876, %v2158
        %v2421 = vsub.f32 %v1877, %v2158
        %v2422 = vsub.f32 %v1878, %v2167
        %v2423 = vsub.f32 %v1879, %v2167
        %v2424 = vsub.f32 %v1880, %v2167
        %v2425 = vsub.f32 %v1881, %v2167
        %v2426 = vsub.f32 %v1882, %v2167
        %v2427 = vsub.f32 %v1883, %v2167
        %v2428 = vsub.f32 %v1884, %v2167
        %v2429 = vsub.f32 %v1885, %v2167
        %v2430 = vsub.f32 %v1886, %v2176
        %v2431 = vsub.f32 %v1887, %v2176
        %v2432 = vsub.f32 %v1888, %v2176
        %v2433 = vsub.f32 %v1889, %v2176
        %v2434 = vsub.f32 %v1890, %v2176
        %v2435 = vsub.f32 %v1891, %v2176
        %v2436 = vsub.f32 %v1892, %v2176
        %v2437 = vsub.f32 %v1893, %v2176
        %v2438 = vsub.f32 %v1894, %v2185
        %v2439 = vsub.f32 %v1895, %v2185
        %v2440 = vsub.f32 %v1896, %v2185
        %v2441 = vsub.f32 %v1897, %v2185
        %v2442 = vsub.f32 %v1898, %v2185
        %v2443 = vsub.f32 %v1899, %v2185
        %v2444 = vsub.f32 %v1900, %v2185
        %v2445 = vsub.f32 %v1901, %v2185
        %v2446 = vsub.f32 %v1902, %v2194
        %v2447 = vsub.f32 %v1903, %v2194
        %v2448 = vsub.f32 %v1904, %v2194
        %v2449 = vsub.f32 %v1905, %v2194
        %v2450 = vsub.f32 %v1906, %v2194
        %v2451 = vsub.f32 %v1907, %v2194
        %v2452 = vsub.f32 %v1908, %v2194
        %v2453 = vsub.f32 %v1909, %v2194
        %v2454 = vsub.f32 %v1910, %v2203
        %v2455 = vsub.f32 %v1911, %v2203
        %v2456 = vsub.f32 %v1912, %v2203
        %v2457 = vsub.f32 %v1913, %v2203
        %v2458 = vsub.f32 %v1914, %v2203
        %v2459 = vsub.f32 %v1915, %v2203
        %v2460 = vsub.f32 %v1916, %v2203
        %v2461 = vsub.f32 %v1917, %v2203
        %v2462 = vsub.f32 %v1918, %v2212
        %v2463 = vsub.f32 %v1919, %v2212
        %v2464 = vsub.f32 %v1920, %v2212
        %v2465 = vsub.f32 %v1921, %v2212
        %v2466 = vsub.f32 %v1922, %v2212
        %v2467 = vsub.f32 %v1923, %v2212
        %v2468 = vsub.f32 %v1924, %v2212
        %v2469 = vsub.f32 %v1925, %v2212
        %v2470 = vsub.f32 %v1926, %v2221
        %v2471 = vsub.f32 %v1927, %v2221
        %v2472 = vsub.f32 %v1928, %v2221
        %v2473 = vsub.f32 %v1929, %v2221
        %v2474 = vsub.f32 %v1930, %v2221
        %v2475 = vsub.f32 %v1931, %v2221
        %v2476 = vsub.f32 %v1932, %v2221
        %v2477 = vsub.f32 %v1933, %v2221
        %v2478 = vmul.f32 %v2222, 1.442695
        %v2479 = vpow.pop %v2478
        %v2480 = vmul.f32 %v2223, 1.442695
        %v2481 = vpow.pop %v2480
        %v2482 = vmul.f32 %v2224, 1.442695
        %v2483 = vpow.pop %v2482
        %v2484 = vmul.f32 %v2225, 1.442695
        %v2485 = vpow.pop %v2484
        %v2486 = vmul.f32 %v2226, 1.442695
        %v2487 = vpow.pop %v2486
        %v2488 = vmul.f32 %v2227, 1.442695
        %v2489 = vpow.pop %v2488
        %v2490 = vmul.f32 %v2228, 1.442695
        %v2491 = vpow.pop %v2490
        %v2492 = vmul.f32 %v2229, 1.442695
        %v2493 = vpow.pop %v2492
        %v2494 = vmul.f32 %v2230, 1.442695
        %v2495 = vpow.pop %v2494
        %v2496 = vmul.f32 %v2231, 1.442695
        %v2497 = vpow.pop %v2496
        %v2498 = vmul.f32 %v2232, 1.442695
        %v2499 = vpow.pop %v2498
        %v2500 = vmul.f32 %v2233, 1.442695
        %v2501 = vpow.pop %v2500
        %v2502 = vmul.f32 %v2234, 1.442695
        %v2503 = vpow.pop %v2502
        %v2504 = vmul.f32 %v2235, 1.442695
        %v2505 = vpow.pop %v2504
        %v2506 = vmul.f32 %v2236, 1.442695
        %v2507 = vpow.pop %v2506
        %v2508 = vmul.f32 %v2237, 1.442695
        %v2509 = vpow.pop %v2508
        %v2510 = vmul.f32 %v2238, 1.442695
        %v2511 = vpow.pop %v2510
        %v2512 = vmul.f32 %v2239, 1.442695
        %v2513 = vpow.pop %v2512
        %v2514 = vmul.f32 %v2240, 1.442695
        %v2515 = vpow.pop %v2514
        %v2516 = vmul.f32 %v2241, 1.442695
        %v2517 = vpow.pop %v2516
        %v2518 = vmul.f32 %v2242, 1.442695
        %v2519 = vpow.pop %v2518
        %v2520 = vmul.f32 %v2243, 1.442695
        %v2521 = vpow.pop %v2520
        %v2522 = vmul.f32 %v2244, 1.442695
        %v2523 = vpow.pop %v2522
        %v2524 = vmul.f32 %v2245, 1.442695
        %v2525 = vpow.pop %v2524
        %v2526 = vmul.f32 %v2246, 1.442695
        %v2527 = vpow.pop %v2526
        %v2528 = vmul.f32 %v2247, 1.442695
        %v2529 = vpow.pop %v2528
        %v2530 = vmul.f32 %v2248, 1.442695
        %v2531 = vpow.pop %v2530
        %v2532 = vmul.f32 %v2249, 1.442695
        %v2533 = vpow.pop %v2532
        %v2534 = vmul.f32 %v2250, 1.442695
        %v2535 = vpow.pop %v2534
        %v2536 = vmul.f32 %v2251, 1.442695
        %v2537 = vpow.pop %v2536
        %v2538 = vmul.f32 %v2252, 1.442695
        %v2539 = vpow.pop %v2538
        %v2540 = vmul.f32 %v2253, 1.442695
        %v2541 = vpow.pop %v2540
        %v2542 = vmul.f32 %v2254, 1.442695
        %v2543 = vpow.pop %v2542
        %v2544 = vmul.f32 %v2255, 1.442695
        %v2545 = vpow.pop %v2544
        %v2546 = vmul.f32 %v2256, 1.442695
        %v2547 = vpow.pop %v2546
        %v2548 = vmul.f32 %v2257, 1.442695
        %v2549 = vpow.pop %v2548
        %v2550 = vmul.f32 %v2258, 1.442695
        %v2551 = vpow.pop %v2550
        %v2552 = vmul.f32 %v2259, 1.442695
        %v2553 = vpow.pop %v2552
        %v2554 = vmul.f32 %v2260, 1.442695
        %v2555 = vpow.pop %v2554
        %v2556 = vmul.f32 %v2261, 1.442695
        %v2557 = vpow.pop %v2556
        %v2558 = vmul.f32 %v2262, 1.442695
        %v2559 = vpow.pop %v2558
        %v2560 = vmul.f32 %v2263, 1.442695
        %v2561 = vpow.pop %v2560
        %v2562 = vmul.f32 %v2264, 1.442695
        %v2563 = vpow.pop %v2562
        %v2564 = vmul.f32 %v2265, 1.442695
        %v2565 = vpow.pop %v2564
        %v2566 = vmul.f32 %v2266, 1.442695
        %v2567 = vpow.pop %v2566
        %v2568 = vmul.f32 %v2267, 1.442695
        %v2569 = vpow.pop %v2568
        %v2570 = vmul.f32 %v2268, 1.442695
        %v2571 = vpow.pop %v2570
        %v2572 = vmul.f32 %v2269, 1.442695
        %v2573 = vpow.pop %v2572
        %v2574 = vmul.f32 %v2270, 1.442695
        %v2575 = vpow.pop %v2574
        %v2576 = vmul.f32 %v2271, 1.442695
        %v2577 = vpow.pop %v2576
        %v2578 = vmul.f32 %v2272, 1.442695
        %v2579 = vpow.pop %v2578
        %v2580 = vmul.f32 %v2273, 1.442695
        %v2581 = vpow.pop %v2580
        %v2582 = vmul.f32 %v2274, 1.442695
        %v2583 = vpow.pop %v2582
        %v2584 = vmul.f32 %v2275, 1.442695
        %v2585 = vpow.pop %v2584
        %v2586 = vmul.f32 %v2276, 1.442695
        %v2587 = vpow.pop %v2586
        %v2588 = vmul.f32 %v2277, 1.442695
        %v2589 = vpow.pop %v2588
        %v2590 = vmul.f32 %v2278, 1.442695
        %v2591 = vpow.pop %v2590
        %v2592 = vmul.f32 %v2279, 1.442695
        %v2593 = vpow.pop %v2592
        %v2594 = vmul.f32 %v2280, 1.442695
        %v2595 = vpow.pop %v2594
        %v2596 = vmul.f32 %v2281, 1.442695
        %v2597 = vpow.pop %v2596
        %v2598 = vmul.f32 %v2282, 1.442695
        %v2599 = vpow.pop %v2598
        %v2600 = vmul.f32 %v2283, 1.442695
        %v2601 = vpow.pop %v2600
        %v2602 = vmul.f32 %v2284, 1.442695
        %v2603 = vpow.pop %v2602
        %v2604 = vmul.f32 %v2285, 1.442695
        %v2605 = vpow.pop %v2604
        %v2606 = vmul.f32 %v2286, 1.442695
        %v2607 = vpow.pop %v2606
        %v2608 = vmul.f32 %v2287, 1.442695
        %v2609 = vpow.pop %v2608
        %v2610 = vmul.f32 %v2288, 1.442695
        %v2611 = vpow.pop %v2610
        %v2612 = vmul.f32 %v2289, 1.442695
        %v2613 = vpow.pop %v2612
        %v2614 = vmul.f32 %v2290, 1.442695
        %v2615 = vpow.pop %v2614
        %v2616 = vmul.f32 %v2291, 1.442695
        %v2617 = vpow.pop %v2616
        %v2618 = vmul.f32 %v2292, 1.442695
        %v2619 = vpow.pop %v2618
        %v2620 = vmul.f32 %v2293, 1.442695
        %v2621 = vpow.pop %v2620
        %v2622 = vmul.f32 %v2294, 1.442695
        %v2623 = vpow.pop %v2622
        %v2624 = vmul.f32 %v2295, 1.442695
        %v2625 = vpow.pop %v2624
        %v2626 = vmul.f32 %v2296, 1.442695
        %v2627 = vpow.pop %v2626
        %v2628 = vmul.f32 %v2297, 1.442695
        %v2629 = vpow.pop %v2628
        %v2630 = vmul.f32 %v2298, 1.442695
        %v2631 = vpow.pop %v2630
        %v2632 = vmul.f32 %v2299, 1.442695
        %v2633 = vpow.pop %v2632
        %v2634 = vmul.f32 %v2300, 1.442695
        %v2635 = vpow.pop %v2634
        %v2636 = vmul.f32 %v2301, 1.442695
        %v2637 = vpow.pop %v2636
        %v2638 = vmul.f32 %v2302, 1.442695
        %v2639 = vpow.pop %v2638
        %v2640 = vmul.f32 %v2303, 1.442695
        %v2641 = vpow.pop %v2640
        %v2642 = vmul.f32 %v2304, 1.442695
        %v2643 = vpow.pop %v2642
        %v2644 = vmul.f32 %v2305, 1.442695
        %v2645 = vpow.pop %v2644
        %v2646 = vmul.f32 %v2306, 1.442695
        %v2647 = vpow.pop %v2646
        %v2648 = vmul.f32 %v2307, 1.442695
        %v2649 = vpow.pop %v2648
        %v2650 = vmul.f32 %v2308, 1.442695
        %v2651 = vpow.pop %v2650
        %v2652 = vmul.f32 %v2309, 1.442695
        %v2653 = vpow.pop %v2652
        %v2654 = vmul.f32 %v2310, 1.442695
        %v2655 = vpow.pop %v2654
        %v2656 = vmul.f32 %v2311, 1.442695
        %v2657 = vpow.pop %v2656
        %v2658 = vmul.f32 %v2312, 1.442695
        %v2659 = vpow.pop %v2658
        %v2660 = vmul.f32 %v2313, 1.442695
        %v2661 = vpow.pop %v2660
        %v2662 = vmul.f32 %v2314, 1.442695
        %v2663 = vpow.pop %v2662
        %v2664 = vmul.f32 %v2315, 1.442695
        %v2665 = vpow.pop %v2664
        %v2666 = vmul.f32 %v2316, 1.442695
        %v2667 = vpow.pop %v2666
        %v2668 = vmul.f32 %v2317, 1.442695
        %v2669 = vpow.pop %v2668
        %v2670 = vmul.f32 %v2318, 1.442695
        %v2671 = vpow.pop %v2670
        %v2672 = vmul.f32 %v2319, 1.442695
        %v2673 = vpow.pop %v2672
        %v2674 = vmul.f32 %v2320, 1.442695
        %v2675 = vpow.pop %v2674
        %v2676 = vmul.f32 %v2321, 1.442695
        %v2677 = vpow.pop %v2676
        %v2678 = vmul.f32 %v2322, 1.442695
        %v2679 = vpow.pop %v2678
        %v2680 = vmul.f32 %v2323, 1.442695
        %v2681 = vpow.pop %v2680
        %v2682 = vmul.f32 %v2324, 1.442695
        %v2683 = vpow.pop %v2682
        %v2684 = vmul.f32 %v2325, 1.442695
        %v2685 = vpow.pop %v2684
        %v2686 = vmul.f32 %v2326, 1.442695
        %v2687 = vpow.pop %v2686
        %v2688 = vmul.f32 %v2327, 1.442695
        %v2689 = vpow.pop %v2688
        %v2690 = vmul.f32 %v2328, 1.442695
        %v2691 = vpow.pop %v2690
        %v2692 = vmul.f32 %v2329, 1.442695
        %v2693 = vpow.pop %v2692
        %v2694 = vmul.f32 %v2330, 1.442695
        %v2695 = vpow.pop %v2694
        %v2696 = vmul.f32 %v2331, 1.442695
        %v2697 = vpow.pop %v2696
        %v2698 = vmul.f32 %v2332, 1.442695
        %v2699 = vpow.pop %v2698
        %v2700 = vmul.f32 %v2333, 1.442695
        %v2701 = vpow.pop %v2700
        %v2702 = vmul.f32 %v2334, 1.442695
        %v2703 = vpow.pop %v2702
        %v2704 = vmul.f32 %v2335, 1.442695
        %v2705 = vpow.pop %v2704
        %v2706 = vmul.f32 %v2336, 1.442695
        %v2707 = vpow.pop %v2706
        %v2708 = vmul.f32 %v2337, 1.442695
        %v2709 = vpow.pop %v2708
        %v2710 = vmul.f32 %v2338, 1.442695
        %v2711 = vpow.pop %v2710
        %v2712 = vmul.f32 %v2339, 1.442695
        %v2713 = vpow.pop %v2712
        %v2714 = vmul.f32 %v2340, 1.442695
        %v2715 = vpow.pop %v2714
        %v2716 = vmul.f32 %v2341, 1.442695
        %v2717 = vpow.pop %v2716
        %v2718 = vmul.f32 %v2342, 1.442695
        %v2719 = vpow.pop %v2718
        %v2720 = vmul.f32 %v2343, 1.442695
        %v2721 = vpow.pop %v2720
        %v2722 = vmul.f32 %v2344, 1.442695
        %v2723 = vpow.pop %v2722
        %v2724 = vmul.f32 %v2345, 1.442695
        %v2725 = vpow.pop %v2724
        %v2726 = vmul.f32 %v2346, 1.442695
        %v2727 = vpow.pop %v2726
        %v2728 = vmul.f32 %v2347, 1.442695
        %v2729 = vpow.pop %v2728
        %v2730 = vmul.f32 %v2348, 1.442695
        %v2731 = vpow.pop %v2730
        %v2732 = vmul.f32 %v2349, 1.442695
        %v2733 = vpow.pop %v2732
        %v2734 = vmul.f32 %v2350, 1.442695
        %v2735 = vpow.pop %v2734
        %v2736 = vmul.f32 %v2351, 1.442695
        %v2737 = vpow.pop %v2736
        %v2738 = vmul.f32 %v2352, 1.442695
        %v2739 = vpow.pop %v2738
        %v2740 = vmul.f32 %v2353, 1.442695
        %v2741 = vpow.pop %v2740
        %v2742 = vmul.f32 %v2354, 1.442695
        %v2743 = vpow.pop %v2742
        %v2744 = vmul.f32 %v2355, 1.442695
        %v2745 = vpow.pop %v2744
        %v2746 = vmul.f32 %v2356, 1.442695
        %v2747 = vpow.pop %v2746
        %v2748 = vmul.f32 %v2357, 1.442695
        %v2749 = vpow.pop %v2748
        %v2750 = vmul.f32 %v2358, 1.442695
        %v2751 = vpow.pop %v2750
        %v2752 = vmul.f32 %v2359, 1.442695
        %v2753 = vpow.pop %v2752
        %v2754 = vmul.f32 %v2360, 1.442695
        %v2755 = vpow.pop %v2754
        %v2756 = vmul.f32 %v2361, 1.442695
        %v2757 = vpow.pop %v2756
        %v2758 = vmul.f32 %v2362, 1.442695
        %v2759 = vpow.pop %v2758
        %v2760 = vmul.f32 %v2363, 1.442695
        %v2761 = vpow.pop %v2760
        %v2762 = vmul.f32 %v2364, 1.442695
        %v2763 = vpow.pop %v2762
        %v2764 = vmul.f32 %v2365, 1.442695
        %v2765 = vpow.pop %v2764
        %v2766 = vmul.f32 %v2366, 1.442695
        %v2767 = vpow.pop %v2766
        %v2768 = vmul.f32 %v2367, 1.442695
        %v2769 = vpow.pop %v2768
        %v2770 = vmul.f32 %v2368, 1.442695
        %v2771 = vpow.pop %v2770
        %v2772 = vmul.f32 %v2369, 1.442695
        %v2773 = vpow.pop %v2772
        %v2774 = vmul.f32 %v2370, 1.442695
        %v2775 = vpow.pop %v2774
        %v2776 = vmul.f32 %v2371, 1.442695
        %v2777 = vpow.pop %v2776
        %v2778 = vmul.f32 %v2372, 1.442695
        %v2779 = vpow.pop %v2778
        %v2780 = vmul.f32 %v2373, 1.442695
        %v2781 = vpow.pop %v2780
        %v2782 = vmul.f32 %v2374, 1.442695
        %v2783 = vpow.pop %v2782
        %v2784 = vmul.f32 %v2375, 1.442695
        %v2785 = vpow.pop %v2784
        %v2786 = vmul.f32 %v2376, 1.442695
        %v2787 = vpow.pop %v2786
        %v2788 = vmul.f32 %v2377, 1.442695
        %v2789 = vpow.pop %v2788
        %v2790 = vmul.f32 %v2378, 1.442695
        %v2791 = vpow.pop %v2790
        %v2792 = vmul.f32 %v2379, 1.442695
        %v2793 = vpow.pop %v2792
        %v2794 = vmul.f32 %v2380, 1.442695
        %v2795 = vpow.pop %v2794
        %v2796 = vmul.f32 %v2381, 1.442695
        %v2797 = vpow.pop %v2796
        %v2798 = vmul.f32 %v2382, 1.442695
        %v2799 = vpow.pop %v2798
        %v2800 = vmul.f32 %v2383, 1.442695
        %v2801 = vpow.pop %v2800
        %v2802 = vmul.f32 %v2384, 1.442695
        %v2803 = vpow.pop %v2802
        %v2804 = vmul.f32 %v2385, 1.442695
        %v2805 = vpow.pop %v2804
        %v2806 = vmul.f32 %v2386, 1.442695
        %v2807 = vpow.pop %v2806
        %v2808 = vmul.f32 %v2387, 1.442695
        %v2809 = vpow.pop %v2808
        %v2810 = vmul.f32 %v2388, 1.442695
        %v2811 = vpow.pop %v2810
        %v2812 = vmul.f32 %v2389, 1.442695
        %v2813 = vpow.pop %v2812
        %v2814 = vmul.f32 %v2390, 1.442695
        %v2815 = vpow.pop %v2814
        %v2816 = vmul.f32 %v2391, 1.442695
        %v2817 = vpow.pop %v2816
        %v2818 = vmul.f32 %v2392, 1.442695
        %v2819 = vpow.pop %v2818
        %v2820 = vmul.f32 %v2393, 1.442695
        %v2821 = vpow.pop %v2820
        %v2822 = vmul.f32 %v2394, 1.442695
        %v2823 = vpow.pop %v2822
        %v2824 = vmul.f32 %v2395, 1.442695
        %v2825 = vpow.pop %v2824
        %v2826 = vmul.f32 %v2396, 1.442695
        %v2827 = vpow.pop %v2826
        %v2828 = vmul.f32 %v2397, 1.442695
        %v2829 = vpow.pop %v2828
        %v2830 = vmul.f32 %v2398, 1.442695
        %v2831 = vpow.pop %v2830
        %v2832 = vmul.f32 %v2399, 1.442695
        %v2833 = vpow.pop %v2832
        %v2834 = vmul.f32 %v2400, 1.442695
        %v2835 = vpow.pop %v2834
        %v2836 = vmul.f32 %v2401, 1.442695
        %v2837 = vpow.pop %v2836
        %v2838 = vmul.f32 %v2402, 1.442695
        %v2839 = vpow.pop %v2838
        %v2840 = vmul.f32 %v2403, 1.442695
        %v2841 = vpow.pop %v2840
        %v2842 = vmul.f32 %v2404, 1.442695
        %v2843 = vpow.pop %v2842
        %v2844 = vmul.f32 %v2405, 1.442695
        %v2845 = vpow.pop %v2844
        %v2846 = vmul.f32 %v2406, 1.442695
        %v2847 = vpow.pop %v2846
        %v2848 = vmul.f32 %v2407, 1.442695
        %v2849 = vpow.pop %v2848
        %v2850 = vmul.f32 %v2408, 1.442695
        %v2851 = vpow.pop %v2850
        %v2852 = vmul.f32 %v2409, 1.442695
        %v2853 = vpow.pop %v2852
        %v2854 = vmul.f32 %v2410, 1.442695
        %v2855 = vpow.pop %v2854
        %v2856 = vmul.f32 %v2411, 1.442695
        %v2857 = vpow.pop %v2856
        %v2858 = vmul.f32 %v2412, 1.442695
        %v2859 = vpow.pop %v2858
        %v2860 = vmul.f32 %v2413, 1.442695
        %v2861 = vpow.pop %v2860
        %v2862 = vmul.f32 %v2414, 1.442695
        %v2863 = vpow.pop %v2862
        %v2864 = vmul.f32 %v2415, 1.442695
        %v2865 = vpow.pop %v2864
        %v2866 = vmul.f32 %v2416, 1.442695
        %v2867 = vpow.pop %v2866
        %v2868 = vmul.f32 %v2417, 1.442695
        %v2869 = vpow.pop %v2868
        %v2870 = vmul.f32 %v2418, 1.442695
        %v2871 = vpow.pop %v2870
        %v2872 = vmul.f32 %v2419, 1.442695
        %v2873 = vpow.pop %v2872
        %v2874 = vmul.f32 %v2420, 1.442695
        %v2875 = vpow.pop %v2874
        %v2876 = vmul.f32 %v2421, 1.442695
        %v2877 = vpow.pop %v2876
        %v2878 = vmul.f32 %v2422, 1.442695
        %v2879 = vpow.pop %v2878
        %v2880 = vmul.f32 %v2423, 1.442695
        %v2881 = vpow.pop %v2880
        %v2882 = vmul.f32 %v2424, 1.442695
        %v2883 = vpow.pop %v2882
        %v2884 = vmul.f32 %v2425, 1.442695
        %v2885 = vpow.pop %v2884
        %v2886 = vmul.f32 %v2426, 1.442695
        %v2887 = vpow.pop %v2886
        %v2888 = vmul.f32 %v2427, 1.442695
        %v2889 = vpow.pop %v2888
        %v2890 = vmul.f32 %v2428, 1.442695
        %v2891 = vpow.pop %v2890
        %v2892 = vmul.f32 %v2429, 1.442695
        %v2893 = vpow.pop %v2892
        %v2894 = vmul.f32 %v2430, 1.442695
        %v2895 = vpow.pop %v2894
        %v2896 = vmul.f32 %v2431, 1.442695
        %v2897 = vpow.pop %v2896
        %v2898 = vmul.f32 %v2432, 1.442695
        %v2899 = vpow.pop %v2898
        %v2900 = vmul.f32 %v2433, 1.442695
        %v2901 = vpow.pop %v2900
        %v2902 = vmul.f32 %v2434, 1.442695
        %v2903 = vpow.pop %v2902
        %v2904 = vmul.f32 %v2435, 1.442695
        %v2905 = vpow.pop %v2904
        %v2906 = vmul.f32 %v2436, 1.442695
        %v2907 = vpow.pop %v2906
        %v2908 = vmul.f32 %v2437, 1.442695
        %v2909 = vpow.pop %v2908
        %v2910 = vmul.f32 %v2438, 1.442695
        %v2911 = vpow.pop %v2910
        %v2912 = vmul.f32 %v2439, 1.442695
        %v2913 = vpow.pop %v2912
        %v2914 = vmul.f32 %v2440, 1.442695
        %v2915 = vpow.pop %v2914
        %v2916 = vmul.f32 %v2441, 1.442695
        %v2917 = vpow.pop %v2916
        %v2918 = vmul.f32 %v2442, 1.442695
        %v2919 = vpow.pop %v2918
        %v2920 = vmul.f32 %v2443, 1.442695
        %v2921 = vpow.pop %v2920
        %v2922 = vmul.f32 %v2444, 1.442695
        %v2923 = vpow.pop %v2922
        %v2924 = vmul.f32 %v2445, 1.442695
        %v2925 = vpow.pop %v2924
        %v2926 = vmul.f32 %v2446, 1.442695
        %v2927 = vpow.pop %v2926
        %v2928 = vmul.f32 %v2447, 1.442695
        %v2929 = vpow.pop %v2928
        %v2930 = vmul.f32 %v2448, 1.442695
        %v2931 = vpow.pop %v2930
        %v2932 = vmul.f32 %v2449, 1.442695
        %v2933 = vpow.pop %v2932
        %v2934 = vmul.f32 %v2450, 1.442695
        %v2935 = vpow.pop %v2934
        %v2936 = vmul.f32 %v2451, 1.442695
        %v2937 = vpow.pop %v2936
        %v2938 = vmul.f32 %v2452, 1.442695
        %v2939 = vpow.pop %v2938
        %v2940 = vmul.f32 %v2453, 1.442695
        %v2941 = vpow.pop %v2940
        %v2942 = vmul.f32 %v2454, 1.442695
        %v2943 = vpow.pop %v2942
        %v2944 = vmul.f32 %v2455, 1.442695
        %v2945 = vpow.pop %v2944
        %v2946 = vmul.f32 %v2456, 1.442695
        %v2947 = vpow.pop %v2946
        %v2948 = vmul.f32 %v2457, 1.442695
        %v2949 = vpow.pop %v2948
        %v2950 = vmul.f32 %v2458, 1.442695
        %v2951 = vpow.pop %v2950
        %v2952 = vmul.f32 %v2459, 1.442695
        %v2953 = vpow.pop %v2952
        %v2954 = vmul.f32 %v2460, 1.442695
        %v2955 = vpow.pop %v2954
        %v2956 = vmul.f32 %v2461, 1.442695
        %v2957 = vpow.pop %v2956
        %v2958 = vmul.f32 %v2462, 1.442695
        %v2959 = vpow.pop %v2958
        %v2960 = vmul.f32 %v2463, 1.442695
        %v2961 = vpow.pop %v2960
        %v2962 = vmul.f32 %v2464, 1.442695
        %v2963 = vpow.pop %v2962
        %v2964 = vmul.f32 %v2465, 1.442695
        %v2965 = vpow.pop %v2964
        %v2966 = vmul.f32 %v2466, 1.442695
        %v2967 = vpow.pop %v2966
        %v2968 = vmul.f32 %v2467, 1.442695
        %v2969 = vpow.pop %v2968
        %v2970 = vmul.f32 %v2468, 1.442695
        %v2971 = vpow.pop %v2970
        %v2972 = vmul.f32 %v2469, 1.442695
        %v2973 = vpow.pop %v2972
        %v2974 = vmul.f32 %v2470, 1.442695
        %v2975 = vpow.pop %v2974
        %v2976 = vmul.f32 %v2471, 1.442695
        %v2977 = vpow.pop %v2976
        %v2978 = vmul.f32 %v2472, 1.442695
        %v2979 = vpow.pop %v2978
        %v2980 = vmul.f32 %v2473, 1.442695
        %v2981 = vpow.pop %v2980
        %v2982 = vmul.f32 %v2474, 1.442695
        %v2983 = vpow.pop %v2982
        %v2984 = vmul.f32 %v2475, 1.442695
        %v2985 = vpow.pop %v2984
        %v2986 = vmul.f32 %v2476, 1.442695
        %v2987 = vpow.pop %v2986
        %v2988 = vmul.f32 %v2477, 1.442695
        %v2989 = vpow.pop %v2988
        %v2990 = vadd.f32 %v2479, %v2481
        %v2991 = vadd.f32 %v2990, %v2483
        %v2992 = vadd.f32 %v2991, %v2485
        %v2993 = vadd.f32 %v2992, %v2487
        %v2994 = vadd.f32 %v2993, %v2489
        %v2995 = vadd.f32 %v2994, %v2491
        %v2996 = vadd.f32 %v2995, %v2493
        %2997 = vadd.xlane.f32.xlu0 %v2996
        %v2998 = vpop.xlane.xlu0 %2997
        %v2999 = vadd.f32 %v2495, %v2497
        %v3000 = vadd.f32 %v2999, %v2499
        %v3001 = vadd.f32 %v3000, %v2501
        %v3002 = vadd.f32 %v3001, %v2503
        %v3003 = vadd.f32 %v3002, %v2505
        %v3004 = vadd.f32 %v3003, %v2507
        %v3005 = vadd.f32 %v3004, %v2509
        %3006 = vadd.xlane.f32.xlu0 %v3005
        %v3007 = vpop.xlane.xlu0 %3006
        %v3008 = vadd.f32 %v2511, %v2513
        %v3009 = vadd.f32 %v3008, %v2515
        %v3010 = vadd.f32 %v3009, %v2517
        %v3011 = vadd.f32 %v3010, %v2519
        %v3012 = vadd.f32 %v3011, %v2521
        %v3013 = vadd.f32 %v3012, %v2523
        %v3014 = vadd.f32 %v3013, %v2525
        %3015 = vadd.xlane.f32.xlu0 %v3014
        %v3016 = vpop.xlane.xlu0 %3015
        %v3017 = vadd.f32 %v2527, %v2529
        %v3018 = vadd.f32 %v3017, %v2531
        %v3019 = vadd.f32 %v3018, %v2533
        %v3020 = vadd.f32 %v3019, %v2535
        %v3021 = vadd.f32 %v3020, %v2537
        %v3022 = vadd.f32 %v3021, %v2539
        %v3023 = vadd.f32 %v3022, %v2541
        %3024 = vadd.xlane.f32.xlu0 %v3023
        %v3025 = vpop.xlane.xlu0 %3024
        %v3026 = vadd.f32 %v2543, %v2545
        %v3027 = vadd.f32 %v3026, %v2547
        %v3028 = vadd.f32 %v3027, %v2549
        %v3029 = vadd.f32 %v3028, %v2551
        %v3030 = vadd.f32 %v3029, %v2553
        %v3031 = vadd.f32 %v3030, %v2555
        %v3032 = vadd.f32 %v3031, %v2557
        %3033 = vadd.xlane.f32.xlu0 %v3032
        %v3034 = vpop.xlane.xlu0 %3033
        %v3035 = vadd.f32 %v2559, %v2561
        %v3036 = vadd.f32 %v3035, %v2563
        %v3037 = vadd.f32 %v3036, %v2565
        %v3038 = vadd.f32 %v3037, %v2567
        %v3039 = vadd.f32 %v3038, %v2569
        %v3040 = vadd.f32 %v3039, %v2571
        %v3041 = vadd.f32 %v3040, %v2573
        %3042 = vadd.xlane.f32.xlu0 %v3041
        %v3043 = vpop.xlane.xlu0 %3042
        %v3044 = vadd.f32 %v2575, %v2577
        %v3045 = vadd.f32 %v3044, %v2579
        %v3046 = vadd.f32 %v3045, %v2581
        %v3047 = vadd.f32 %v3046, %v2583
        %v3048 = vadd.f32 %v3047, %v2585
        %v3049 = vadd.f32 %v3048, %v2587
        %v3050 = vadd.f32 %v3049, %v2589
        %3051 = vadd.xlane.f32.xlu0 %v3050
        %v3052 = vpop.xlane.xlu0 %3051
        %v3053 = vadd.f32 %v2591, %v2593
        %v3054 = vadd.f32 %v3053, %v2595
        %v3055 = vadd.f32 %v3054, %v2597
        %v3056 = vadd.f32 %v3055, %v2599
        %v3057 = vadd.f32 %v3056, %v2601
        %v3058 = vadd.f32 %v3057, %v2603
        %v3059 = vadd.f32 %v3058, %v2605
        %3060 = vadd.xlane.f32.xlu0 %v3059
        %v3061 = vpop.xlane.xlu0 %3060
        %v3062 = vadd.f32 %v2607, %v2609
        %v3063 = vadd.f32 %v3062, %v2611
        %v3064 = vadd.f32 %v3063, %v2613
        %v3065 = vadd.f32 %v3064, %v2615
        %v3066 = vadd.f32 %v3065, %v2617
        %v3067 = vadd.f32 %v3066, %v2619
        %v3068 = vadd.f32 %v3067, %v2621
        %3069 = vadd.xlane.f32.xlu0 %v3068
        %v3070 = vpop.xlane.xlu0 %3069
        %v3071 = vadd.f32 %v2623, %v2625
        %v3072 = vadd.f32 %v3071, %v2627
        %v3073 = vadd.f32 %v3072, %v2629
        %v3074 = vadd.f32 %v3073, %v2631
        %v3075 = vadd.f32 %v3074, %v2633
        %v3076 = vadd.f32 %v3075, %v2635
        %v3077 = vadd.f32 %v3076, %v2637
        %3078 = vadd.xlane.f32.xlu0 %v3077
        %v3079 = vpop.xlane.xlu0 %3078
        %v3080 = vadd.f32 %v2639, %v2641
        %v3081 = vadd.f32 %v3080, %v2643
        %v3082 = vadd.f32 %v3081, %v2645
        %v3083 = vadd.f32 %v3082, %v2647
        %v3084 = vadd.f32 %v3083, %v2649
        %v3085 = vadd.f32 %v3084, %v2651
        %v3086 = vadd.f32 %v3085, %v2653
        %3087 = vadd.xlane.f32.xlu0 %v3086
        %v3088 = vpop.xlane.xlu0 %3087
        %v3089 = vadd.f32 %v2655, %v2657
        %v3090 = vadd.f32 %v3089, %v2659
        %v3091 = vadd.f32 %v3090, %v2661
        %v3092 = vadd.f32 %v3091, %v2663
        %v3093 = vadd.f32 %v3092, %v2665
        %v3094 = vadd.f32 %v3093, %v2667
        %v3095 = vadd.f32 %v3094, %v2669
        %3096 = vadd.xlane.f32.xlu0 %v3095
        %v3097 = vpop.xlane.xlu0 %3096
        %v3098 = vadd.f32 %v2671, %v2673
        %v3099 = vadd.f32 %v3098, %v2675
        %v3100 = vadd.f32 %v3099, %v2677
        %v3101 = vadd.f32 %v3100, %v2679
        %v3102 = vadd.f32 %v3101, %v2681
        %v3103 = vadd.f32 %v3102, %v2683
        %v3104 = vadd.f32 %v3103, %v2685
        %3105 = vadd.xlane.f32.xlu0 %v3104
        %v3106 = vpop.xlane.xlu0 %3105
        %v3107 = vadd.f32 %v2687, %v2689
        %v3108 = vadd.f32 %v3107, %v2691
        %v3109 = vadd.f32 %v3108, %v2693
        %v3110 = vadd.f32 %v3109, %v2695
        %v3111 = vadd.f32 %v3110, %v2697
        %v3112 = vadd.f32 %v3111, %v2699
        %v3113 = vadd.f32 %v3112, %v2701
        %3114 = vadd.xlane.f32.xlu0 %v3113
        %v3115 = vpop.xlane.xlu0 %3114
        %v3116 = vadd.f32 %v2703, %v2705
        %v3117 = vadd.f32 %v3116, %v2707
        %v3118 = vadd.f32 %v3117, %v2709
        %v3119 = vadd.f32 %v3118, %v2711
        %v3120 = vadd.f32 %v3119, %v2713
        %v3121 = vadd.f32 %v3120, %v2715
        %v3122 = vadd.f32 %v3121, %v2717
        %3123 = vadd.xlane.f32.xlu0 %v3122
        %v3124 = vpop.xlane.xlu0 %3123
        %v3125 = vadd.f32 %v2719, %v2721
        %v3126 = vadd.f32 %v3125, %v2723
        %v3127 = vadd.f32 %v3126, %v2725
        %v3128 = vadd.f32 %v3127, %v2727
        %v3129 = vadd.f32 %v3128, %v2729
        %v3130 = vadd.f32 %v3129, %v2731
        %v3131 = vadd.f32 %v3130, %v2733
        %3132 = vadd.xlane.f32.xlu0 %v3131
        %v3133 = vpop.xlane.xlu0 %3132
        %v3134 = vadd.f32 %v2735, %v2737
        %v3135 = vadd.f32 %v3134, %v2739
        %v3136 = vadd.f32 %v3135, %v2741
        %v3137 = vadd.f32 %v3136, %v2743
        %v3138 = vadd.f32 %v3137, %v2745
        %v3139 = vadd.f32 %v3138, %v2747
        %v3140 = vadd.f32 %v3139, %v2749
        %3141 = vadd.xlane.f32.xlu0 %v3140
        %v3142 = vpop.xlane.xlu0 %3141
        %v3143 = vadd.f32 %v2751, %v2753
        %v3144 = vadd.f32 %v3143, %v2755
        %v3145 = vadd.f32 %v3144, %v2757
        %v3146 = vadd.f32 %v3145, %v2759
        %v3147 = vadd.f32 %v3146, %v2761
        %v3148 = vadd.f32 %v3147, %v2763
        %v3149 = vadd.f32 %v3148, %v2765
        %3150 = vadd.xlane.f32.xlu0 %v3149
        %v3151 = vpop.xlane.xlu0 %3150
        %v3152 = vadd.f32 %v2767, %v2769
        %v3153 = vadd.f32 %v3152, %v2771
        %v3154 = vadd.f32 %v3153, %v2773
        %v3155 = vadd.f32 %v3154, %v2775
        %v3156 = vadd.f32 %v3155, %v2777
        %v3157 = vadd.f32 %v3156, %v2779
        %v3158 = vadd.f32 %v3157, %v2781
        %3159 = vadd.xlane.f32.xlu0 %v3158
        %v3160 = vpop.xlane.xlu0 %3159
        %v3161 = vadd.f32 %v2783, %v2785
        %v3162 = vadd.f32 %v3161, %v2787
        %v3163 = vadd.f32 %v3162, %v2789
        %v3164 = vadd.f32 %v3163, %v2791
        %v3165 = vadd.f32 %v3164, %v2793
        %v3166 = vadd.f32 %v3165, %v2795
        %v3167 = vadd.f32 %v3166, %v2797
        %3168 = vadd.xlane.f32.xlu0 %v3167
        %v3169 = vpop.xlane.xlu0 %3168
        %v3170 = vadd.f32 %v2799, %v2801
        %v3171 = vadd.f32 %v3170, %v2803
        %v3172 = vadd.f32 %v3171, %v2805
        %v3173 = vadd.f32 %v3172, %v2807
        %v3174 = vadd.f32 %v3173, %v2809
        %v3175 = vadd.f32 %v3174, %v2811
        %v3176 = vadd.f32 %v3175, %v2813
        %3177 = vadd.xlane.f32.xlu0 %v3176
        %v3178 = vpop.xlane.xlu0 %3177
        %v3179 = vadd.f32 %v2815, %v2817
        %v3180 = vadd.f32 %v3179, %v2819
        %v3181 = vadd.f32 %v3180, %v2821
        %v3182 = vadd.f32 %v3181, %v2823
        %v3183 = vadd.f32 %v3182, %v2825
        %v3184 = vadd.f32 %v3183, %v2827
        %v3185 = vadd.f32 %v3184, %v2829
        %3186 = vadd.xlane.f32.xlu0 %v3185
        %v3187 = vpop.xlane.xlu0 %3186
        %v3188 = vadd.f32 %v2831, %v2833
        %v3189 = vadd.f32 %v3188, %v2835
        %v3190 = vadd.f32 %v3189, %v2837
        %v3191 = vadd.f32 %v3190, %v2839
        %v3192 = vadd.f32 %v3191, %v2841
        %v3193 = vadd.f32 %v3192, %v2843
        %v3194 = vadd.f32 %v3193, %v2845
        %3195 = vadd.xlane.f32.xlu0 %v3194
        %v3196 = vpop.xlane.xlu0 %3195
        %v3197 = vadd.f32 %v2847, %v2849
        %v3198 = vadd.f32 %v3197, %v2851
        %v3199 = vadd.f32 %v3198, %v2853
        %v3200 = vadd.f32 %v3199, %v2855
        %v3201 = vadd.f32 %v3200, %v2857
        %v3202 = vadd.f32 %v3201, %v2859
        %v3203 = vadd.f32 %v3202, %v2861
        %3204 = vadd.xlane.f32.xlu0 %v3203
        %v3205 = vpop.xlane.xlu0 %3204
        %v3206 = vadd.f32 %v2863, %v2865
        %v3207 = vadd.f32 %v3206, %v2867
        %v3208 = vadd.f32 %v3207, %v2869
        %v3209 = vadd.f32 %v3208, %v2871
        %v3210 = vadd.f32 %v3209, %v2873
        %v3211 = vadd.f32 %v3210, %v2875
        %v3212 = vadd.f32 %v3211, %v2877
        %3213 = vadd.xlane.f32.xlu0 %v3212
        %v3214 = vpop.xlane.xlu0 %3213
        %v3215 = vadd.f32 %v2879, %v2881
        %v3216 = vadd.f32 %v3215, %v2883
        %v3217 = vadd.f32 %v3216, %v2885
        %v3218 = vadd.f32 %v3217, %v2887
        %v3219 = vadd.f32 %v3218, %v2889
        %v3220 = vadd.f32 %v3219, %v2891
        %v3221 = vadd.f32 %v3220, %v2893
        %3222 = vadd.xlane.f32.xlu0 %v3221
        %v3223 = vpop.xlane.xlu0 %3222
        %v3224 = vadd.f32 %v2895, %v2897
        %v3225 = vadd.f32 %v3224, %v2899
        %v3226 = vadd.f32 %v3225, %v2901
        %v3227 = vadd.f32 %v3226, %v2903
        %v3228 = vadd.f32 %v3227, %v2905
        %v3229 = vadd.f32 %v3228, %v2907
        %v3230 = vadd.f32 %v3229, %v2909
        %3231 = vadd.xlane.f32.xlu0 %v3230
        %v3232 = vpop.xlane.xlu0 %3231
        %v3233 = vadd.f32 %v2911, %v2913
        %v3234 = vadd.f32 %v3233, %v2915
        %v3235 = vadd.f32 %v3234, %v2917
        %v3236 = vadd.f32 %v3235, %v2919
        %v3237 = vadd.f32 %v3236, %v2921
        %v3238 = vadd.f32 %v3237, %v2923
        %v3239 = vadd.f32 %v3238, %v2925
        %3240 = vadd.xlane.f32.xlu0 %v3239
        %v3241 = vpop.xlane.xlu0 %3240
        %v3242 = vadd.f32 %v2927, %v2929
        %v3243 = vadd.f32 %v3242, %v2931
        %v3244 = vadd.f32 %v3243, %v2933
        %v3245 = vadd.f32 %v3244, %v2935
        %v3246 = vadd.f32 %v3245, %v2937
        %v3247 = vadd.f32 %v3246, %v2939
        %v3248 = vadd.f32 %v3247, %v2941
        %3249 = vadd.xlane.f32.xlu0 %v3248
        %v3250 = vpop.xlane.xlu0 %3249
        %v3251 = vadd.f32 %v2943, %v2945
        %v3252 = vadd.f32 %v3251, %v2947
        %v3253 = vadd.f32 %v3252, %v2949
        %v3254 = vadd.f32 %v3253, %v2951
        %v3255 = vadd.f32 %v3254, %v2953
        %v3256 = vadd.f32 %v3255, %v2955
        %v3257 = vadd.f32 %v3256, %v2957
        %3258 = vadd.xlane.f32.xlu0 %v3257
        %v3259 = vpop.xlane.xlu0 %3258
        %v3260 = vadd.f32 %v2959, %v2961
        %v3261 = vadd.f32 %v3260, %v2963
        %v3262 = vadd.f32 %v3261, %v2965
        %v3263 = vadd.f32 %v3262, %v2967
        %v3264 = vadd.f32 %v3263, %v2969
        %v3265 = vadd.f32 %v3264, %v2971
        %v3266 = vadd.f32 %v3265, %v2973
        %3267 = vadd.xlane.f32.xlu0 %v3266
        %v3268 = vpop.xlane.xlu0 %3267
        %v3269 = vadd.f32 %v2975, %v2977
        %v3270 = vadd.f32 %v3269, %v2979
        %v3271 = vadd.f32 %v3270, %v2981
        %v3272 = vadd.f32 %v3271, %v2983
        %v3273 = vadd.f32 %v3272, %v2985
        %v3274 = vadd.f32 %v3273, %v2987
        %v3275 = vadd.f32 %v3274, %v2989
        %3276 = vadd.xlane.f32.xlu0 %v3275
        %v3277 = vpop.xlane.xlu0 %3276
        %v3278 = vrcp.pop %v2998
        %v3279 = vrcp.pop %v3007
        %v3280 = vrcp.pop %v3016
        %v3281 = vrcp.pop %v3025
        %v3282 = vrcp.pop %v3034
        %v3283 = vrcp.pop %v3043
        %v3284 = vrcp.pop %v3052
        %v3285 = vrcp.pop %v3061
        %v3286 = vrcp.pop %v3070
        %v3287 = vrcp.pop %v3079
        %v3288 = vrcp.pop %v3088
        %v3289 = vrcp.pop %v3097
        %v3290 = vrcp.pop %v3106
        %v3291 = vrcp.pop %v3115
        %v3292 = vrcp.pop %v3124
        %v3293 = vrcp.pop %v3133
        %v3294 = vrcp.pop %v3142
        %v3295 = vrcp.pop %v3151
        %v3296 = vrcp.pop %v3160
        %v3297 = vrcp.pop %v3169
        %v3298 = vrcp.pop %v3178
        %v3299 = vrcp.pop %v3187
        %v3300 = vrcp.pop %v3196
        %v3301 = vrcp.pop %v3205
        %v3302 = vrcp.pop %v3214
        %v3303 = vrcp.pop %v3223
        %v3304 = vrcp.pop %v3232
        %v3305 = vrcp.pop %v3241
        %v3306 = vrcp.pop %v3250
        %v3307 = vrcp.pop %v3259
        %v3308 = vrcp.pop %v3268
        %v3309 = vrcp.pop %v3277
        %v3310 = vmul.f32 %v2479, %v3278
        %v3311 = vmul.f32 %v2481, %v3278
        %v3312 = vmul.f32 %v2483, %v3278
        %v3313 = vmul.f32 %v2485, %v3278
        %v3314 = vmul.f32 %v2487, %v3278
        %v3315 = vmul.f32 %v2489, %v3278
        %v3316 = vmul.f32 %v2491, %v3278
        %v3317 = vmul.f32 %v2493, %v3278
        %v3318 = vmul.f32 %v2495, %v3279
        %v3319 = vmul.f32 %v2497, %v3279
        %v3320 = vmul.f32 %v2499, %v3279
        %v3321 = vmul.f32 %v2501, %v3279
        %v3322 = vmul.f32 %v2503, %v3279
        %v3323 = vmul.f32 %v2505, %v3279
        %v3324 = vmul.f32 %v2507, %v3279
        %v3325 = vmul.f32 %v2509, %v3279
        %v3326 = vmul.f32 %v2511, %v3280
        %v3327 = vmul.f32 %v2513, %v3280
        %v3328 = vmul.f32 %v2515, %v3280
        %v3329 = vmul.f32 %v2517, %v3280
        %v3330 = vmul.f32 %v2519, %v3280
        %v3331 = vmul.f32 %v2521, %v3280
        %v3332 = vmul.f32 %v2523, %v3280
        %v3333 = vmul.f32 %v2525, %v3280
        %v3334 = vmul.f32 %v2527, %v3281
        %v3335 = vmul.f32 %v2529, %v3281
        %v3336 = vmul.f32 %v2531, %v3281
        %v3337 = vmul.f32 %v2533, %v3281
        %v3338 = vmul.f32 %v2535, %v3281
        %v3339 = vmul.f32 %v2537, %v3281
        %v3340 = vmul.f32 %v2539, %v3281
        %v3341 = vmul.f32 %v2541, %v3281
        %v3342 = vmul.f32 %v2543, %v3282
        %v3343 = vmul.f32 %v2545, %v3282
        %v3344 = vmul.f32 %v2547, %v3282
        %v3345 = vmul.f32 %v2549, %v3282
        %v3346 = vmul.f32 %v2551, %v3282
        %v3347 = vmul.f32 %v2553, %v3282
        %v3348 = vmul.f32 %v2555, %v3282
        %v3349 = vmul.f32 %v2557, %v3282
        %v3350 = vmul.f32 %v2559, %v3283
        %v3351 = vmul.f32 %v2561, %v3283
        %v3352 = vmul.f32 %v2563, %v3283
        %v3353 = vmul.f32 %v2565, %v3283
        %v3354 = vmul.f32 %v2567, %v3283
        %v3355 = vmul.f32 %v2569, %v3283
        %v3356 = vmul.f32 %v2571, %v3283
        %v3357 = vmul.f32 %v2573, %v3283
        %v3358 = vmul.f32 %v2575, %v3284
        %v3359 = vmul.f32 %v2577, %v3284
        %v3360 = vmul.f32 %v2579, %v3284
        %v3361 = vmul.f32 %v2581, %v3284
        %v3362 = vmul.f32 %v2583, %v3284
        %v3363 = vmul.f32 %v2585, %v3284
        %v3364 = vmul.f32 %v2587, %v3284
        %v3365 = vmul.f32 %v2589, %v3284
        %v3366 = vmul.f32 %v2591, %v3285
        %v3367 = vmul.f32 %v2593, %v3285
        %v3368 = vmul.f32 %v2595, %v3285
        %v3369 = vmul.f32 %v2597, %v3285
        %v3370 = vmul.f32 %v2599, %v3285
        %v3371 = vmul.f32 %v2601, %v3285
        %v3372 = vmul.f32 %v2603, %v3285
        %v3373 = vmul.f32 %v2605, %v3285
        %v3374 = vmul.f32 %v2607, %v3286
        %v3375 = vmul.f32 %v2609, %v3286
        %v3376 = vmul.f32 %v2611, %v3286
        %v3377 = vmul.f32 %v2613, %v3286
        %v3378 = vmul.f32 %v2615, %v3286
        %v3379 = vmul.f32 %v2617, %v3286
        %v3380 = vmul.f32 %v2619, %v3286
        %v3381 = vmul.f32 %v2621, %v3286
        %v3382 = vmul.f32 %v2623, %v3287
        %v3383 = vmul.f32 %v2625, %v3287
        %v3384 = vmul.f32 %v2627, %v3287
        %v3385 = vmul.f32 %v2629, %v3287
        %v3386 = vmul.f32 %v2631, %v3287
        %v3387 = vmul.f32 %v2633, %v3287
        %v3388 = vmul.f32 %v2635, %v3287
        %v3389 = vmul.f32 %v2637, %v3287
        %v3390 = vmul.f32 %v2639, %v3288
        %v3391 = vmul.f32 %v2641, %v3288
        %v3392 = vmul.f32 %v2643, %v3288
        %v3393 = vmul.f32 %v2645, %v3288
        %v3394 = vmul.f32 %v2647, %v3288
        %v3395 = vmul.f32 %v2649, %v3288
        %v3396 = vmul.f32 %v2651, %v3288
        %v3397 = vmul.f32 %v2653, %v3288
        %v3398 = vmul.f32 %v2655, %v3289
        %v3399 = vmul.f32 %v2657, %v3289
        %v3400 = vmul.f32 %v2659, %v3289
        %v3401 = vmul.f32 %v2661, %v3289
        %v3402 = vmul.f32 %v2663, %v3289
        %v3403 = vmul.f32 %v2665, %v3289
        %v3404 = vmul.f32 %v2667, %v3289
        %v3405 = vmul.f32 %v2669, %v3289
        %v3406 = vmul.f32 %v2671, %v3290
        %v3407 = vmul.f32 %v2673, %v3290
        %v3408 = vmul.f32 %v2675, %v3290
        %v3409 = vmul.f32 %v2677, %v3290
        %v3410 = vmul.f32 %v2679, %v3290
        %v3411 = vmul.f32 %v2681, %v3290
        %v3412 = vmul.f32 %v2683, %v3290
        %v3413 = vmul.f32 %v2685, %v3290
        %v3414 = vmul.f32 %v2687, %v3291
        %v3415 = vmul.f32 %v2689, %v3291
        %v3416 = vmul.f32 %v2691, %v3291
        %v3417 = vmul.f32 %v2693, %v3291
        %v3418 = vmul.f32 %v2695, %v3291
        %v3419 = vmul.f32 %v2697, %v3291
        %v3420 = vmul.f32 %v2699, %v3291
        %v3421 = vmul.f32 %v2701, %v3291
        %v3422 = vmul.f32 %v2703, %v3292
        %v3423 = vmul.f32 %v2705, %v3292
        %v3424 = vmul.f32 %v2707, %v3292
        %v3425 = vmul.f32 %v2709, %v3292
        %v3426 = vmul.f32 %v2711, %v3292
        %v3427 = vmul.f32 %v2713, %v3292
        %v3428 = vmul.f32 %v2715, %v3292
        %v3429 = vmul.f32 %v2717, %v3292
        %v3430 = vmul.f32 %v2719, %v3293
        %v3431 = vmul.f32 %v2721, %v3293
        %v3432 = vmul.f32 %v2723, %v3293
        %v3433 = vmul.f32 %v2725, %v3293
        %v3434 = vmul.f32 %v2727, %v3293
        %v3435 = vmul.f32 %v2729, %v3293
        %v3436 = vmul.f32 %v2731, %v3293
        %v3437 = vmul.f32 %v2733, %v3293
        %v3438 = vmul.f32 %v2735, %v3294
        %v3439 = vmul.f32 %v2737, %v3294
        %v3440 = vmul.f32 %v2739, %v3294
        %v3441 = vmul.f32 %v2741, %v3294
        %v3442 = vmul.f32 %v2743, %v3294
        %v3443 = vmul.f32 %v2745, %v3294
        %v3444 = vmul.f32 %v2747, %v3294
        %v3445 = vmul.f32 %v2749, %v3294
        %v3446 = vmul.f32 %v2751, %v3295
        %v3447 = vmul.f32 %v2753, %v3295
        %v3448 = vmul.f32 %v2755, %v3295
        %v3449 = vmul.f32 %v2757, %v3295
        %v3450 = vmul.f32 %v2759, %v3295
        %v3451 = vmul.f32 %v2761, %v3295
        %v3452 = vmul.f32 %v2763, %v3295
        %v3453 = vmul.f32 %v2765, %v3295
        %v3454 = vmul.f32 %v2767, %v3296
        %v3455 = vmul.f32 %v2769, %v3296
        %v3456 = vmul.f32 %v2771, %v3296
        %v3457 = vmul.f32 %v2773, %v3296
        %v3458 = vmul.f32 %v2775, %v3296
        %v3459 = vmul.f32 %v2777, %v3296
        %v3460 = vmul.f32 %v2779, %v3296
        %v3461 = vmul.f32 %v2781, %v3296
        %v3462 = vmul.f32 %v2783, %v3297
        %v3463 = vmul.f32 %v2785, %v3297
        %v3464 = vmul.f32 %v2787, %v3297
        %v3465 = vmul.f32 %v2789, %v3297
        %v3466 = vmul.f32 %v2791, %v3297
        %v3467 = vmul.f32 %v2793, %v3297
        %v3468 = vmul.f32 %v2795, %v3297
        %v3469 = vmul.f32 %v2797, %v3297
        %v3470 = vmul.f32 %v2799, %v3298
        %v3471 = vmul.f32 %v2801, %v3298
        %v3472 = vmul.f32 %v2803, %v3298
        %v3473 = vmul.f32 %v2805, %v3298
        %v3474 = vmul.f32 %v2807, %v3298
        %v3475 = vmul.f32 %v2809, %v3298
        %v3476 = vmul.f32 %v2811, %v3298
        %v3477 = vmul.f32 %v2813, %v3298
        %v3478 = vmul.f32 %v2815, %v3299
        %v3479 = vmul.f32 %v2817, %v3299
        %v3480 = vmul.f32 %v2819, %v3299
        %v3481 = vmul.f32 %v2821, %v3299
        %v3482 = vmul.f32 %v2823, %v3299
        %v3483 = vmul.f32 %v2825, %v3299
        %v3484 = vmul.f32 %v2827, %v3299
        %v3485 = vmul.f32 %v2829, %v3299
        %v3486 = vmul.f32 %v2831, %v3300
        %v3487 = vmul.f32 %v2833, %v3300
        %v3488 = vmul.f32 %v2835, %v3300
        %v3489 = vmul.f32 %v2837, %v3300
        %v3490 = vmul.f32 %v2839, %v3300
        %v3491 = vmul.f32 %v2841, %v3300
        %v3492 = vmul.f32 %v2843, %v3300
        %v3493 = vmul.f32 %v2845, %v3300
        %v3494 = vmul.f32 %v2847, %v3301
        %v3495 = vmul.f32 %v2849, %v3301
        %v3496 = vmul.f32 %v2851, %v3301
        %v3497 = vmul.f32 %v2853, %v3301
        %v3498 = vmul.f32 %v2855, %v3301
        %v3499 = vmul.f32 %v2857, %v3301
        %v3500 = vmul.f32 %v2859, %v3301
        %v3501 = vmul.f32 %v2861, %v3301
        %v3502 = vmul.f32 %v2863, %v3302
        %v3503 = vmul.f32 %v2865, %v3302
        %v3504 = vmul.f32 %v2867, %v3302
        %v3505 = vmul.f32 %v2869, %v3302
        %v3506 = vmul.f32 %v2871, %v3302
        %v3507 = vmul.f32 %v2873, %v3302
        %v3508 = vmul.f32 %v2875, %v3302
        %v3509 = vmul.f32 %v2877, %v3302
        %v3510 = vmul.f32 %v2879, %v3303
        %v3511 = vmul.f32 %v2881, %v3303
        %v3512 = vmul.f32 %v2883, %v3303
        %v3513 = vmul.f32 %v2885, %v3303
        %v3514 = vmul.f32 %v2887, %v3303
        %v3515 = vmul.f32 %v2889, %v3303
        %v3516 = vmul.f32 %v2891, %v3303
        %v3517 = vmul.f32 %v2893, %v3303
        %v3518 = vmul.f32 %v2895, %v3304
        %v3519 = vmul.f32 %v2897, %v3304
        %v3520 = vmul.f32 %v2899, %v3304
        %v3521 = vmul.f32 %v2901, %v3304
        %v3522 = vmul.f32 %v2903, %v3304
        %v3523 = vmul.f32 %v2905, %v3304
        %v3524 = vmul.f32 %v2907, %v3304
        %v3525 = vmul.f32 %v2909, %v3304
        %v3526 = vmul.f32 %v2911, %v3305
        %v3527 = vmul.f32 %v2913, %v3305
        %v3528 = vmul.f32 %v2915, %v3305
        %v3529 = vmul.f32 %v2917, %v3305
        %v3530 = vmul.f32 %v2919, %v3305
        %v3531 = vmul.f32 %v2921, %v3305
        %v3532 = vmul.f32 %v2923, %v3305
        %v3533 = vmul.f32 %v2925, %v3305
        %v3534 = vmul.f32 %v2927, %v3306
        %v3535 = vmul.f32 %v2929, %v3306
        %v3536 = vmul.f32 %v2931, %v3306
        %v3537 = vmul.f32 %v2933, %v3306
        %v3538 = vmul.f32 %v2935, %v3306
        %v3539 = vmul.f32 %v2937, %v3306
        %v3540 = vmul.f32 %v2939, %v3306
        %v3541 = vmul.f32 %v2941, %v3306
        %v3542 = vmul.f32 %v2943, %v3307
        %v3543 = vmul.f32 %v2945, %v3307
        %v3544 = vmul.f32 %v2947, %v3307
        %v3545 = vmul.f32 %v2949, %v3307
        %v3546 = vmul.f32 %v2951, %v3307
        %v3547 = vmul.f32 %v2953, %v3307
        %v3548 = vmul.f32 %v2955, %v3307
        %v3549 = vmul.f32 %v2957, %v3307
        %v3550 = vmul.f32 %v2959, %v3308
        %v3551 = vmul.f32 %v2961, %v3308
        %v3552 = vmul.f32 %v2963, %v3308
        %v3553 = vmul.f32 %v2965, %v3308
        %v3554 = vmul.f32 %v2967, %v3308
        %v3555 = vmul.f32 %v2969, %v3308
        %v3556 = vmul.f32 %v2971, %v3308
        %v3557 = vmul.f32 %v2973, %v3308
        %v3558 = vmul.f32 %v2975, %v3309
        %v3559 = vmul.f32 %v2977, %v3309
        %v3560 = vmul.f32 %v2979, %v3309
        %v3561 = vmul.f32 %v2981, %v3309
        %v3562 = vmul.f32 %v2983, %v3309
        %v3563 = vmul.f32 %v2985, %v3309
        %v3564 = vmul.f32 %v2987, %v3309
        %v3565 = vmul.f32 %v2989, %v3309
        %v3566 = vmul.f32 %v3310, %v1641
        %v3567 = vmul.f32 %v3311, %v1645
        %v3568 = vmul.f32 %v3312, %v1649
        %v3569 = vmul.f32 %v3313, %v1653
        %v3570 = vmul.f32 %v3314, %v1657
        %v3571 = vmul.f32 %v3315, %v1661
        %v3572 = vmul.f32 %v3316, %v1665
        %v3573 = vmul.f32 %v3317, %v1669
        %v3574 = vmul.f32 %v3318, %v1641
        %v3575 = vmul.f32 %v3319, %v1645
        %v3576 = vmul.f32 %v3320, %v1649
        %v3577 = vmul.f32 %v3321, %v1653
        %v3578 = vmul.f32 %v3322, %v1657
        %v3579 = vmul.f32 %v3323, %v1661
        %v3580 = vmul.f32 %v3324, %v1665
        %v3581 = vmul.f32 %v3325, %v1669
        %v3582 = vmul.f32 %v3326, %v1641
        %v3583 = vmul.f32 %v3327, %v1645
        %v3584 = vmul.f32 %v3328, %v1649
        %v3585 = vmul.f32 %v3329, %v1653
        %v3586 = vmul.f32 %v3330, %v1657
        %v3587 = vmul.f32 %v3331, %v1661
        %v3588 = vmul.f32 %v3332, %v1665
        %v3589 = vmul.f32 %v3333, %v1669
        %v3590 = vmul.f32 %v3334, %v1641
        %v3591 = vmul.f32 %v3335, %v1645
        %v3592 = vmul.f32 %v3336, %v1649
        %v3593 = vmul.f32 %v3337, %v1653
        %v3594 = vmul.f32 %v3338, %v1657
        %v3595 = vmul.f32 %v3339, %v1661
        %v3596 = vmul.f32 %v3340, %v1665
        %v3597 = vmul.f32 %v3341, %v1669
        %v3598 = vmul.f32 %v3342, %v1641
        %v3599 = vmul.f32 %v3343, %v1645
        %v3600 = vmul.f32 %v3344, %v1649
        %v3601 = vmul.f32 %v3345, %v1653
        %v3602 = vmul.f32 %v3346, %v1657
        %v3603 = vmul.f32 %v3347, %v1661
        %v3604 = vmul.f32 %v3348, %v1665
        %v3605 = vmul.f32 %v3349, %v1669
        %v3606 = vmul.f32 %v3350, %v1641
        %v3607 = vmul.f32 %v3351, %v1645
        %v3608 = vmul.f32 %v3352, %v1649
        %v3609 = vmul.f32 %v3353, %v1653
        %v3610 = vmul.f32 %v3354, %v1657
        %v3611 = vmul.f32 %v3355, %v1661
        %v3612 = vmul.f32 %v3356, %v1665
        %v3613 = vmul.f32 %v3357, %v1669
        %v3614 = vmul.f32 %v3358, %v1641
        %v3615 = vmul.f32 %v3359, %v1645
        %v3616 = vmul.f32 %v3360, %v1649
        %v3617 = vmul.f32 %v3361, %v1653
        %v3618 = vmul.f32 %v3362, %v1657
        %v3619 = vmul.f32 %v3363, %v1661
        %v3620 = vmul.f32 %v3364, %v1665
        %v3621 = vmul.f32 %v3365, %v1669
        %v3622 = vmul.f32 %v3366, %v1641
        %v3623 = vmul.f32 %v3367, %v1645
        %v3624 = vmul.f32 %v3368, %v1649
        %v3625 = vmul.f32 %v3369, %v1653
        %v3626 = vmul.f32 %v3370, %v1657
        %v3627 = vmul.f32 %v3371, %v1661
        %v3628 = vmul.f32 %v3372, %v1665
        %v3629 = vmul.f32 %v3373, %v1669
        %v3630 = vmul.f32 %v3374, %v1641
        %v3631 = vmul.f32 %v3375, %v1645
        %v3632 = vmul.f32 %v3376, %v1649
        %v3633 = vmul.f32 %v3377, %v1653
        %v3634 = vmul.f32 %v3378, %v1657
        %v3635 = vmul.f32 %v3379, %v1661
        %v3636 = vmul.f32 %v3380, %v1665
        %v3637 = vmul.f32 %v3381, %v1669
        %v3638 = vmul.f32 %v3382, %v1641
        %v3639 = vmul.f32 %v3383, %v1645
        %v3640 = vmul.f32 %v3384, %v1649
        %v3641 = vmul.f32 %v3385, %v1653
        %v3642 = vmul.f32 %v3386, %v1657
        %v3643 = vmul.f32 %v3387, %v1661
        %v3644 = vmul.f32 %v3388, %v1665
        %v3645 = vmul.f32 %v3389, %v1669
        %v3646 = vmul.f32 %v3390, %v1641
        %v3647 = vmul.f32 %v3391, %v1645
        %v3648 = vmul.f32 %v3392, %v1649
        %v3649 = vmul.f32 %v3393, %v1653
        %v3650 = vmul.f32 %v3394, %v1657
        %v3651 = vmul.f32 %v3395, %v1661
        %v3652 = vmul.f32 %v3396, %v1665
        %v3653 = vmul.f32 %v3397, %v1669
        %v3654 = vmul.f32 %v3398, %v1641
        %v3655 = vmul.f32 %v3399, %v1645
        %v3656 = vmul.f32 %v3400, %v1649
        %v3657 = vmul.f32 %v3401, %v1653
        %v3658 = vmul.f32 %v3402, %v1657
        %v3659 = vmul.f32 %v3403, %v1661
        %v3660 = vmul.f32 %v3404, %v1665
        %v3661 = vmul.f32 %v3405, %v1669
        %v3662 = vmul.f32 %v3406, %v1641
        %v3663 = vmul.f32 %v3407, %v1645
        %v3664 = vmul.f32 %v3408, %v1649
        %v3665 = vmul.f32 %v3409, %v1653
        %v3666 = vmul.f32 %v3410, %v1657
        %v3667 = vmul.f32 %v3411, %v1661
        %v3668 = vmul.f32 %v3412, %v1665
        %v3669 = vmul.f32 %v3413, %v1669
        %v3670 = vmul.f32 %v3414, %v1641
        %v3671 = vmul.f32 %v3415, %v1645
        %v3672 = vmul.f32 %v3416, %v1649
        %v3673 = vmul.f32 %v3417, %v1653
        %v3674 = vmul.f32 %v3418, %v1657
        %v3675 = vmul.f32 %v3419, %v1661
        %v3676 = vmul.f32 %v3420, %v1665
        %v3677 = vmul.f32 %v3421, %v1669
        %v3678 = vmul.f32 %v3422, %v1641
        %v3679 = vmul.f32 %v3423, %v1645
        %v3680 = vmul.f32 %v3424, %v1649
        %v3681 = vmul.f32 %v3425, %v1653
        %v3682 = vmul.f32 %v3426, %v1657
        %v3683 = vmul.f32 %v3427, %v1661
        %v3684 = vmul.f32 %v3428, %v1665
        %v3685 = vmul.f32 %v3429, %v1669
        %v3686 = vmul.f32 %v3430, %v1641
        %v3687 = vmul.f32 %v3431, %v1645
        %v3688 = vmul.f32 %v3432, %v1649
        %v3689 = vmul.f32 %v3433, %v1653
        %v3690 = vmul.f32 %v3434, %v1657
        %v3691 = vmul.f32 %v3435, %v1661
        %v3692 = vmul.f32 %v3436, %v1665
        %v3693 = vmul.f32 %v3437, %v1669
        %v3694 = vmul.f32 %v3438, %v1641
        %v3695 = vmul.f32 %v3439, %v1645
        %v3696 = vmul.f32 %v3440, %v1649
        %v3697 = vmul.f32 %v3441, %v1653
        %v3698 = vmul.f32 %v3442, %v1657
        %v3699 = vmul.f32 %v3443, %v1661
        %v3700 = vmul.f32 %v3444, %v1665
        %v3701 = vmul.f32 %v3445, %v1669
        %v3702 = vmul.f32 %v3446, %v1641
        %v3703 = vmul.f32 %v3447, %v1645
        %v3704 = vmul.f32 %v3448, %v1649
        %v3705 = vmul.f32 %v3449, %v1653
        %v3706 = vmul.f32 %v3450, %v1657
        %v3707 = vmul.f32 %v3451, %v1661
        %v3708 = vmul.f32 %v3452, %v1665
        %v3709 = vmul.f32 %v3453, %v1669
        %v3710 = vmul.f32 %v3454, %v1641
        %v3711 = vmul.f32 %v3455, %v1645
        %v3712 = vmul.f32 %v3456, %v1649
        %v3713 = vmul.f32 %v3457, %v1653
        %v3714 = vmul.f32 %v3458, %v1657
        %v3715 = vmul.f32 %v3459, %v1661
        %v3716 = vmul.f32 %v3460, %v1665
        %v3717 = vmul.f32 %v3461, %v1669
        %v3718 = vmul.f32 %v3462, %v1641
        %v3719 = vmul.f32 %v3463, %v1645
        %v3720 = vmul.f32 %v3464, %v1649
        %v3721 = vmul.f32 %v3465, %v1653
        %v3722 = vmul.f32 %v3466, %v1657
        %v3723 = vmul.f32 %v3467, %v1661
        %v3724 = vmul.f32 %v3468, %v1665
        %v3725 = vmul.f32 %v3469, %v1669
        %v3726 = vmul.f32 %v3470, %v1641
        %v3727 = vmul.f32 %v3471, %v1645
        %v3728 = vmul.f32 %v3472, %v1649
        %v3729 = vmul.f32 %v3473, %v1653
        %v3730 = vmul.f32 %v3474, %v1657
        %v3731 = vmul.f32 %v3475, %v1661
        %v3732 = vmul.f32 %v3476, %v1665
        %v3733 = vmul.f32 %v3477, %v1669
        %v3734 = vmul.f32 %v3478, %v1641
        %v3735 = vmul.f32 %v3479, %v1645
        %v3736 = vmul.f32 %v3480, %v1649
        %v3737 = vmul.f32 %v3481, %v1653
        %v3738 = vmul.f32 %v3482, %v1657
        %v3739 = vmul.f32 %v3483, %v1661
        %v3740 = vmul.f32 %v3484, %v1665
        %v3741 = vmul.f32 %v3485, %v1669
        %v3742 = vmul.f32 %v3486, %v1641
        %v3743 = vmul.f32 %v3487, %v1645
        %v3744 = vmul.f32 %v3488, %v1649
        %v3745 = vmul.f32 %v3489, %v1653
        %v3746 = vmul.f32 %v3490, %v1657
        %v3747 = vmul.f32 %v3491, %v1661
        %v3748 = vmul.f32 %v3492, %v1665
        %v3749 = vmul.f32 %v3493, %v1669
        %v3750 = vmul.f32 %v3494, %v1641
        %v3751 = vmul.f32 %v3495, %v1645
        %v3752 = vmul.f32 %v3496, %v1649
        %v3753 = vmul.f32 %v3497, %v1653
        %v3754 = vmul.f32 %v3498, %v1657
        %v3755 = vmul.f32 %v3499, %v1661
        %v3756 = vmul.f32 %v3500, %v1665
        %v3757 = vmul.f32 %v3501, %v1669
        %v3758 = vmul.f32 %v3502, %v1641
        %v3759 = vmul.f32 %v3503, %v1645
        %v3760 = vmul.f32 %v3504, %v1649
        %v3761 = vmul.f32 %v3505, %v1653
        %v3762 = vmul.f32 %v3506, %v1657
        %v3763 = vmul.f32 %v3507, %v1661
        %v3764 = vmul.f32 %v3508, %v1665
        %v3765 = vmul.f32 %v3509, %v1669
        %v3766 = vmul.f32 %v3510, %v1641
        %v3767 = vmul.f32 %v3511, %v1645
        %v3768 = vmul.f32 %v3512, %v1649
        %v3769 = vmul.f32 %v3513, %v1653
        %v3770 = vmul.f32 %v3514, %v1657
        %v3771 = vmul.f32 %v3515, %v1661
        %v3772 = vmul.f32 %v3516, %v1665
        %v3773 = vmul.f32 %v3517, %v1669
        %v3774 = vmul.f32 %v3518, %v1641
        %v3775 = vmul.f32 %v3519, %v1645
        %v3776 = vmul.f32 %v3520, %v1649
        %v3777 = vmul.f32 %v3521, %v1653
        %v3778 = vmul.f32 %v3522, %v1657
        %v3779 = vmul.f32 %v3523, %v1661
        %v3780 = vmul.f32 %v3524, %v1665
        %v3781 = vmul.f32 %v3525, %v1669
        %v3782 = vmul.f32 %v3526, %v1641
        %v3783 = vmul.f32 %v3527, %v1645
        %v3784 = vmul.f32 %v3528, %v1649
        %v3785 = vmul.f32 %v3529, %v1653
        %v3786 = vmul.f32 %v3530, %v1657
        %v3787 = vmul.f32 %v3531, %v1661
        %v3788 = vmul.f32 %v3532, %v1665
        %v3789 = vmul.f32 %v3533, %v1669
        %v3790 = vmul.f32 %v3534, %v1641
        %v3791 = vmul.f32 %v3535, %v1645
        %v3792 = vmul.f32 %v3536, %v1649
        %v3793 = vmul.f32 %v3537, %v1653
        %v3794 = vmul.f32 %v3538, %v1657
        %v3795 = vmul.f32 %v3539, %v1661
        %v3796 = vmul.f32 %v3540, %v1665
        %v3797 = vmul.f32 %v3541, %v1669
        %v3798 = vmul.f32 %v3542, %v1641
        %v3799 = vmul.f32 %v3543, %v1645
        %v3800 = vmul.f32 %v3544, %v1649
        %v3801 = vmul.f32 %v3545, %v1653
        %v3802 = vmul.f32 %v3546, %v1657
        %v3803 = vmul.f32 %v3547, %v1661
        %v3804 = vmul.f32 %v3548, %v1665
        %v3805 = vmul.f32 %v3549, %v1669
        %v3806 = vmul.f32 %v3550, %v1641
        %v3807 = vmul.f32 %v3551, %v1645
        %v3808 = vmul.f32 %v3552, %v1649
        %v3809 = vmul.f32 %v3553, %v1653
        %v3810 = vmul.f32 %v3554, %v1657
        %v3811 = vmul.f32 %v3555, %v1661
        %v3812 = vmul.f32 %v3556, %v1665
        %v3813 = vmul.f32 %v3557, %v1669
        %v3814 = vmul.f32 %v3558, %v1641
        %v3815 = vmul.f32 %v3559, %v1645
        %v3816 = vmul.f32 %v3560, %v1649
        %v3817 = vmul.f32 %v3561, %v1653
        %v3818 = vmul.f32 %v3562, %v1657
        %v3819 = vmul.f32 %v3563, %v1661
        %v3820 = vmul.f32 %v3564, %v1665
        %v3821 = vmul.f32 %v3565, %v1669
        %v3822 = vmax.f32 %v3566, 1e-08
        %v3823 = vmax.f32 %v3567, 1e-08
        %v3824 = vmax.f32 %v3568, 1e-08
        %v3825 = vmax.f32 %v3569, 1e-08
        %v3826 = vmax.f32 %v3570, 1e-08
        %v3827 = vmax.f32 %v3571, 1e-08
        %v3828 = vmax.f32 %v3572, 1e-08
        %v3829 = vmax.f32 %v3573, 1e-08
        %v3830 = vmax.f32 %v3574, 1e-08
        %v3831 = vmax.f32 %v3575, 1e-08
        %v3832 = vmax.f32 %v3576, 1e-08
        %v3833 = vmax.f32 %v3577, 1e-08
        %v3834 = vmax.f32 %v3578, 1e-08
        %v3835 = vmax.f32 %v3579, 1e-08
        %v3836 = vmax.f32 %v3580, 1e-08
        %v3837 = vmax.f32 %v3581, 1e-08
        %v3838 = vmax.f32 %v3582, 1e-08
        %v3839 = vmax.f32 %v3583, 1e-08
        %v3840 = vmax.f32 %v3584, 1e-08
        %v3841 = vmax.f32 %v3585, 1e-08
        %v3842 = vmax.f32 %v3586, 1e-08
        %v3843 = vmax.f32 %v3587, 1e-08
        %v3844 = vmax.f32 %v3588, 1e-08
        %v3845 = vmax.f32 %v3589, 1e-08
        %v3846 = vmax.f32 %v3590, 1e-08
        %v3847 = vmax.f32 %v3591, 1e-08
        %v3848 = vmax.f32 %v3592, 1e-08
        %v3849 = vmax.f32 %v3593, 1e-08
        %v3850 = vmax.f32 %v3594, 1e-08
        %v3851 = vmax.f32 %v3595, 1e-08
        %v3852 = vmax.f32 %v3596, 1e-08
        %v3853 = vmax.f32 %v3597, 1e-08
        %v3854 = vmax.f32 %v3598, 1e-08
        %v3855 = vmax.f32 %v3599, 1e-08
        %v3856 = vmax.f32 %v3600, 1e-08
        %v3857 = vmax.f32 %v3601, 1e-08
        %v3858 = vmax.f32 %v3602, 1e-08
        %v3859 = vmax.f32 %v3603, 1e-08
        %v3860 = vmax.f32 %v3604, 1e-08
        %v3861 = vmax.f32 %v3605, 1e-08
        %v3862 = vmax.f32 %v3606, 1e-08
        %v3863 = vmax.f32 %v3607, 1e-08
        %v3864 = vmax.f32 %v3608, 1e-08
        %v3865 = vmax.f32 %v3609, 1e-08
        %v3866 = vmax.f32 %v3610, 1e-08
        %v3867 = vmax.f32 %v3611, 1e-08
        %v3868 = vmax.f32 %v3612, 1e-08
        %v3869 = vmax.f32 %v3613, 1e-08
        %v3870 = vmax.f32 %v3614, 1e-08
        %v3871 = vmax.f32 %v3615, 1e-08
        %v3872 = vmax.f32 %v3616, 1e-08
        %v3873 = vmax.f32 %v3617, 1e-08
        %v3874 = vmax.f32 %v3618, 1e-08
        %v3875 = vmax.f32 %v3619, 1e-08
        %v3876 = vmax.f32 %v3620, 1e-08
        %v3877 = vmax.f32 %v3621, 1e-08
        %v3878 = vmax.f32 %v3622, 1e-08
        %v3879 = vmax.f32 %v3623, 1e-08
        %v3880 = vmax.f32 %v3624, 1e-08
        %v3881 = vmax.f32 %v3625, 1e-08
        %v3882 = vmax.f32 %v3626, 1e-08
        %v3883 = vmax.f32 %v3627, 1e-08
        %v3884 = vmax.f32 %v3628, 1e-08
        %v3885 = vmax.f32 %v3629, 1e-08
        %v3886 = vmax.f32 %v3630, 1e-08
        %v3887 = vmax.f32 %v3631, 1e-08
        %v3888 = vmax.f32 %v3632, 1e-08
        %v3889 = vmax.f32 %v3633, 1e-08
        %v3890 = vmax.f32 %v3634, 1e-08
        %v3891 = vmax.f32 %v3635, 1e-08
        %v3892 = vmax.f32 %v3636, 1e-08
        %v3893 = vmax.f32 %v3637, 1e-08
        %v3894 = vmax.f32 %v3638, 1e-08
        %v3895 = vmax.f32 %v3639, 1e-08
        %v3896 = vmax.f32 %v3640, 1e-08
        %v3897 = vmax.f32 %v3641, 1e-08
        %v3898 = vmax.f32 %v3642, 1e-08
        %v3899 = vmax.f32 %v3643, 1e-08
        %v3900 = vmax.f32 %v3644, 1e-08
        %v3901 = vmax.f32 %v3645, 1e-08
        %v3902 = vmax.f32 %v3646, 1e-08
        %v3903 = vmax.f32 %v3647, 1e-08
        %v3904 = vmax.f32 %v3648, 1e-08
        %v3905 = vmax.f32 %v3649, 1e-08
        %v3906 = vmax.f32 %v3650, 1e-08
        %v3907 = vmax.f32 %v3651, 1e-08
        %v3908 = vmax.f32 %v3652, 1e-08
        %v3909 = vmax.f32 %v3653, 1e-08
        %v3910 = vmax.f32 %v3654, 1e-08
        %v3911 = vmax.f32 %v3655, 1e-08
        %v3912 = vmax.f32 %v3656, 1e-08
        %v3913 = vmax.f32 %v3657, 1e-08
        %v3914 = vmax.f32 %v3658, 1e-08
        %v3915 = vmax.f32 %v3659, 1e-08
        %v3916 = vmax.f32 %v3660, 1e-08
        %v3917 = vmax.f32 %v3661, 1e-08
        %v3918 = vmax.f32 %v3662, 1e-08
        %v3919 = vmax.f32 %v3663, 1e-08
        %v3920 = vmax.f32 %v3664, 1e-08
        %v3921 = vmax.f32 %v3665, 1e-08
        %v3922 = vmax.f32 %v3666, 1e-08
        %v3923 = vmax.f32 %v3667, 1e-08
        %v3924 = vmax.f32 %v3668, 1e-08
        %v3925 = vmax.f32 %v3669, 1e-08
        %v3926 = vmax.f32 %v3670, 1e-08
        %v3927 = vmax.f32 %v3671, 1e-08
        %v3928 = vmax.f32 %v3672, 1e-08
        %v3929 = vmax.f32 %v3673, 1e-08
        %v3930 = vmax.f32 %v3674, 1e-08
        %v3931 = vmax.f32 %v3675, 1e-08
        %v3932 = vmax.f32 %v3676, 1e-08
        %v3933 = vmax.f32 %v3677, 1e-08
        %v3934 = vmax.f32 %v3678, 1e-08
        %v3935 = vmax.f32 %v3679, 1e-08
        %v3936 = vmax.f32 %v3680, 1e-08
        %v3937 = vmax.f32 %v3681, 1e-08
        %v3938 = vmax.f32 %v3682, 1e-08
        %v3939 = vmax.f32 %v3683, 1e-08
        %v3940 = vmax.f32 %v3684, 1e-08
        %v3941 = vmax.f32 %v3685, 1e-08
        %v3942 = vmax.f32 %v3686, 1e-08
        %v3943 = vmax.f32 %v3687, 1e-08
        %v3944 = vmax.f32 %v3688, 1e-08
        %v3945 = vmax.f32 %v3689, 1e-08
        %v3946 = vmax.f32 %v3690, 1e-08
        %v3947 = vmax.f32 %v3691, 1e-08
        %v3948 = vmax.f32 %v3692, 1e-08
        %v3949 = vmax.f32 %v3693, 1e-08
        %v3950 = vmax.f32 %v3694, 1e-08
        %v3951 = vmax.f32 %v3695, 1e-08
        %v3952 = vmax.f32 %v3696, 1e-08
        %v3953 = vmax.f32 %v3697, 1e-08
        %v3954 = vmax.f32 %v3698, 1e-08
        %v3955 = vmax.f32 %v3699, 1e-08
        %v3956 = vmax.f32 %v3700, 1e-08
        %v3957 = vmax.f32 %v3701, 1e-08
        %v3958 = vmax.f32 %v3702, 1e-08
        %v3959 = vmax.f32 %v3703, 1e-08
        %v3960 = vmax.f32 %v3704, 1e-08
        %v3961 = vmax.f32 %v3705, 1e-08
        %v3962 = vmax.f32 %v3706, 1e-08
        %v3963 = vmax.f32 %v3707, 1e-08
        %v3964 = vmax.f32 %v3708, 1e-08
        %v3965 = vmax.f32 %v3709, 1e-08
        %v3966 = vmax.f32 %v3710, 1e-08
        %v3967 = vmax.f32 %v3711, 1e-08
        %v3968 = vmax.f32 %v3712, 1e-08
        %v3969 = vmax.f32 %v3713, 1e-08
        %v3970 = vmax.f32 %v3714, 1e-08
        %v3971 = vmax.f32 %v3715, 1e-08
        %v3972 = vmax.f32 %v3716, 1e-08
        %v3973 = vmax.f32 %v3717, 1e-08
        %v3974 = vmax.f32 %v3718, 1e-08
        %v3975 = vmax.f32 %v3719, 1e-08
        %v3976 = vmax.f32 %v3720, 1e-08
        %v3977 = vmax.f32 %v3721, 1e-08
        %v3978 = vmax.f32 %v3722, 1e-08
        %v3979 = vmax.f32 %v3723, 1e-08
        %v3980 = vmax.f32 %v3724, 1e-08
        %v3981 = vmax.f32 %v3725, 1e-08
        %v3982 = vmax.f32 %v3726, 1e-08
        %v3983 = vmax.f32 %v3727, 1e-08
        %v3984 = vmax.f32 %v3728, 1e-08
        %v3985 = vmax.f32 %v3729, 1e-08
        %v3986 = vmax.f32 %v3730, 1e-08
        %v3987 = vmax.f32 %v3731, 1e-08
        %v3988 = vmax.f32 %v3732, 1e-08
        %v3989 = vmax.f32 %v3733, 1e-08
        %v3990 = vmax.f32 %v3734, 1e-08
        %v3991 = vmax.f32 %v3735, 1e-08
        %v3992 = vmax.f32 %v3736, 1e-08
        %v3993 = vmax.f32 %v3737, 1e-08
        %v3994 = vmax.f32 %v3738, 1e-08
        %v3995 = vmax.f32 %v3739, 1e-08
        %v3996 = vmax.f32 %v3740, 1e-08
        %v3997 = vmax.f32 %v3741, 1e-08
        %v3998 = vmax.f32 %v3742, 1e-08
        %v3999 = vmax.f32 %v3743, 1e-08
        %v4000 = vmax.f32 %v3744, 1e-08
        %v4001 = vmax.f32 %v3745, 1e-08
        %v4002 = vmax.f32 %v3746, 1e-08
        %v4003 = vmax.f32 %v3747, 1e-08
        %v4004 = vmax.f32 %v3748, 1e-08
        %v4005 = vmax.f32 %v3749, 1e-08
        %v4006 = vmax.f32 %v3750, 1e-08
        %v4007 = vmax.f32 %v3751, 1e-08
        %v4008 = vmax.f32 %v3752, 1e-08
        %v4009 = vmax.f32 %v3753, 1e-08
        %v4010 = vmax.f32 %v3754, 1e-08
        %v4011 = vmax.f32 %v3755, 1e-08
        %v4012 = vmax.f32 %v3756, 1e-08
        %v4013 = vmax.f32 %v3757, 1e-08
        %v4014 = vmax.f32 %v3758, 1e-08
        %v4015 = vmax.f32 %v3759, 1e-08
        %v4016 = vmax.f32 %v3760, 1e-08
        %v4017 = vmax.f32 %v3761, 1e-08
        %v4018 = vmax.f32 %v3762, 1e-08
        %v4019 = vmax.f32 %v3763, 1e-08
        %v4020 = vmax.f32 %v3764, 1e-08
        %v4021 = vmax.f32 %v3765, 1e-08
        %v4022 = vmax.f32 %v3766, 1e-08
        %v4023 = vmax.f32 %v3767, 1e-08
        %v4024 = vmax.f32 %v3768, 1e-08
        %v4025 = vmax.f32 %v3769, 1e-08
        %v4026 = vmax.f32 %v3770, 1e-08
        %v4027 = vmax.f32 %v3771, 1e-08
        %v4028 = vmax.f32 %v3772, 1e-08
        %v4029 = vmax.f32 %v3773, 1e-08
        %v4030 = vmax.f32 %v3774, 1e-08
        %v4031 = vmax.f32 %v3775, 1e-08
        %v4032 = vmax.f32 %v3776, 1e-08
        %v4033 = vmax.f32 %v3777, 1e-08
        %v4034 = vmax.f32 %v3778, 1e-08
        %v4035 = vmax.f32 %v3779, 1e-08
        %v4036 = vmax.f32 %v3780, 1e-08
        %v4037 = vmax.f32 %v3781, 1e-08
        %v4038 = vmax.f32 %v3782, 1e-08
        %v4039 = vmax.f32 %v3783, 1e-08
        %v4040 = vmax.f32 %v3784, 1e-08
        %v4041 = vmax.f32 %v3785, 1e-08
        %v4042 = vmax.f32 %v3786, 1e-08
        %v4043 = vmax.f32 %v3787, 1e-08
        %v4044 = vmax.f32 %v3788, 1e-08
        %v4045 = vmax.f32 %v3789, 1e-08
        %v4046 = vmax.f32 %v3790, 1e-08
        %v4047 = vmax.f32 %v3791, 1e-08
        %v4048 = vmax.f32 %v3792, 1e-08
        %v4049 = vmax.f32 %v3793, 1e-08
        %v4050 = vmax.f32 %v3794, 1e-08
        %v4051 = vmax.f32 %v3795, 1e-08
        %v4052 = vmax.f32 %v3796, 1e-08
        %v4053 = vmax.f32 %v3797, 1e-08
        %v4054 = vmax.f32 %v3798, 1e-08
        %v4055 = vmax.f32 %v3799, 1e-08
        %v4056 = vmax.f32 %v3800, 1e-08
        %v4057 = vmax.f32 %v3801, 1e-08
        %v4058 = vmax.f32 %v3802, 1e-08
        %v4059 = vmax.f32 %v3803, 1e-08
        %v4060 = vmax.f32 %v3804, 1e-08
        %v4061 = vmax.f32 %v3805, 1e-08
        %v4062 = vmax.f32 %v3806, 1e-08
        %v4063 = vmax.f32 %v3807, 1e-08
        %v4064 = vmax.f32 %v3808, 1e-08
        %v4065 = vmax.f32 %v3809, 1e-08
        %v4066 = vmax.f32 %v3810, 1e-08
        %v4067 = vmax.f32 %v3811, 1e-08
        %v4068 = vmax.f32 %v3812, 1e-08
        %v4069 = vmax.f32 %v3813, 1e-08
        %v4070 = vmax.f32 %v3814, 1e-08
        %v4071 = vmax.f32 %v3815, 1e-08
        %v4072 = vmax.f32 %v3816, 1e-08
        %v4073 = vmax.f32 %v3817, 1e-08
        %v4074 = vmax.f32 %v3818, 1e-08
        %v4075 = vmax.f32 %v3819, 1e-08
        %v4076 = vmax.f32 %v3820, 1e-08
        %v4077 = vmax.f32 %v3821, 1e-08
        %v4078 = vpack.c.bf16 %v3830, %v3822
        %v4079 = vpack.c.bf16 %v3831, %v3823
        %v4080 = vpack.c.bf16 %v3832, %v3824
        %v4081 = vpack.c.bf16 %v3833, %v3825
        %v4082 = vpack.c.bf16 %v3834, %v3826
        %v4083 = vpack.c.bf16 %v3835, %v3827
        %v4084 = vpack.c.bf16 %v3836, %v3828
        %v4085 = vpack.c.bf16 %v3837, %v3829
        %v4086 = vpack.c.bf16 %v3846, %v3838
        %v4087 = vpack.c.bf16 %v3847, %v3839
        %v4088 = vpack.c.bf16 %v3848, %v3840
        %v4089 = vpack.c.bf16 %v3849, %v3841
        %v4090 = vpack.c.bf16 %v3850, %v3842
        %v4091 = vpack.c.bf16 %v3851, %v3843
        %v4092 = vpack.c.bf16 %v3852, %v3844
        %v4093 = vpack.c.bf16 %v3853, %v3845
        %v4094 = vpack.c.bf16 %v3862, %v3854
        %v4095 = vpack.c.bf16 %v3863, %v3855
        %v4096 = vpack.c.bf16 %v3864, %v3856
        %v4097 = vpack.c.bf16 %v3865, %v3857
        %v4098 = vpack.c.bf16 %v3866, %v3858
        %v4099 = vpack.c.bf16 %v3867, %v3859
        %v4100 = vpack.c.bf16 %v3868, %v3860
        %v4101 = vpack.c.bf16 %v3869, %v3861
        %v4102 = vpack.c.bf16 %v3878, %v3870
        %v4103 = vpack.c.bf16 %v3879, %v3871
        %v4104 = vpack.c.bf16 %v3880, %v3872
        %v4105 = vpack.c.bf16 %v3881, %v3873
        %v4106 = vpack.c.bf16 %v3882, %v3874
        %v4107 = vpack.c.bf16 %v3883, %v3875
        %v4108 = vpack.c.bf16 %v3884, %v3876
        %v4109 = vpack.c.bf16 %v3885, %v3877
        %v4110 = vpack.c.bf16 %v3894, %v3886
        %v4111 = vpack.c.bf16 %v3895, %v3887
        %v4112 = vpack.c.bf16 %v3896, %v3888
        %v4113 = vpack.c.bf16 %v3897, %v3889
        %v4114 = vpack.c.bf16 %v3898, %v3890
        %v4115 = vpack.c.bf16 %v3899, %v3891
        %v4116 = vpack.c.bf16 %v3900, %v3892
        %v4117 = vpack.c.bf16 %v3901, %v3893
        %v4118 = vpack.c.bf16 %v3910, %v3902
        %v4119 = vpack.c.bf16 %v3911, %v3903
        %v4120 = vpack.c.bf16 %v3912, %v3904
        %v4121 = vpack.c.bf16 %v3913, %v3905
        %v4122 = vpack.c.bf16 %v3914, %v3906
        %v4123 = vpack.c.bf16 %v3915, %v3907
        %v4124 = vpack.c.bf16 %v3916, %v3908
        %v4125 = vpack.c.bf16 %v3917, %v3909
        %v4126 = vpack.c.bf16 %v3926, %v3918
        %v4127 = vpack.c.bf16 %v3927, %v3919
        %v4128 = vpack.c.bf16 %v3928, %v3920
        %v4129 = vpack.c.bf16 %v3929, %v3921
        %v4130 = vpack.c.bf16 %v3930, %v3922
        %v4131 = vpack.c.bf16 %v3931, %v3923
        %v4132 = vpack.c.bf16 %v3932, %v3924
        %v4133 = vpack.c.bf16 %v3933, %v3925
        %v4134 = vpack.c.bf16 %v3942, %v3934
        %v4135 = vpack.c.bf16 %v3943, %v3935
        %v4136 = vpack.c.bf16 %v3944, %v3936
        %v4137 = vpack.c.bf16 %v3945, %v3937
        %v4138 = vpack.c.bf16 %v3946, %v3938
        %v4139 = vpack.c.bf16 %v3947, %v3939
        %v4140 = vpack.c.bf16 %v3948, %v3940
        %v4141 = vpack.c.bf16 %v3949, %v3941
        %v4142 = vpack.c.bf16 %v3958, %v3950
        %v4143 = vpack.c.bf16 %v3959, %v3951
        %v4144 = vpack.c.bf16 %v3960, %v3952
        %v4145 = vpack.c.bf16 %v3961, %v3953
        %v4146 = vpack.c.bf16 %v3962, %v3954
        %v4147 = vpack.c.bf16 %v3963, %v3955
        %v4148 = vpack.c.bf16 %v3964, %v3956
        %v4149 = vpack.c.bf16 %v3965, %v3957
        %v4150 = vpack.c.bf16 %v3974, %v3966
        %v4151 = vpack.c.bf16 %v3975, %v3967
        %v4152 = vpack.c.bf16 %v3976, %v3968
        %v4153 = vpack.c.bf16 %v3977, %v3969
        %v4154 = vpack.c.bf16 %v3978, %v3970
        %v4155 = vpack.c.bf16 %v3979, %v3971
        %v4156 = vpack.c.bf16 %v3980, %v3972
        %v4157 = vpack.c.bf16 %v3981, %v3973
        %v4158 = vpack.c.bf16 %v3990, %v3982
        %v4159 = vpack.c.bf16 %v3991, %v3983
        %v4160 = vpack.c.bf16 %v3992, %v3984
        %v4161 = vpack.c.bf16 %v3993, %v3985
        %v4162 = vpack.c.bf16 %v3994, %v3986
        %v4163 = vpack.c.bf16 %v3995, %v3987
        %v4164 = vpack.c.bf16 %v3996, %v3988
        %v4165 = vpack.c.bf16 %v3997, %v3989
        %v4166 = vpack.c.bf16 %v4006, %v3998
        %v4167 = vpack.c.bf16 %v4007, %v3999
        %v4168 = vpack.c.bf16 %v4008, %v4000
        %v4169 = vpack.c.bf16 %v4009, %v4001
        %v4170 = vpack.c.bf16 %v4010, %v4002
        %v4171 = vpack.c.bf16 %v4011, %v4003
        %v4172 = vpack.c.bf16 %v4012, %v4004
        %v4173 = vpack.c.bf16 %v4013, %v4005
        %v4174 = vpack.c.bf16 %v4022, %v4014
        %v4175 = vpack.c.bf16 %v4023, %v4015
        %v4176 = vpack.c.bf16 %v4024, %v4016
        %v4177 = vpack.c.bf16 %v4025, %v4017
        %v4178 = vpack.c.bf16 %v4026, %v4018
        %v4179 = vpack.c.bf16 %v4027, %v4019
        %v4180 = vpack.c.bf16 %v4028, %v4020
        %v4181 = vpack.c.bf16 %v4029, %v4021
        %v4182 = vpack.c.bf16 %v4038, %v4030
        %v4183 = vpack.c.bf16 %v4039, %v4031
        %v4184 = vpack.c.bf16 %v4040, %v4032
        %v4185 = vpack.c.bf16 %v4041, %v4033
        %v4186 = vpack.c.bf16 %v4042, %v4034
        %v4187 = vpack.c.bf16 %v4043, %v4035
        %v4188 = vpack.c.bf16 %v4044, %v4036
        %v4189 = vpack.c.bf16 %v4045, %v4037
        %v4190 = vpack.c.bf16 %v4054, %v4046
        %v4191 = vpack.c.bf16 %v4055, %v4047
        %v4192 = vpack.c.bf16 %v4056, %v4048
        %v4193 = vpack.c.bf16 %v4057, %v4049
        %v4194 = vpack.c.bf16 %v4058, %v4050
        %v4195 = vpack.c.bf16 %v4059, %v4051
        %v4196 = vpack.c.bf16 %v4060, %v4052
        %v4197 = vpack.c.bf16 %v4061, %v4053
        %v4198 = vpack.c.bf16 %v4070, %v4062
        %v4199 = vpack.c.bf16 %v4071, %v4063
        %v4200 = vpack.c.bf16 %v4072, %v4064
        %v4201 = vpack.c.bf16 %v4073, %v4065
        %v4202 = vpack.c.bf16 %v4074, %v4066
        %v4203 = vpack.c.bf16 %v4075, %v4067
        %v4204 = vpack.c.bf16 %v4076, %v4068
        %v4205 = vpack.c.bf16 %v4077, %v4069
        %v4206 = vld [vmem:[%s300] sm:$0xf]
        %v4207 = vld [vmem:[%s300 + $0x4] sm:$0xf]
        %v4208 = vld [vmem:[%s300 + $0x8] sm:$0xf]
        %v4209 = vld [vmem:[%s300 + $0xc] sm:$0xf]
        %v4210 = vld [vmem:[%s300 + $0x10] sm:$0xf]
        %v4211 = vld [vmem:[%s300 + $0x14] sm:$0xf]
        %v4212 = vld [vmem:[%s300 + $0x18] sm:$0xf]
        %v4213 = vld [vmem:[%s300 + $0x1c] sm:$0xf]
        %v4214 = vld [vmem:[%s300 + $0x20] sm:$0xf]
        %v4215 = vld [vmem:[%s300 + $0x24] sm:$0xf]
        %v4216 = vld [vmem:[%s300 + $0x28] sm:$0xf]
        %v4217 = vld [vmem:[%s300 + $0x2c] sm:$0xf]
        %v4218 = vld [vmem:[%s300 + $0x30] sm:$0xf]
        %v4219 = vld [vmem:[%s300 + $0x34] sm:$0xf]
        %v4220 = vld [vmem:[%s300 + $0x38] sm:$0xf]
        %v4221 = vld [vmem:[%s300 + $0x3c] sm:$0xf]
        %v4222 = vld [vmem:[%s300 + $0x40] sm:$0xf]
        %v4223 = vld [vmem:[%s300 + $0x44] sm:$0xf]
        %v4224 = vld [vmem:[%s300 + $0x48] sm:$0xf]
        %v4225 = vld [vmem:[%s300 + $0x4c] sm:$0xf]
        %v4226 = vld [vmem:[%s300 + $0x50] sm:$0xf]
        %v4227 = vld [vmem:[%s300 + $0x54] sm:$0xf]
        %v4228 = vld [vmem:[%s300 + $0x58] sm:$0xf]
        %v4229 = vld [vmem:[%s300 + $0x5c] sm:$0xf]
        %v4230 = vld [vmem:[%s300 + $0x60] sm:$0xf]
        %v4231 = vld [vmem:[%s300 + $0x64] sm:$0xf]
        %v4232 = vld [vmem:[%s300 + $0x68] sm:$0xf]
        %v4233 = vld [vmem:[%s300 + $0x6c] sm:$0xf]
        %v4234 = vld [vmem:[%s300 + $0x70] sm:$0xf]
        %v4235 = vld [vmem:[%s300 + $0x74] sm:$0xf]
        %v4236 = vld [vmem:[%s300 + $0x78] sm:$0xf]
        %v4237 = vld [vmem:[%s300 + $0x7c] sm:$0xf]
        %v4238 = vld [vmem:[%s300 + $0x80] sm:$0xf]
        %v4239 = vld [vmem:[%s300 + $0x84] sm:$0xf]
        %v4240 = vld [vmem:[%s300 + $0x88] sm:$0xf]
        %v4241 = vld [vmem:[%s300 + $0x8c] sm:$0xf]
        %v4242 = vld [vmem:[%s300 + $0x90] sm:$0xf]
        %v4243 = vld [vmem:[%s300 + $0x94] sm:$0xf]
        %v4244 = vld [vmem:[%s300 + $0x98] sm:$0xf]
        %v4245 = vld [vmem:[%s300 + $0x9c] sm:$0xf]
        %v4246 = vld [vmem:[%s300 + $0xa0] sm:$0xf]
        %v4247 = vld [vmem:[%s300 + $0xa4] sm:$0xf]
        %v4248 = vld [vmem:[%s300 + $0xa8] sm:$0xf]
        %v4249 = vld [vmem:[%s300 + $0xac] sm:$0xf]
        %v4250 = vld [vmem:[%s300 + $0xb0] sm:$0xf]
        %v4251 = vld [vmem:[%s300 + $0xb4] sm:$0xf]
        %v4252 = vld [vmem:[%s300 + $0xb8] sm:$0xf]
        %v4253 = vld [vmem:[%s300 + $0xbc] sm:$0xf]
        %v4254 = vld [vmem:[%s300 + $0xc0] sm:$0xf]
        %v4255 = vld [vmem:[%s300 + $0xc4] sm:$0xf]
        %v4256 = vld [vmem:[%s300 + $0xc8] sm:$0xf]
        %v4257 = vld [vmem:[%s300 + $0xcc] sm:$0xf]
        %v4258 = vld [vmem:[%s300 + $0xd0] sm:$0xf]
        %v4259 = vld [vmem:[%s300 + $0xd4] sm:$0xf]
        %v4260 = vld [vmem:[%s300 + $0xd8] sm:$0xf]
        %v4261 = vld [vmem:[%s300 + $0xdc] sm:$0xf]
        %v4262 = vld [vmem:[%s300 + $0xe0] sm:$0xf]
        %v4263 = vld [vmem:[%s300 + $0xe4] sm:$0xf]
        %v4264 = vld [vmem:[%s300 + $0xe8] sm:$0xf]
        %v4265 = vld [vmem:[%s300 + $0xec] sm:$0xf]
        %v4266 = vld [vmem:[%s300 + $0xf0] sm:$0xf]
        %v4267 = vld [vmem:[%s300 + $0xf4] sm:$0xf]
        %v4268 = vld [vmem:[%s300 + $0xf8] sm:$0xf]
        %v4269 = vld [vmem:[%s300 + $0xfc] sm:$0xf]
        %v4270 = vld [vmem:[%s300 + $0x100] sm:$0xf]
        %v4271 = vld [vmem:[%s300 + $0x104] sm:$0xf]
        %v4272 = vld [vmem:[%s300 + $0x108] sm:$0xf]
        %v4273 = vld [vmem:[%s300 + $0x10c] sm:$0xf]
        %v4274 = vld [vmem:[%s300 + $0x110] sm:$0xf]
        %v4275 = vld [vmem:[%s300 + $0x114] sm:$0xf]
        %v4276 = vld [vmem:[%s300 + $0x118] sm:$0xf]
        %v4277 = vld [vmem:[%s300 + $0x11c] sm:$0xf]
        %v4278 = vld [vmem:[%s300 + $0x120] sm:$0xf]
        %v4279 = vld [vmem:[%s300 + $0x124] sm:$0xf]
        %v4280 = vld [vmem:[%s300 + $0x128] sm:$0xf]
        %v4281 = vld [vmem:[%s300 + $0x12c] sm:$0xf]
        %v4282 = vld [vmem:[%s300 + $0x130] sm:$0xf]
        %v4283 = vld [vmem:[%s300 + $0x134] sm:$0xf]
        %v4284 = vld [vmem:[%s300 + $0x138] sm:$0xf]
        %v4285 = vld [vmem:[%s300 + $0x13c] sm:$0xf]
        %v4286 = vld [vmem:[%s300 + $0x140] sm:$0xf]
        %v4287 = vld [vmem:[%s300 + $0x144] sm:$0xf]
        %v4288 = vld [vmem:[%s300 + $0x148] sm:$0xf]
        %v4289 = vld [vmem:[%s300 + $0x14c] sm:$0xf]
        %v4290 = vld [vmem:[%s300 + $0x150] sm:$0xf]
        %v4291 = vld [vmem:[%s300 + $0x154] sm:$0xf]
        %v4292 = vld [vmem:[%s300 + $0x158] sm:$0xf]
        %v4293 = vld [vmem:[%s300 + $0x15c] sm:$0xf]
        %v4294 = vld [vmem:[%s300 + $0x160] sm:$0xf]
        %v4295 = vld [vmem:[%s300 + $0x164] sm:$0xf]
        %v4296 = vld [vmem:[%s300 + $0x168] sm:$0xf]
        %v4297 = vld [vmem:[%s300 + $0x16c] sm:$0xf]
        %v4298 = vld [vmem:[%s300 + $0x170] sm:$0xf]
        %v4299 = vld [vmem:[%s300 + $0x174] sm:$0xf]
        %v4300 = vld [vmem:[%s300 + $0x178] sm:$0xf]
        %v4301 = vld [vmem:[%s300 + $0x17c] sm:$0xf]
        %v4302 = vld [vmem:[%s300 + $0x180] sm:$0xf]
        %v4303 = vld [vmem:[%s300 + $0x184] sm:$0xf]
        %v4304 = vld [vmem:[%s300 + $0x188] sm:$0xf]
        %v4305 = vld [vmem:[%s300 + $0x18c] sm:$0xf]
        %v4306 = vld [vmem:[%s300 + $0x190] sm:$0xf]
        %v4307 = vld [vmem:[%s300 + $0x194] sm:$0xf]
        %v4308 = vld [vmem:[%s300 + $0x198] sm:$0xf]
        %v4309 = vld [vmem:[%s300 + $0x19c] sm:$0xf]
        %v4310 = vld [vmem:[%s300 + $0x1a0] sm:$0xf]
        %v4311 = vld [vmem:[%s300 + $0x1a4] sm:$0xf]
        %v4312 = vld [vmem:[%s300 + $0x1a8] sm:$0xf]
        %v4313 = vld [vmem:[%s300 + $0x1ac] sm:$0xf]
        %v4314 = vld [vmem:[%s300 + $0x1b0] sm:$0xf]
        %v4315 = vld [vmem:[%s300 + $0x1b4] sm:$0xf]
        %v4316 = vld [vmem:[%s300 + $0x1b8] sm:$0xf]
        %v4317 = vld [vmem:[%s300 + $0x1bc] sm:$0xf]
        %v4318 = vld [vmem:[%s300 + $0x1c0] sm:$0xf]
        %v4319 = vld [vmem:[%s300 + $0x1c4] sm:$0xf]
        %v4320 = vld [vmem:[%s300 + $0x1c8] sm:$0xf]
        %v4321 = vld [vmem:[%s300 + $0x1cc] sm:$0xf]
        %v4322 = vld [vmem:[%s300 + $0x1d0] sm:$0xf]
        %v4323 = vld [vmem:[%s300 + $0x1d4] sm:$0xf]
        %v4324 = vld [vmem:[%s300 + $0x1d8] sm:$0xf]
        %v4325 = vld [vmem:[%s300 + $0x1dc] sm:$0xf]
        %v4326 = vld [vmem:[%s300 + $0x1e0] sm:$0xf]
        %v4327 = vld [vmem:[%s300 + $0x1e4] sm:$0xf]
        %v4328 = vld [vmem:[%s300 + $0x1e8] sm:$0xf]
        %v4329 = vld [vmem:[%s300 + $0x1ec] sm:$0xf]
        %v4330 = vld [vmem:[%s300 + $0x1f0] sm:$0xf]
        %v4331 = vld [vmem:[%s300 + $0x1f4] sm:$0xf]
        %v4332 = vld [vmem:[%s300 + $0x1f8] sm:$0xf]
        %v4333 = vld [vmem:[%s300 + $0x1fc] sm:$0xf]
        %v4462 = vunpack.c.l.b16 %v4206
        %v4463 = vunpack.c.l.b16 %v4207
        %v4464 = vunpack.c.l.b16 %v4208
        %v4465 = vunpack.c.l.b16 %v4209
        %v4466 = vunpack.c.l.b16 %v4210
        %v4467 = vunpack.c.l.b16 %v4211
        %v4468 = vunpack.c.l.b16 %v4212
        %v4469 = vunpack.c.l.b16 %v4213
        %v4470 = vunpack.c.l.b16 %v4214
        %v4471 = vunpack.c.l.b16 %v4215
        %v4472 = vunpack.c.l.b16 %v4216
        %v4473 = vunpack.c.l.b16 %v4217
        %v4474 = vunpack.c.l.b16 %v4218
        %v4475 = vunpack.c.l.b16 %v4219
        %v4476 = vunpack.c.l.b16 %v4220
        %v4477 = vunpack.c.l.b16 %v4221
        %v4478 = vunpack.c.l.b16 %v4222
        %v4479 = vunpack.c.l.b16 %v4223
        %v4480 = vunpack.c.l.b16 %v4224
        %v4481 = vunpack.c.l.b16 %v4225
        %v4482 = vunpack.c.l.b16 %v4226
        %v4483 = vunpack.c.l.b16 %v4227
        %v4484 = vunpack.c.l.b16 %v4228
        %v4485 = vunpack.c.l.b16 %v4229
        %v4486 = vunpack.c.l.b16 %v4230
        %v4487 = vunpack.c.l.b16 %v4231
        %v4488 = vunpack.c.l.b16 %v4232
        %v4489 = vunpack.c.l.b16 %v4233
        %v4490 = vunpack.c.l.b16 %v4234
        %v4491 = vunpack.c.l.b16 %v4235
        %v4492 = vunpack.c.l.b16 %v4236
        %v4493 = vunpack.c.l.b16 %v4237
        %v4494 = vunpack.c.l.b16 %v4238
        %v4495 = vunpack.c.l.b16 %v4239
        %v4496 = vunpack.c.l.b16 %v4240
        %v4497 = vunpack.c.l.b16 %v4241
        %v4498 = vunpack.c.l.b16 %v4242
        %v4499 = vunpack.c.l.b16 %v4243
        %v4500 = vunpack.c.l.b16 %v4244
        %v4501 = vunpack.c.l.b16 %v4245
        %v4502 = vunpack.c.l.b16 %v4246
        %v4503 = vunpack.c.l.b16 %v4247
        %v4504 = vunpack.c.l.b16 %v4248
        %v4505 = vunpack.c.l.b16 %v4249
        %v4506 = vunpack.c.l.b16 %v4250
        %v4507 = vunpack.c.l.b16 %v4251
        %v4508 = vunpack.c.l.b16 %v4252
        %v4509 = vunpack.c.l.b16 %v4253
        %v4510 = vunpack.c.l.b16 %v4254
        %v4511 = vunpack.c.l.b16 %v4255
        %v4512 = vunpack.c.l.b16 %v4256
        %v4513 = vunpack.c.l.b16 %v4257
        %v4514 = vunpack.c.l.b16 %v4258
        %v4515 = vunpack.c.l.b16 %v4259
        %v4516 = vunpack.c.l.b16 %v4260
        %v4517 = vunpack.c.l.b16 %v4261
        %v4518 = vunpack.c.l.b16 %v4262
        %v4519 = vunpack.c.l.b16 %v4263
        %v4520 = vunpack.c.l.b16 %v4264
        %v4521 = vunpack.c.l.b16 %v4265
        %v4522 = vunpack.c.l.b16 %v4266
        %v4523 = vunpack.c.l.b16 %v4267
        %v4524 = vunpack.c.l.b16 %v4268
        %v4525 = vunpack.c.l.b16 %v4269
        %v4526 = vunpack.c.l.b16 %v4270
        %v4527 = vunpack.c.l.b16 %v4271
        %v4528 = vunpack.c.l.b16 %v4272
        %v4529 = vunpack.c.l.b16 %v4273
        %v4530 = vunpack.c.l.b16 %v4274
        %v4531 = vunpack.c.l.b16 %v4275
        %v4532 = vunpack.c.l.b16 %v4276
        %v4533 = vunpack.c.l.b16 %v4277
        %v4534 = vunpack.c.l.b16 %v4278
        %v4535 = vunpack.c.l.b16 %v4279
        %v4536 = vunpack.c.l.b16 %v4280
        %v4537 = vunpack.c.l.b16 %v4281
        %v4538 = vunpack.c.l.b16 %v4282
        %v4539 = vunpack.c.l.b16 %v4283
        %v4540 = vunpack.c.l.b16 %v4284
        %v4541 = vunpack.c.l.b16 %v4285
        %v4542 = vunpack.c.l.b16 %v4286
        %v4543 = vunpack.c.l.b16 %v4287
        %v4544 = vunpack.c.l.b16 %v4288
        %v4545 = vunpack.c.l.b16 %v4289
        %v4546 = vunpack.c.l.b16 %v4290
        %v4547 = vunpack.c.l.b16 %v4291
        %v4548 = vunpack.c.l.b16 %v4292
        %v4549 = vunpack.c.l.b16 %v4293
        %v4550 = vunpack.c.l.b16 %v4294
        %v4551 = vunpack.c.l.b16 %v4295
        %v4552 = vunpack.c.l.b16 %v4296
        %v4553 = vunpack.c.l.b16 %v4297
        %v4554 = vunpack.c.l.b16 %v4298
        %v4555 = vunpack.c.l.b16 %v4299
        %v4556 = vunpack.c.l.b16 %v4300
        %v4557 = vunpack.c.l.b16 %v4301
        %v4558 = vunpack.c.l.b16 %v4302
        %v4559 = vunpack.c.l.b16 %v4303
        %v4560 = vunpack.c.l.b16 %v4304
        %v4561 = vunpack.c.l.b16 %v4305
        %v4562 = vunpack.c.l.b16 %v4306
        %v4563 = vunpack.c.l.b16 %v4307
        %v4564 = vunpack.c.l.b16 %v4308
        %v4565 = vunpack.c.l.b16 %v4309
        %v4566 = vunpack.c.l.b16 %v4310
        %v4567 = vunpack.c.l.b16 %v4311
        %v4568 = vunpack.c.l.b16 %v4312
        %v4569 = vunpack.c.l.b16 %v4313
        %v4570 = vunpack.c.l.b16 %v4314
        %v4571 = vunpack.c.l.b16 %v4315
        %v4572 = vunpack.c.l.b16 %v4316
        %v4573 = vunpack.c.l.b16 %v4317
        %v4574 = vunpack.c.l.b16 %v4318
        %v4575 = vunpack.c.l.b16 %v4319
        %v4576 = vunpack.c.l.b16 %v4320
        %v4577 = vunpack.c.l.b16 %v4321
        %v4578 = vunpack.c.l.b16 %v4322
        %v4579 = vunpack.c.l.b16 %v4323
        %v4580 = vunpack.c.l.b16 %v4324
        %v4581 = vunpack.c.l.b16 %v4325
        %v4582 = vunpack.c.l.b16 %v4326
        %v4583 = vunpack.c.l.b16 %v4327
        %v4584 = vunpack.c.l.b16 %v4328
        %v4585 = vunpack.c.l.b16 %v4329
        %v4586 = vunpack.c.l.b16 %v4330
        %v4587 = vunpack.c.l.b16 %v4331
        %v4588 = vunpack.c.l.b16 %v4332
        %v4589 = vunpack.c.l.b16 %v4333
        %v4590 = vpack.c.b16 %v4463, %v4462
        %v4591 = vpack.c.b16 %v4465, %v4464
        %v4592 = vpack.c.b16 %v4467, %v4466
        %v4593 = vpack.c.b16 %v4469, %v4468
        %v4594 = vpack.c.b16 %v4471, %v4470
        %v4595 = vpack.c.b16 %v4473, %v4472
        %v4596 = vpack.c.b16 %v4475, %v4474
        %v4597 = vpack.c.b16 %v4477, %v4476
        %v4598 = vpack.c.b16 %v4479, %v4478
        %v4599 = vpack.c.b16 %v4481, %v4480
        %v4600 = vpack.c.b16 %v4483, %v4482
        %v4601 = vpack.c.b16 %v4485, %v4484
        %v4602 = vpack.c.b16 %v4487, %v4486
        %v4603 = vpack.c.b16 %v4489, %v4488
        %v4604 = vpack.c.b16 %v4491, %v4490
        %v4605 = vpack.c.b16 %v4493, %v4492
        %v4606 = vpack.c.b16 %v4495, %v4494
        %v4607 = vpack.c.b16 %v4497, %v4496
        %v4608 = vpack.c.b16 %v4499, %v4498
        %v4609 = vpack.c.b16 %v4501, %v4500
        %v4610 = vpack.c.b16 %v4503, %v4502
        %v4611 = vpack.c.b16 %v4505, %v4504
        %v4612 = vpack.c.b16 %v4507, %v4506
        %v4613 = vpack.c.b16 %v4509, %v4508
        %v4614 = vpack.c.b16 %v4511, %v4510
        %v4615 = vpack.c.b16 %v4513, %v4512
        %v4616 = vpack.c.b16 %v4515, %v4514
        %v4617 = vpack.c.b16 %v4517, %v4516
        %v4618 = vpack.c.b16 %v4519, %v4518
        %v4619 = vpack.c.b16 %v4521, %v4520
        %v4620 = vpack.c.b16 %v4523, %v4522
        %v4621 = vpack.c.b16 %v4525, %v4524
        %v4622 = vpack.c.b16 %v4527, %v4526
        %v4623 = vpack.c.b16 %v4529, %v4528
        %v4624 = vpack.c.b16 %v4531, %v4530
        %v4625 = vpack.c.b16 %v4533, %v4532
        %v4626 = vpack.c.b16 %v4535, %v4534
        %v4627 = vpack.c.b16 %v4537, %v4536
        %v4628 = vpack.c.b16 %v4539, %v4538
        %v4629 = vpack.c.b16 %v4541, %v4540
        %v4630 = vpack.c.b16 %v4543, %v4542
        %v4631 = vpack.c.b16 %v4545, %v4544
        %v4632 = vpack.c.b16 %v4547, %v4546
        %v4633 = vpack.c.b16 %v4549, %v4548
        %v4634 = vpack.c.b16 %v4551, %v4550
        %v4635 = vpack.c.b16 %v4553, %v4552
        %v4636 = vpack.c.b16 %v4555, %v4554
        %v4637 = vpack.c.b16 %v4557, %v4556
        %v4638 = vpack.c.b16 %v4559, %v4558
        %v4639 = vpack.c.b16 %v4561, %v4560
        %v4640 = vpack.c.b16 %v4563, %v4562
        %v4641 = vpack.c.b16 %v4565, %v4564
        %v4642 = vpack.c.b16 %v4567, %v4566
        %v4643 = vpack.c.b16 %v4569, %v4568
        %v4644 = vpack.c.b16 %v4571, %v4570
        %v4645 = vpack.c.b16 %v4573, %v4572
        %v4646 = vpack.c.b16 %v4575, %v4574
        %v4647 = vpack.c.b16 %v4577, %v4576
        %v4648 = vpack.c.b16 %v4579, %v4578
        %v4649 = vpack.c.b16 %v4581, %v4580
        %v4650 = vpack.c.b16 %v4583, %v4582
        %v4651 = vpack.c.b16 %v4585, %v4584
        %v4652 = vpack.c.b16 %v4587, %v4586
        %v4653 = vpack.c.b16 %v4589, %v4588
        %4718 = vmatprep.subr.bf16.mxu0 0
        %4719 = vmatpush1.bf16.msra.mxu0 %v4597
        %4720 = vmatprep.subr.bf16.mxu0 0
        %4721 = vmatpush1.bf16.msra.mxu0 %v4596
        %4722 = vmatprep.subr.bf16.mxu0 0
        %4723 = vmatpush1.bf16.msra.mxu0 %v4595
        %4724 = vmatprep.subr.bf16.mxu0 0
        %4725 = vmatpush1.bf16.msra.mxu0 %v4594
        %4726 = vmatprep.subr.bf16.mxu0 0
        %4727 = vmatpush1.bf16.msra.mxu0 %v4593
        %4728 = vmatprep.subr.bf16.mxu0 0
        %4729 = vmatpush1.bf16.msra.mxu0 %v4592
        %4730 = vmatprep.subr.bf16.mxu0 0
        %4731 = vmatpush1.bf16.msra.mxu0 %v4591
        %4732 = vmatprep.subr.bf16.mxu0 0
        %4733 = vmatpush1.bf16.msra.mxu0 %v4590
        %4734 = vmatprep.subr.bf16.mxu0 0
        %4735 = vmatpush2.bf16.msra.mxu0 %v4605
        %4736 = vmatprep.subr.bf16.mxu0 0
        %4737 = vmatpush2.bf16.msra.mxu0 %v4604
        %4738 = vmatprep.subr.bf16.mxu0 0
        %4739 = vmatpush2.bf16.msra.mxu0 %v4603
        %4740 = vmatprep.subr.bf16.mxu0 0
        %4741 = vmatpush2.bf16.msra.mxu0 %v4602
        %4742 = vmatprep.subr.bf16.mxu0 0
        %4743 = vmatpush2.bf16.msra.mxu0 %v4601
        %4744 = vmatprep.subr.bf16.mxu0 0
        %4745 = vmatpush2.bf16.msra.mxu0 %v4600
        %4746 = vmatprep.subr.bf16.mxu0 0
        %4747 = vmatpush2.bf16.msra.mxu0 %v4599
        %4748 = vmatprep.subr.bf16.mxu0 0
        %4749 = vmatpush2.bf16.msra.mxu0 %v4598
        %4750 = vmatprep.mubr.bf16.mxu0 %v4079
        %4751 = vmatmul.mubr.bf16.gmra.mxu0 %v4078
        %v4752 = vpop.f32.mrf.mxu0
        %v4753 = vadd.f32 0.0, %v4752
        %v4754 = vpop.f32.mrf.mxu0
        %v4755 = vpop.f32.mrf.mxu0
        %v4756 = vadd.f32 0.0, %v4755
        %v4757 = vpop.f32.mrf.mxu0
        %4758 = vmatprep.mubr.bf16.mxu0 %v4087
        %4759 = vmatmul.mubr.bf16.gmra.mxu0 %v4086
        %v4760 = vpop.f32.mrf.mxu0
        %v4761 = vadd.f32 0.0, %v4760
        %v4762 = vpop.f32.mrf.mxu0
        %v4763 = vpop.f32.mrf.mxu0
        %v4764 = vadd.f32 0.0, %v4763
        %v4765 = vpop.f32.mrf.mxu0
        %4766 = vmatprep.mubr.bf16.mxu0 %v4095
        %4767 = vmatmul.mubr.bf16.gmra.mxu0 %v4094
        %v4768 = vpop.f32.mrf.mxu0
        %v4769 = vadd.f32 0.0, %v4768
        %v4770 = vpop.f32.mrf.mxu0
        %v4771 = vpop.f32.mrf.mxu0
        %v4772 = vadd.f32 0.0, %v4771
        %v4773 = vpop.f32.mrf.mxu0
        %4774 = vmatprep.mubr.bf16.mxu0 %v4103
        %4775 = vmatmul.mubr.bf16.gmra.mxu0 %v4102
        %v4776 = vpop.f32.mrf.mxu0
        %v4777 = vadd.f32 0.0, %v4776
        %v4778 = vpop.f32.mrf.mxu0
        %v4779 = vpop.f32.mrf.mxu0
        %v4780 = vadd.f32 0.0, %v4779
        %v4781 = vpop.f32.mrf.mxu0
        %4782 = vmatprep.mubr.bf16.mxu0 %v4111
        %4783 = vmatmul.mubr.bf16.gmra.mxu0 %v4110
        %v4784 = vpop.f32.mrf.mxu0
        %v4785 = vadd.f32 0.0, %v4784
        %v4786 = vpop.f32.mrf.mxu0
        %v4787 = vpop.f32.mrf.mxu0
        %v4788 = vadd.f32 0.0, %v4787
        %v4789 = vpop.f32.mrf.mxu0
        %4790 = vmatprep.mubr.bf16.mxu0 %v4119
        %4791 = vmatmul.mubr.bf16.gmra.mxu0 %v4118
        %v4792 = vpop.f32.mrf.mxu0
        %v4793 = vadd.f32 0.0, %v4792
        %v4794 = vpop.f32.mrf.mxu0
        %v4795 = vpop.f32.mrf.mxu0
        %v4796 = vadd.f32 0.0, %v4795
        %v4797 = vpop.f32.mrf.mxu0
        %4798 = vmatprep.mubr.bf16.mxu0 %v4127
        %4799 = vmatmul.mubr.bf16.gmra.mxu0 %v4126
        %v4800 = vpop.f32.mrf.mxu0
        %v4801 = vadd.f32 0.0, %v4800
        %v4802 = vpop.f32.mrf.mxu0
        %v4803 = vpop.f32.mrf.mxu0
        %v4804 = vadd.f32 0.0, %v4803
        %v4805 = vpop.f32.mrf.mxu0
        %4806 = vmatprep.mubr.bf16.mxu0 %v4135
        %4807 = vmatmul.mubr.bf16.gmra.mxu0 %v4134
        %v4808 = vpop.f32.mrf.mxu0
        %v4809 = vadd.f32 0.0, %v4808
        %v4810 = vpop.f32.mrf.mxu0
        %v4811 = vpop.f32.mrf.mxu0
        %v4812 = vadd.f32 0.0, %v4811
        %v4813 = vpop.f32.mrf.mxu0
        %4814 = vmatprep.mubr.bf16.mxu0 %v4143
        %4815 = vmatmul.mubr.bf16.gmra.mxu0 %v4142
        %v4816 = vpop.f32.mrf.mxu0
        %v4817 = vadd.f32 0.0, %v4816
        %v4818 = vpop.f32.mrf.mxu0
        %v4819 = vpop.f32.mrf.mxu0
        %v4820 = vadd.f32 0.0, %v4819
        %v4821 = vpop.f32.mrf.mxu0
        %4822 = vmatprep.mubr.bf16.mxu0 %v4151
        %4823 = vmatmul.mubr.bf16.gmra.mxu0 %v4150
        %v4824 = vpop.f32.mrf.mxu0
        %v4825 = vadd.f32 0.0, %v4824
        %v4826 = vpop.f32.mrf.mxu0
        %v4827 = vpop.f32.mrf.mxu0
        %v4828 = vadd.f32 0.0, %v4827
        %v4829 = vpop.f32.mrf.mxu0
        %4830 = vmatprep.mubr.bf16.mxu0 %v4159
        %4831 = vmatmul.mubr.bf16.gmra.mxu0 %v4158
        %v4832 = vpop.f32.mrf.mxu0
        %v4833 = vadd.f32 0.0, %v4832
        %v4834 = vpop.f32.mrf.mxu0
        %v4835 = vpop.f32.mrf.mxu0
        %v4836 = vadd.f32 0.0, %v4835
        %v4837 = vpop.f32.mrf.mxu0
        %4838 = vmatprep.mubr.bf16.mxu0 %v4167
        %4839 = vmatmul.mubr.bf16.gmra.mxu0 %v4166
        %v4840 = vpop.f32.mrf.mxu0
        %v4841 = vadd.f32 0.0, %v4840
        %v4842 = vpop.f32.mrf.mxu0
        %v4843 = vpop.f32.mrf.mxu0
        %v4844 = vadd.f32 0.0, %v4843
        %v4845 = vpop.f32.mrf.mxu0
        %4846 = vmatprep.mubr.bf16.mxu0 %v4175
        %4847 = vmatmul.mubr.bf16.gmra.mxu0 %v4174
        %v4848 = vpop.f32.mrf.mxu0
        %v4849 = vadd.f32 0.0, %v4848
        %v4850 = vpop.f32.mrf.mxu0
        %v4851 = vpop.f32.mrf.mxu0
        %v4852 = vadd.f32 0.0, %v4851
        %v4853 = vpop.f32.mrf.mxu0
        %4854 = vmatprep.mubr.bf16.mxu0 %v4183
        %4855 = vmatmul.mubr.bf16.gmra.mxu0 %v4182
        %v4856 = vpop.f32.mrf.mxu0
        %v4857 = vadd.f32 0.0, %v4856
        %v4858 = vpop.f32.mrf.mxu0
        %v4859 = vpop.f32.mrf.mxu0
        %v4860 = vadd.f32 0.0, %v4859
        %v4861 = vpop.f32.mrf.mxu0
        %4862 = vmatprep.mubr.bf16.mxu0 %v4191
        %4863 = vmatmul.mubr.bf16.gmra.mxu0 %v4190
        %v4864 = vpop.f32.mrf.mxu0
        %v4865 = vadd.f32 0.0, %v4864
        %v4866 = vpop.f32.mrf.mxu0
        %v4867 = vpop.f32.mrf.mxu0
        %v4868 = vadd.f32 0.0, %v4867
        %v4869 = vpop.f32.mrf.mxu0
        %4870 = vmatprep.mubr.bf16.mxu0 %v4199
        %4871 = vmatmul.mubr.bf16.gmra.mxu0 %v4198
        %v4872 = vpop.f32.mrf.mxu0
        %v4873 = vadd.f32 0.0, %v4872
        %v4874 = vpop.f32.mrf.mxu0
        %v4875 = vpop.f32.mrf.mxu0
        %v4876 = vadd.f32 0.0, %v4875
        %v4877 = vpop.f32.mrf.mxu0
        %4878 = vdwg.mxu0
        %4879 = vmatprep.subr.bf16.mxu0 0
        %4880 = vmatpush1.bf16.msra.mxu0 %v4613
        %4881 = vmatprep.subr.bf16.mxu0 0
        %4882 = vmatpush1.bf16.msra.mxu0 %v4612
        %4883 = vmatprep.subr.bf16.mxu0 0
        %4884 = vmatpush1.bf16.msra.mxu0 %v4611
        %4885 = vmatprep.subr.bf16.mxu0 0
        %4886 = vmatpush1.bf16.msra.mxu0 %v4610
        %4887 = vmatprep.subr.bf16.mxu0 0
        %4888 = vmatpush1.bf16.msra.mxu0 %v4609
        %4889 = vmatprep.subr.bf16.mxu0 0
        %4890 = vmatpush1.bf16.msra.mxu0 %v4608
        %4891 = vmatprep.subr.bf16.mxu0 0
        %4892 = vmatpush1.bf16.msra.mxu0 %v4607
        %4893 = vmatprep.subr.bf16.mxu0 0
        %4894 = vmatpush1.bf16.msra.mxu0 %v4606
        %4895 = vmatprep.subr.bf16.mxu0 0
        %4896 = vmatpush2.bf16.msra.mxu0 %v4621
        %4897 = vmatprep.subr.bf16.mxu0 0
        %4898 = vmatpush2.bf16.msra.mxu0 %v4620
        %4899 = vmatprep.subr.bf16.mxu0 0
        %4900 = vmatpush2.bf16.msra.mxu0 %v4619
        %4901 = vmatprep.subr.bf16.mxu0 0
        %4902 = vmatpush2.bf16.msra.mxu0 %v4618
        %4903 = vmatprep.subr.bf16.mxu0 0
        %4904 = vmatpush2.bf16.msra.mxu0 %v4617
        %4905 = vmatprep.subr.bf16.mxu0 0
        %4906 = vmatpush2.bf16.msra.mxu0 %v4616
        %4907 = vmatprep.subr.bf16.mxu0 0
        %4908 = vmatpush2.bf16.msra.mxu0 %v4615
        %4909 = vmatprep.subr.bf16.mxu0 0
        %4910 = vmatpush2.bf16.msra.mxu0 %v4614
        %4911 = vmatprep.mubr.bf16.mxu0 %v4081
        %4912 = vmatmul.mubr.bf16.gmra.mxu0 %v4080
        %v4913 = vpop.f32.mrf.mxu0
        %v4914 = vadd.f32 %v4753, %v4913
        %v4915 = vpop.f32.mrf.mxu0
        %v4916 = vpop.f32.mrf.mxu0
        %v4917 = vadd.f32 %v4756, %v4916
        %v4918 = vpop.f32.mrf.mxu0
        %4919 = vmatprep.mubr.bf16.mxu0 %v4089
        %4920 = vmatmul.mubr.bf16.gmra.mxu0 %v4088
        %v4921 = vpop.f32.mrf.mxu0
        %v4922 = vadd.f32 %v4761, %v4921
        %v4923 = vpop.f32.mrf.mxu0
        %v4924 = vpop.f32.mrf.mxu0
        %v4925 = vadd.f32 %v4764, %v4924
        %v4926 = vpop.f32.mrf.mxu0
        %4927 = vmatprep.mubr.bf16.mxu0 %v4097
        %4928 = vmatmul.mubr.bf16.gmra.mxu0 %v4096
        %v4929 = vpop.f32.mrf.mxu0
        %v4930 = vadd.f32 %v4769, %v4929
        %v4931 = vpop.f32.mrf.mxu0
        %v4932 = vpop.f32.mrf.mxu0
        %v4933 = vadd.f32 %v4772, %v4932
        %v4934 = vpop.f32.mrf.mxu0
        %4935 = vmatprep.mubr.bf16.mxu0 %v4105
        %4936 = vmatmul.mubr.bf16.gmra.mxu0 %v4104
        %v4937 = vpop.f32.mrf.mxu0
        %v4938 = vadd.f32 %v4777, %v4937
        %v4939 = vpop.f32.mrf.mxu0
        %v4940 = vpop.f32.mrf.mxu0
        %v4941 = vadd.f32 %v4780, %v4940
        %v4942 = vpop.f32.mrf.mxu0
        %4943 = vmatprep.mubr.bf16.mxu0 %v4113
        %4944 = vmatmul.mubr.bf16.gmra.mxu0 %v4112
        %v4945 = vpop.f32.mrf.mxu0
        %v4946 = vadd.f32 %v4785, %v4945
        %v4947 = vpop.f32.mrf.mxu0
        %v4948 = vpop.f32.mrf.mxu0
        %v4949 = vadd.f32 %v4788, %v4948
        %v4950 = vpop.f32.mrf.mxu0
        %4951 = vmatprep.mubr.bf16.mxu0 %v4121
        %4952 = vmatmul.mubr.bf16.gmra.mxu0 %v4120
        %v4953 = vpop.f32.mrf.mxu0
        %v4954 = vadd.f32 %v4793, %v4953
        %v4955 = vpop.f32.mrf.mxu0
        %v4956 = vpop.f32.mrf.mxu0
        %v4957 = vadd.f32 %v4796, %v4956
        %v4958 = vpop.f32.mrf.mxu0
        %4959 = vmatprep.mubr.bf16.mxu0 %v4129
        %4960 = vmatmul.mubr.bf16.gmra.mxu0 %v4128
        %v4961 = vpop.f32.mrf.mxu0
        %v4962 = vadd.f32 %v4801, %v4961
        %v4963 = vpop.f32.mrf.mxu0
        %v4964 = vpop.f32.mrf.mxu0
        %v4965 = vadd.f32 %v4804, %v4964
        %v4966 = vpop.f32.mrf.mxu0
        %4967 = vmatprep.mubr.bf16.mxu0 %v4137
        %4968 = vmatmul.mubr.bf16.gmra.mxu0 %v4136
        %v4969 = vpop.f32.mrf.mxu0
        %v4970 = vadd.f32 %v4809, %v4969
        %v4971 = vpop.f32.mrf.mxu0
        %v4972 = vpop.f32.mrf.mxu0
        %v4973 = vadd.f32 %v4812, %v4972
        %v4974 = vpop.f32.mrf.mxu0
        %4975 = vmatprep.mubr.bf16.mxu0 %v4145
        %4976 = vmatmul.mubr.bf16.gmra.mxu0 %v4144
        %v4977 = vpop.f32.mrf.mxu0
        %v4978 = vadd.f32 %v4817, %v4977
        %v4979 = vpop.f32.mrf.mxu0
        %v4980 = vpop.f32.mrf.mxu0
        %v4981 = vadd.f32 %v4820, %v4980
        %v4982 = vpop.f32.mrf.mxu0
        %4983 = vmatprep.mubr.bf16.mxu0 %v4153
        %4984 = vmatmul.mubr.bf16.gmra.mxu0 %v4152
        %v4985 = vpop.f32.mrf.mxu0
        %v4986 = vadd.f32 %v4825, %v4985
        %v4987 = vpop.f32.mrf.mxu0
        %v4988 = vpop.f32.mrf.mxu0
        %v4989 = vadd.f32 %v4828, %v4988
        %v4990 = vpop.f32.mrf.mxu0
        %4991 = vmatprep.mubr.bf16.mxu0 %v4161
        %4992 = vmatmul.mubr.bf16.gmra.mxu0 %v4160
        %v4993 = vpop.f32.mrf.mxu0
        %v4994 = vadd.f32 %v4833, %v4993
        %v4995 = vpop.f32.mrf.mxu0
        %v4996 = vpop.f32.mrf.mxu0
        %v4997 = vadd.f32 %v4836, %v4996
        %v4998 = vpop.f32.mrf.mxu0
        %4999 = vmatprep.mubr.bf16.mxu0 %v4169
        %5000 = vmatmul.mubr.bf16.gmra.mxu0 %v4168
        %v5001 = vpop.f32.mrf.mxu0
        %v5002 = vadd.f32 %v4841, %v5001
        %v5003 = vpop.f32.mrf.mxu0
        %v5004 = vpop.f32.mrf.mxu0
        %v5005 = vadd.f32 %v4844, %v5004
        %v5006 = vpop.f32.mrf.mxu0
        %5007 = vmatprep.mubr.bf16.mxu0 %v4177
        %5008 = vmatmul.mubr.bf16.gmra.mxu0 %v4176
        %v5009 = vpop.f32.mrf.mxu0
        %v5010 = vadd.f32 %v4849, %v5009
        %v5011 = vpop.f32.mrf.mxu0
        %v5012 = vpop.f32.mrf.mxu0
        %v5013 = vadd.f32 %v4852, %v5012
        %v5014 = vpop.f32.mrf.mxu0
        %5015 = vmatprep.mubr.bf16.mxu0 %v4185
        %5016 = vmatmul.mubr.bf16.gmra.mxu0 %v4184
        %v5017 = vpop.f32.mrf.mxu0
        %v5018 = vadd.f32 %v4857, %v5017
        %v5019 = vpop.f32.mrf.mxu0
        %v5020 = vpop.f32.mrf.mxu0
        %v5021 = vadd.f32 %v4860, %v5020
        %v5022 = vpop.f32.mrf.mxu0
        %5023 = vmatprep.mubr.bf16.mxu0 %v4193
        %5024 = vmatmul.mubr.bf16.gmra.mxu0 %v4192
        %v5025 = vpop.f32.mrf.mxu0
        %v5026 = vadd.f32 %v4865, %v5025
        %v5027 = vpop.f32.mrf.mxu0
        %v5028 = vpop.f32.mrf.mxu0
        %v5029 = vadd.f32 %v4868, %v5028
        %v5030 = vpop.f32.mrf.mxu0
        %5031 = vmatprep.mubr.bf16.mxu0 %v4201
        %5032 = vmatmul.mubr.bf16.gmra.mxu0 %v4200
        %v5033 = vpop.f32.mrf.mxu0
        %v5034 = vadd.f32 %v4873, %v5033
        %v5035 = vpop.f32.mrf.mxu0
        %v5036 = vpop.f32.mrf.mxu0
        %v5037 = vadd.f32 %v4876, %v5036
        %v5038 = vpop.f32.mrf.mxu0
        %5039 = vdwg.mxu0
        %5040 = vmatprep.subr.bf16.mxu0 0
        %5041 = vmatpush1.bf16.msra.mxu0 %v4629
        %5042 = vmatprep.subr.bf16.mxu0 0
        %5043 = vmatpush1.bf16.msra.mxu0 %v4628
        %5044 = vmatprep.subr.bf16.mxu0 0
        %5045 = vmatpush1.bf16.msra.mxu0 %v4627
        %5046 = vmatprep.subr.bf16.mxu0 0
        %5047 = vmatpush1.bf16.msra.mxu0 %v4626
        %5048 = vmatprep.subr.bf16.mxu0 0
        %5049 = vmatpush1.bf16.msra.mxu0 %v4625
        %5050 = vmatprep.subr.bf16.mxu0 0
        %5051 = vmatpush1.bf16.msra.mxu0 %v4624
        %5052 = vmatprep.subr.bf16.mxu0 0
        %5053 = vmatpush1.bf16.msra.mxu0 %v4623
        %5054 = vmatprep.subr.bf16.mxu0 0
        %5055 = vmatpush1.bf16.msra.mxu0 %v4622
        %5056 = vmatprep.subr.bf16.mxu0 0
        %5057 = vmatpush2.bf16.msra.mxu0 %v4637
        %5058 = vmatprep.subr.bf16.mxu0 0
        %5059 = vmatpush2.bf16.msra.mxu0 %v4636
        %5060 = vmatprep.subr.bf16.mxu0 0
        %5061 = vmatpush2.bf16.msra.mxu0 %v4635
        %5062 = vmatprep.subr.bf16.mxu0 0
        %5063 = vmatpush2.bf16.msra.mxu0 %v4634
        %5064 = vmatprep.subr.bf16.mxu0 0
        %5065 = vmatpush2.bf16.msra.mxu0 %v4633
        %5066 = vmatprep.subr.bf16.mxu0 0
        %5067 = vmatpush2.bf16.msra.mxu0 %v4632
        %5068 = vmatprep.subr.bf16.mxu0 0
        %5069 = vmatpush2.bf16.msra.mxu0 %v4631
        %5070 = vmatprep.subr.bf16.mxu0 0
        %5071 = vmatpush2.bf16.msra.mxu0 %v4630
        %5072 = vmatprep.mubr.bf16.mxu0 %v4083
        %5073 = vmatmul.mubr.bf16.gmra.mxu0 %v4082
        %v5074 = vpop.f32.mrf.mxu0
        %v5075 = vadd.f32 %v4914, %v5074
        %v5076 = vpop.f32.mrf.mxu0
        %v5077 = vpop.f32.mrf.mxu0
        %v5078 = vadd.f32 %v4917, %v5077
        %v5079 = vpop.f32.mrf.mxu0
        %5080 = vmatprep.mubr.bf16.mxu0 %v4091
        %5081 = vmatmul.mubr.bf16.gmra.mxu0 %v4090
        %v5082 = vpop.f32.mrf.mxu0
        %v5083 = vadd.f32 %v4922, %v5082
        %v5084 = vpop.f32.mrf.mxu0
        %v5085 = vpop.f32.mrf.mxu0
        %v5086 = vadd.f32 %v4925, %v5085
        %v5087 = vpop.f32.mrf.mxu0
        %5088 = vmatprep.mubr.bf16.mxu0 %v4099
        %5089 = vmatmul.mubr.bf16.gmra.mxu0 %v4098
        %v5090 = vpop.f32.mrf.mxu0
        %v5091 = vadd.f32 %v4930, %v5090
        %v5092 = vpop.f32.mrf.mxu0
        %v5093 = vpop.f32.mrf.mxu0
        %v5094 = vadd.f32 %v4933, %v5093
        %v5095 = vpop.f32.mrf.mxu0
        %5096 = vmatprep.mubr.bf16.mxu0 %v4107
        %5097 = vmatmul.mubr.bf16.gmra.mxu0 %v4106
        %v5098 = vpop.f32.mrf.mxu0
        %v5099 = vadd.f32 %v4938, %v5098
        %v5100 = vpop.f32.mrf.mxu0
        %v5101 = vpop.f32.mrf.mxu0
        %v5102 = vadd.f32 %v4941, %v5101
        %v5103 = vpop.f32.mrf.mxu0
        %5104 = vmatprep.mubr.bf16.mxu0 %v4115
        %5105 = vmatmul.mubr.bf16.gmra.mxu0 %v4114
        %v5106 = vpop.f32.mrf.mxu0
        %v5107 = vadd.f32 %v4946, %v5106
        %v5108 = vpop.f32.mrf.mxu0
        %v5109 = vpop.f32.mrf.mxu0
        %v5110 = vadd.f32 %v4949, %v5109
        %v5111 = vpop.f32.mrf.mxu0
        %5112 = vmatprep.mubr.bf16.mxu0 %v4123
        %5113 = vmatmul.mubr.bf16.gmra.mxu0 %v4122
        %v5114 = vpop.f32.mrf.mxu0
        %v5115 = vadd.f32 %v4954, %v5114
        %v5116 = vpop.f32.mrf.mxu0
        %v5117 = vpop.f32.mrf.mxu0
        %v5118 = vadd.f32 %v4957, %v5117
        %v5119 = vpop.f32.mrf.mxu0
        %5120 = vmatprep.mubr.bf16.mxu0 %v4131
        %5121 = vmatmul.mubr.bf16.gmra.mxu0 %v4130
        %v5122 = vpop.f32.mrf.mxu0
        %v5123 = vadd.f32 %v4962, %v5122
        %v5124 = vpop.f32.mrf.mxu0
        %v5125 = vpop.f32.mrf.mxu0
        %v5126 = vadd.f32 %v4965, %v5125
        %v5127 = vpop.f32.mrf.mxu0
        %5128 = vmatprep.mubr.bf16.mxu0 %v4139
        %5129 = vmatmul.mubr.bf16.gmra.mxu0 %v4138
        %v5130 = vpop.f32.mrf.mxu0
        %v5131 = vadd.f32 %v4970, %v5130
        %v5132 = vpop.f32.mrf.mxu0
        %v5133 = vpop.f32.mrf.mxu0
        %v5134 = vadd.f32 %v4973, %v5133
        %v5135 = vpop.f32.mrf.mxu0
        %5136 = vmatprep.mubr.bf16.mxu0 %v4147
        %5137 = vmatmul.mubr.bf16.gmra.mxu0 %v4146
        %v5138 = vpop.f32.mrf.mxu0
        %v5139 = vadd.f32 %v4978, %v5138
        %v5140 = vpop.f32.mrf.mxu0
        %v5141 = vpop.f32.mrf.mxu0
        %v5142 = vadd.f32 %v4981, %v5141
        %v5143 = vpop.f32.mrf.mxu0
        %5144 = vmatprep.mubr.bf16.mxu0 %v4155
        %5145 = vmatmul.mubr.bf16.gmra.mxu0 %v4154
        %v5146 = vpop.f32.mrf.mxu0
        %v5147 = vadd.f32 %v4986, %v5146
        %v5148 = vpop.f32.mrf.mxu0
        %v5149 = vpop.f32.mrf.mxu0
        %v5150 = vadd.f32 %v4989, %v5149
        %v5151 = vpop.f32.mrf.mxu0
        %5152 = vmatprep.mubr.bf16.mxu0 %v4163
        %5153 = vmatmul.mubr.bf16.gmra.mxu0 %v4162
        %v5154 = vpop.f32.mrf.mxu0
        %v5155 = vadd.f32 %v4994, %v5154
        %v5156 = vpop.f32.mrf.mxu0
        %v5157 = vpop.f32.mrf.mxu0
        %v5158 = vadd.f32 %v4997, %v5157
        %v5159 = vpop.f32.mrf.mxu0
        %5160 = vmatprep.mubr.bf16.mxu0 %v4171
        %5161 = vmatmul.mubr.bf16.gmra.mxu0 %v4170
        %v5162 = vpop.f32.mrf.mxu0
        %v5163 = vadd.f32 %v5002, %v5162
        %v5164 = vpop.f32.mrf.mxu0
        %v5165 = vpop.f32.mrf.mxu0
        %v5166 = vadd.f32 %v5005, %v5165
        %v5167 = vpop.f32.mrf.mxu0
        %5168 = vmatprep.mubr.bf16.mxu0 %v4179
        %5169 = vmatmul.mubr.bf16.gmra.mxu0 %v4178
        %v5170 = vpop.f32.mrf.mxu0
        %v5171 = vadd.f32 %v5010, %v5170
        %v5172 = vpop.f32.mrf.mxu0
        %v5173 = vpop.f32.mrf.mxu0
        %v5174 = vadd.f32 %v5013, %v5173
        %v5175 = vpop.f32.mrf.mxu0
        %5176 = vmatprep.mubr.bf16.mxu0 %v4187
        %5177 = vmatmul.mubr.bf16.gmra.mxu0 %v4186
        %v5178 = vpop.f32.mrf.mxu0
        %v5179 = vadd.f32 %v5018, %v5178
        %v5180 = vpop.f32.mrf.mxu0
        %v5181 = vpop.f32.mrf.mxu0
        %v5182 = vadd.f32 %v5021, %v5181
        %v5183 = vpop.f32.mrf.mxu0
        %5184 = vmatprep.mubr.bf16.mxu0 %v4195
        %5185 = vmatmul.mubr.bf16.gmra.mxu0 %v4194
        %v5186 = vpop.f32.mrf.mxu0
        %v5187 = vadd.f32 %v5026, %v5186
        %v5188 = vpop.f32.mrf.mxu0
        %v5189 = vpop.f32.mrf.mxu0
        %v5190 = vadd.f32 %v5029, %v5189
        %v5191 = vpop.f32.mrf.mxu0
        %5192 = vmatprep.mubr.bf16.mxu0 %v4203
        %5193 = vmatmul.mubr.bf16.gmra.mxu0 %v4202
        %v5194 = vpop.f32.mrf.mxu0
        %v5195 = vadd.f32 %v5034, %v5194
        %v5196 = vpop.f32.mrf.mxu0
        %v5197 = vpop.f32.mrf.mxu0
        %v5198 = vadd.f32 %v5037, %v5197
        %v5199 = vpop.f32.mrf.mxu0
        %5200 = vdwg.mxu0
        %5201 = vmatprep.subr.bf16.mxu0 0
        %5202 = vmatpush1.bf16.msra.mxu0 %v4645
        %5203 = vmatprep.subr.bf16.mxu0 0
        %5204 = vmatpush1.bf16.msra.mxu0 %v4644
        %5205 = vmatprep.subr.bf16.mxu0 0
        %5206 = vmatpush1.bf16.msra.mxu0 %v4643
        %5207 = vmatprep.subr.bf16.mxu0 0
        %5208 = vmatpush1.bf16.msra.mxu0 %v4642
        %5209 = vmatprep.subr.bf16.mxu0 0
        %5210 = vmatpush1.bf16.msra.mxu0 %v4641
        %5211 = vmatprep.subr.bf16.mxu0 0
        %5212 = vmatpush1.bf16.msra.mxu0 %v4640
        %5213 = vmatprep.subr.bf16.mxu0 0
        %5214 = vmatpush1.bf16.msra.mxu0 %v4639
        %5215 = vmatprep.subr.bf16.mxu0 0
        %5216 = vmatpush1.bf16.msra.mxu0 %v4638
        %5217 = vmatprep.subr.bf16.mxu0 0
        %5218 = vmatpush2.bf16.msra.mxu0 %v4653
        %5219 = vmatprep.subr.bf16.mxu0 0
        %5220 = vmatpush2.bf16.msra.mxu0 %v4652
        %5221 = vmatprep.subr.bf16.mxu0 0
        %5222 = vmatpush2.bf16.msra.mxu0 %v4651
        %5223 = vmatprep.subr.bf16.mxu0 0
        %5224 = vmatpush2.bf16.msra.mxu0 %v4650
        %5225 = vmatprep.subr.bf16.mxu0 0
        %5226 = vmatpush2.bf16.msra.mxu0 %v4649
        %5227 = vmatprep.subr.bf16.mxu0 0
        %5228 = vmatpush2.bf16.msra.mxu0 %v4648
        %5229 = vmatprep.subr.bf16.mxu0 0
        %5230 = vmatpush2.bf16.msra.mxu0 %v4647
        %5231 = vmatprep.subr.bf16.mxu0 0
        %5232 = vmatpush2.bf16.msra.mxu0 %v4646
        %5233 = vmatprep.mubr.bf16.mxu0 %v4085
        %5234 = vmatmul.mubr.bf16.gmra.mxu0 %v4084
        %v5235 = vpop.f32.mrf.mxu0
        %v5236 = vadd.f32 %v5075, %v5235
        %v5237 = vpop.f32.mrf.mxu0
        %v5238 = vpop.f32.mrf.mxu0
        %v5239 = vadd.f32 %v5078, %v5238
        %v5240 = vpop.f32.mrf.mxu0
        %5241 = vmatprep.mubr.bf16.mxu0 %v4093
        %5242 = vmatmul.mubr.bf16.gmra.mxu0 %v4092
        %v5243 = vpop.f32.mrf.mxu0
        %v5244 = vadd.f32 %v5083, %v5243
        %v5245 = vpop.f32.mrf.mxu0
        %v5246 = vpop.f32.mrf.mxu0
        %v5247 = vadd.f32 %v5086, %v5246
        %v5248 = vpop.f32.mrf.mxu0
        %5249 = vmatprep.mubr.bf16.mxu0 %v4101
        %5250 = vmatmul.mubr.bf16.gmra.mxu0 %v4100
        %v5251 = vpop.f32.mrf.mxu0
        %v5252 = vadd.f32 %v5091, %v5251
        %v5253 = vpop.f32.mrf.mxu0
        %v5254 = vpop.f32.mrf.mxu0
        %v5255 = vadd.f32 %v5094, %v5254
        %v5256 = vpop.f32.mrf.mxu0
        %5257 = vmatprep.mubr.bf16.mxu0 %v4109
        %5258 = vmatmul.mubr.bf16.gmra.mxu0 %v4108
        %v5259 = vpop.f32.mrf.mxu0
        %v5260 = vadd.f32 %v5099, %v5259
        %v5261 = vpop.f32.mrf.mxu0
        %v5262 = vpop.f32.mrf.mxu0
        %v5263 = vadd.f32 %v5102, %v5262
        %v5264 = vpop.f32.mrf.mxu0
        %5265 = vmatprep.mubr.bf16.mxu0 %v4117
        %5266 = vmatmul.mubr.bf16.gmra.mxu0 %v4116
        %v5267 = vpop.f32.mrf.mxu0
        %v5268 = vadd.f32 %v5107, %v5267
        %v5269 = vpop.f32.mrf.mxu0
        %v5270 = vpop.f32.mrf.mxu0
        %v5271 = vadd.f32 %v5110, %v5270
        %v5272 = vpop.f32.mrf.mxu0
        %5273 = vmatprep.mubr.bf16.mxu0 %v4125
        %5274 = vmatmul.mubr.bf16.gmra.mxu0 %v4124
        %v5275 = vpop.f32.mrf.mxu0
        %v5276 = vadd.f32 %v5115, %v5275
        %v5277 = vpop.f32.mrf.mxu0
        %v5278 = vpop.f32.mrf.mxu0
        %v5279 = vadd.f32 %v5118, %v5278
        %v5280 = vpop.f32.mrf.mxu0
        %5281 = vmatprep.mubr.bf16.mxu0 %v4133
        %5282 = vmatmul.mubr.bf16.gmra.mxu0 %v4132
        %v5283 = vpop.f32.mrf.mxu0
        %v5284 = vadd.f32 %v5123, %v5283
        %v5285 = vpop.f32.mrf.mxu0
        %v5286 = vpop.f32.mrf.mxu0
        %v5287 = vadd.f32 %v5126, %v5286
        %v5288 = vpop.f32.mrf.mxu0
        %5289 = vmatprep.mubr.bf16.mxu0 %v4141
        %5290 = vmatmul.mubr.bf16.gmra.mxu0 %v4140
        %v5291 = vpop.f32.mrf.mxu0
        %v5292 = vadd.f32 %v5131, %v5291
        %v5293 = vpop.f32.mrf.mxu0
        %v5294 = vpop.f32.mrf.mxu0
        %v5295 = vadd.f32 %v5134, %v5294
        %v5296 = vpop.f32.mrf.mxu0
        %5297 = vmatprep.mubr.bf16.mxu0 %v4149
        %5298 = vmatmul.mubr.bf16.gmra.mxu0 %v4148
        %v5299 = vpop.f32.mrf.mxu0
        %v5300 = vadd.f32 %v5139, %v5299
        %v5301 = vpop.f32.mrf.mxu0
        %v5302 = vpop.f32.mrf.mxu0
        %v5303 = vadd.f32 %v5142, %v5302
        %v5304 = vpop.f32.mrf.mxu0
        %5305 = vmatprep.mubr.bf16.mxu0 %v4157
        %5306 = vmatmul.mubr.bf16.gmra.mxu0 %v4156
        %v5307 = vpop.f32.mrf.mxu0
        %v5308 = vadd.f32 %v5147, %v5307
        %v5309 = vpop.f32.mrf.mxu0
        %v5310 = vpop.f32.mrf.mxu0
        %v5311 = vadd.f32 %v5150, %v5310
        %v5312 = vpop.f32.mrf.mxu0
        %5313 = vmatprep.mubr.bf16.mxu0 %v4165
        %5314 = vmatmul.mubr.bf16.gmra.mxu0 %v4164
        %v5315 = vpop.f32.mrf.mxu0
        %v5316 = vadd.f32 %v5155, %v5315
        %v5317 = vpop.f32.mrf.mxu0
        %v5318 = vpop.f32.mrf.mxu0
        %v5319 = vadd.f32 %v5158, %v5318
        %v5320 = vpop.f32.mrf.mxu0
        %5321 = vmatprep.mubr.bf16.mxu0 %v4173
        %5322 = vmatmul.mubr.bf16.gmra.mxu0 %v4172
        %v5323 = vpop.f32.mrf.mxu0
        %v5324 = vadd.f32 %v5163, %v5323
        %v5325 = vpop.f32.mrf.mxu0
        %v5326 = vpop.f32.mrf.mxu0
        %v5327 = vadd.f32 %v5166, %v5326
        %v5328 = vpop.f32.mrf.mxu0
        %5329 = vmatprep.mubr.bf16.mxu0 %v4181
        %5330 = vmatmul.mubr.bf16.gmra.mxu0 %v4180
        %v5331 = vpop.f32.mrf.mxu0
        %v5332 = vadd.f32 %v5171, %v5331
        %v5333 = vpop.f32.mrf.mxu0
        %v5334 = vpop.f32.mrf.mxu0
        %v5335 = vadd.f32 %v5174, %v5334
        %v5336 = vpop.f32.mrf.mxu0
        %5337 = vmatprep.mubr.bf16.mxu0 %v4189
        %5338 = vmatmul.mubr.bf16.gmra.mxu0 %v4188
        %v5339 = vpop.f32.mrf.mxu0
        %v5340 = vadd.f32 %v5179, %v5339
        %v5341 = vpop.f32.mrf.mxu0
        %v5342 = vpop.f32.mrf.mxu0
        %v5343 = vadd.f32 %v5182, %v5342
        %v5344 = vpop.f32.mrf.mxu0
        %5345 = vmatprep.mubr.bf16.mxu0 %v4197
        %5346 = vmatmul.mubr.bf16.gmra.mxu0 %v4196
        %v5347 = vpop.f32.mrf.mxu0
        %v5348 = vadd.f32 %v5187, %v5347
        %v5349 = vpop.f32.mrf.mxu0
        %v5350 = vpop.f32.mrf.mxu0
        %v5351 = vadd.f32 %v5190, %v5350
        %v5352 = vpop.f32.mrf.mxu0
        %5353 = vmatprep.mubr.bf16.mxu0 %v4205
        %5354 = vmatmul.mubr.bf16.gmra.mxu0 %v4204
        %v5355 = vpop.f32.mrf.mxu0
        %v5356 = vadd.f32 %v5195, %v5355
        %v5357 = vpop.f32.mrf.mxu0
        %v5358 = vpop.f32.mrf.mxu0
        %v5359 = vadd.f32 %v5198, %v5358
        %v5360 = vpop.f32.mrf.mxu0
        %5361 = vdwg.mxu0
        %v5362 = vmul.f32 %v5236, 0.25
        %v5363 = vmul.f32 %v5239, 0.25
        %v5364 = vmul.f32 %v5244, 0.25
        %v5365 = vmul.f32 %v5247, 0.25
        %v5366 = vmul.f32 %v5252, 0.25
        %v5367 = vmul.f32 %v5255, 0.25
        %v5368 = vmul.f32 %v5260, 0.25
        %v5369 = vmul.f32 %v5263, 0.25
        %v5370 = vmul.f32 %v5268, 0.25
        %v5371 = vmul.f32 %v5271, 0.25
        %v5372 = vmul.f32 %v5276, 0.25
        %v5373 = vmul.f32 %v5279, 0.25
        %v5374 = vmul.f32 %v5284, 0.25
        %v5375 = vmul.f32 %v5287, 0.25
        %v5376 = vmul.f32 %v5292, 0.25
        %v5377 = vmul.f32 %v5295, 0.25
        %v5378 = vmul.f32 %v5300, 0.25
        %v5379 = vmul.f32 %v5303, 0.25
        %v5380 = vmul.f32 %v5308, 0.25
        %v5381 = vmul.f32 %v5311, 0.25
        %v5382 = vmul.f32 %v5316, 0.25
        %v5383 = vmul.f32 %v5319, 0.25
        %v5384 = vmul.f32 %v5324, 0.25
        %v5385 = vmul.f32 %v5327, 0.25
        %v5386 = vmul.f32 %v5332, 0.25
        %v5387 = vmul.f32 %v5335, 0.25
        %v5388 = vmul.f32 %v5340, 0.25
        %v5389 = vmul.f32 %v5343, 0.25
        %v5390 = vmul.f32 %v5348, 0.25
        %v5391 = vmul.f32 %v5351, 0.25
        %v5392 = vmul.f32 %v5356, 0.25
        %v5393 = vmul.f32 %v5359, 0.25
        %5394 = vst [vmem:[%s348] sm:$0xff] %v5362
        %5395 = vst [vmem:[%s348 + $0x8] sm:$0xff] %v5363
        %5396 = vst [vmem:[%s348 + $0x10] sm:$0xff] %v5364
        %5397 = vst [vmem:[%s348 + $0x18] sm:$0xff] %v5365
        %5398 = vst [vmem:[%s348 + $0x20] sm:$0xff] %v5366
        %5399 = vst [vmem:[%s348 + $0x28] sm:$0xff] %v5367
        %5400 = vst [vmem:[%s348 + $0x30] sm:$0xff] %v5368
        %5401 = vst [vmem:[%s348 + $0x38] sm:$0xff] %v5369
        %5402 = vst [vmem:[%s348 + $0x40] sm:$0xff] %v5370
        %5403 = vst [vmem:[%s348 + $0x48] sm:$0xff] %v5371
        %5404 = vst [vmem:[%s348 + $0x50] sm:$0xff] %v5372
        %5405 = vst [vmem:[%s348 + $0x58] sm:$0xff] %v5373
        %5406 = vst [vmem:[%s348 + $0x60] sm:$0xff] %v5374
        %5407 = vst [vmem:[%s348 + $0x68] sm:$0xff] %v5375
        %5408 = vst [vmem:[%s348 + $0x70] sm:$0xff] %v5376
        %5409 = vst [vmem:[%s348 + $0x78] sm:$0xff] %v5377
        %5410 = vst [vmem:[%s348 + $0x80] sm:$0xff] %v5378
        %5411 = vst [vmem:[%s348 + $0x88] sm:$0xff] %v5379
        %5412 = vst [vmem:[%s348 + $0x90] sm:$0xff] %v5380
        %5413 = vst [vmem:[%s348 + $0x98] sm:$0xff] %v5381
        %5414 = vst [vmem:[%s348 + $0xa0] sm:$0xff] %v5382
        %5415 = vst [vmem:[%s348 + $0xa8] sm:$0xff] %v5383
        %5416 = vst [vmem:[%s348 + $0xb0] sm:$0xff] %v5384
        %5417 = vst [vmem:[%s348 + $0xb8] sm:$0xff] %v5385
        %5418 = vst [vmem:[%s348 + $0xc0] sm:$0xff] %v5386
        %5419 = vst [vmem:[%s348 + $0xc8] sm:$0xff] %v5387
        %5420 = vst [vmem:[%s348 + $0xd0] sm:$0xff] %v5388
        %5421 = vst [vmem:[%s348 + $0xd8] sm:$0xff] %v5389
        %5422 = vst [vmem:[%s348 + $0xe0] sm:$0xff] %v5390
        %5423 = vst [vmem:[%s348 + $0xe8] sm:$0xff] %v5391
        %5424 = vst [vmem:[%s348 + $0xf0] sm:$0xff] %v5392
        %5425 = vst [vmem:[%s348 + $0xf8] sm:$0xff] %v5393
        %s5426 = sand.u32 %s155, 1
        %s5427 = scalar_lea.sflag [#allocation4], %s5426
        %s5428 = sand.u32 %s155, 1
        %s5429 = smul.addr %s5428, 256
        %s5430 = scalar_lea.vmem [#allocation10], %s5429
        // Predicated region
        $region53: #{tpu_custom_call.1} parent=35 // pred_check
          %p5431 = pneg %p165
        $region54: #{tpu_custom_call.1} parent=35 // pred_check_branch
          %5433 = sbr.rel (%p5431) target = $region56
        $region55: #{tpu_custom_call.1} parent=35 // pred_region
          %s5434 = smul.u32 32, %s32
          %s5436 = ssub.s32 4096, 4096
          %5437 = vsyncadd %s5427, %s5436
          %s5438 = smul.addr %s31, 32
          %s5439 = sadd.s32 %s5434, %s5438
          %s5440 = smul.addr %s5439, 128
          %s5441 = scalar_lea.hbm %s4, %s5440
          %s5442 = sshll.u32 %s5430, 4
          %s5443 = int_to_ptr.vmem [resolvable:$true] %s5442
          %5448 = dma.vmem_to_hbm [thread:$0]  %s5443, 4096, %s5441, %s5427, 128, 128, 8
        $region56: #{tpu_custom_call.1} parent=35 // pred_fallthru
          _
      $region36: #{tpu_custom_call.1} parent=5 // pred_fallthru
        _
      %p5449 = scmp.le.s32.totalorder 2, %s22
      // Predicated region
      $region57: #{tpu_custom_call.1} parent=5 // pred_check
        %p5450 = pneg %p5449
      $region58: #{tpu_custom_call.1} parent=5 // pred_check_branch
        %5452 = sbr.rel (%p5450) target = $region60
      $region59: #{tpu_custom_call.1} parent=5 // pred_region
        %s5453 = ssub.s32 %s22, 2
        // Predicated region
        $region61: #{tpu_custom_call.1} parent=59 // pred_check
          %p5454 = pneg %p171
        $region62: #{tpu_custom_call.1} parent=59 // pred_check_branch
          %5456 = sbr.rel (%p5454) target = $region64
        $region63: #{tpu_custom_call.1} parent=59 // pred_region
          %s5457 = sand.u32 %s156, 1
          %s5458 = scalar_lea.sflag [#allocation4], %s5457
          %s5459 = sand.u32 %s156, 1
          %s5460 = smul.addr %s5459, 256
          %s5461 = scalar_lea.vmem [#allocation10], %s5460
          %5462 = dma.done %s5458, 4096
        $region64: #{tpu_custom_call.1} parent=59 // pred_fallthru
          _
      $region60: #{tpu_custom_call.1} parent=5 // pred_fallthru
        _
    $region6: #{tpu_custom_call.1} parent=1 // loop_footer
      %s26 = sadd.s32 1, %s22
    $region7: #{tpu_custom_call.1} parent=1 // loop_footer_branch
      %21 = sbr.rel target = $region3
    $region8: #{tpu_custom_call.1} parent=1 // loop_exit
      _
    %5463 = vsyncpa [#allocation3], 1
    %s5464 = scalar_lea.sflag [#allocation3], 1
    %5465 = vsyncpa %s5464, 1
    %5466 = vsyncpa [#allocation6], 1
    %s5467 = scalar_lea.sflag [#allocation6], 1
    %5468 = vsyncpa %s5467, 1
    %5469 = vsyncpa [#allocation9], 1
    %s5470 = scalar_lea.sflag [#allocation9], 1
    %5471 = vsyncpa %s5470, 1
    %5472 = vsyncpa [#allocation4], 1
    %s5473 = scalar_lea.sflag [#allocation4], 1
    %5474 = vsyncpa %s5473, 1

</llo_original>
